<compile_context>
chip_gen: v7x
topology: tpu7x:2x2x1
jax: 0.10.0
libtpu: 0.0.40
codegen_flags: <defaults>
</compile_context>

<pallas_src>
import math
from functools import partial

import jax
import jax.numpy as jnp
from jax import lax
from jax.experimental import pallas as pl
from jax.experimental.pallas import tpu as pltpu


# -----------------------------------------------------------------------------
# Fused kernel: input proj -> L encoder layers -> pool -> fused output heads
# -----------------------------------------------------------------------------
def _fused_kernel(nh,
                  x_ref, pe_ref, mask_ref,
                  w_in_ref, b_in_ref,
                  wq_ref, wk_ref, wv_ref, bq_ref, bk_ref, bv_ref,
                  wo_ref, bo_ref,
                  w1_ref, b1_ref, w2_ref, b2_ref,
                  g1_ref, beta1_ref, g2_ref, beta2_ref,
                  wpool_ref, bc_ref, w_heads_ref, b_heads_ref,
                  out_ref):
    L = wq_ref.shape[0]
    E = wq_ref.shape[1]
    dh = E // nh
    f32 = jnp.float32

    mask = mask_ref[...]                                    # (R, R) additive mask

    # positional encoding + input projection (rows = flattened batch*seq)
    x = x_ref[...] + pe_ref[...]                            # (R, E)
    h = jnp.dot(x, w_in_ref[...], preferred_element_type=f32) + b_in_ref[...]

    def layer_norm(z, g, b):
        mu = jnp.mean(z, axis=-1, keepdims=True)
        var = jnp.mean(jnp.square(z - mu), axis=-1, keepdims=True)
        return (z - mu) * lax.rsqrt(var + 1e-5) * g + b

    for l in range(L):                                      # static unroll (L small)
        wq, wk, wv, wo = wq_ref[l], wk_ref[l], wv_ref[l], wo_ref[l]
        # wq / bq are pre-scaled by 1/sqrt(dh) in pack_params
        q = jnp.dot(h, wq, preferred_element_type=f32) + bq_ref[l]
        k = jnp.dot(h, wk, preferred_element_type=f32) + bk_ref[l]
        v = jnp.dot(h, wv, preferred_element_type=f32) + bv_ref[l]

        # multi-head attention: per-head softmax over masked flattened rows;
        # heads merged by accumulating through Wo (no lane concatenation).
        attn = None
        for hh in range(nh):
            sl = slice(hh * dh, (hh + 1) * dh)
            s = lax.dot_general(q[:, sl], k[:, sl],
                                (((1,), (1,)), ((), ())),
                                preferred_element_type=f32) + mask
            s = s - jnp.max(s, axis=-1, keepdims=True)
            p = jnp.exp(s)
            p = p * pl.reciprocal(jnp.sum(p, axis=-1, keepdims=True), approx=True)
            ctx = jnp.dot(p, v[:, sl], preferred_element_type=f32)          # (R, dh)
            contrib = jnp.dot(ctx, wo[sl, :], preferred_element_type=f32)   # (R, E)
            attn = contrib if attn is None else attn + contrib
        attn = attn + bo_ref[l]

        # post-norm residual blocks (biased variance, eps=1e-5 — matches PyTorch)
        y = layer_norm(h + attn, g1_ref[l], beta1_ref[l])
        f = jnp.maximum(jnp.dot(y, w1_ref[l], preferred_element_type=f32) + b1_ref[l], 0.0)
        f = jnp.dot(f, w2_ref[l], preferred_element_type=f32) + b2_ref[l]
        h = layer_norm(y + f, g2_ref[l], beta2_ref[l])

    # pooling ("conv_layer" over the sequence axis) folded into the epilogue:
    # wpool is block-diagonal (N, R) with wc on real rows, 0 on padded rows.
    pooled = jnp.dot(wpool_ref[...], h, preferred_element_type=f32) + bc_ref[...]   # (N, E)
    # both output heads fused: single matmul, single contiguous (N, 2*O) store
    out_ref[...] = (jnp.dot(pooled, w_heads_ref[...], preferred_element_type=f32)
                    + b_heads_ref[...])


# -----------------------------------------------------------------------------
# Wrapper
# -----------------------------------------------------------------------------
def transformer_disperse_forward(x, packed, nh):
    # x: [N, S, E] -> (result [N, O], var [N, O])
    N, S, E = x.shape
    Tp = packed["pe_flat"].shape[0] // N

    # data assembly only (CLS token + zero pad + flatten) — layout plumbing
    cls = jnp.broadcast_to(packed["cls"][None, None, :], (N, 1, E)).astype(jnp.float32)
    pad = jnp.zeros((N, Tp - S - 1, E), jnp.float32)
    xin = jnp.concatenate([cls, x.astype(jnp.float32), pad], axis=1).reshape(N * Tp, E)

    out = pl.pallas_call(
        partial(_fused_kernel, nh),
        out_shape=jax.ShapeDtypeStruct((N, packed["w_heads"].shape[1]), jnp.float32),
    )(xin, packed["pe_flat"], packed["mask"],
      packed["w_in"], packed["b_in"],
      packed["wq"], packed["wk"], packed["wv"],
      packed["bq"], packed["bk"], packed["bv"],
      packed["wo"], packed["bo"],
      packed["w1"], packed["b1"], packed["w2"], packed["b2"],
      packed["g1"], packed["beta1"], packed["g2"], packed["beta2"],
      packed["wpool"], packed["bc"], packed["w_heads"], packed["b_heads"])

    O = packed["w_heads"].shape[1] // 2
    return out[:, :O], out[:, O:]


# -----------------------------------------------------------------------------
# Positional encoding / parameter construction / packing
# -----------------------------------------------------------------------------
def sinusoidal_pe(T, E):
    pos = jnp.arange(T, dtype=jnp.float32)[:, None]
    div = jnp.exp(jnp.arange(0, E, 2, dtype=jnp.float32) * (-math.log(10000.0) / E))
    pe = jnp.zeros((T, E), jnp.float32)
    pe = pe.at[:, 0::2].set(jnp.sin(pos * div))
    pe = pe.at[:, 1::2].set(jnp.cos(pos * div))
    return pe


def init_params(key, E, F, O, T, num_layers):
    # generous key count (previous version under-allocated and hit StopIteration)
    ks = iter(jax.random.split(key, 16 + 16 * num_layers))

    def w(shape, scale=0.08):
        return scale * jax.random.normal(next(ks), shape, jnp.float32)

    params = {
        "cls": jax.random.uniform(next(ks), (E,), jnp.float32),   # torch.rand(emb_size)
        "w_in": w((E, E)), "b_in": w((1, E), 0.02),
        "wc": w((1, T)), "bc": w((1, 1), 0.02),                   # conv_layer: Linear(T, 1)
        "w_out": w((E, O)), "b_out": w((1, O), 0.02),
        "w_var": w((E, O)), "b_var": w((1, O), 0.02),
        "layers": [],
    }
    for _ in range(num_layers):
        params["layers"].append({
            "wq": w((E, E)), "wk": w((E, E)), "wv": w((E, E)),
            "bq": w((1, E), 0.02), "bk": w((1, E), 0.02), "bv": w((1, E), 0.02),
            "wo": w((E, E)), "bo": w((1, E), 0.02),
            "w1": w((E, F)), "b1": w((1, F), 0.02),
            "w2": w((F, E)), "b2": w((1, E), 0.02),
            "g1": jnp.ones((1, E), jnp.float32), "beta1": jnp.zeros((1, E), jnp.float32),
            "g2": jnp.ones((1, E), jnp.float32), "beta2": jnp.zeros((1, E), jnp.float32),
        })
    return params


def pack_params(params, nh, T, Tp, N):
    """One-time repack into kernel-ready, stacked / padded / fused tensors."""
    E = params["w_in"].shape[0]
    dh = E // nh
    scale = jnp.float32(1.0 / math.sqrt(dh))
    st = lambda key: jnp.stack([lp[key] for lp in params["layers"]])

    R = N * Tp
    tok = jnp.arange(R)
    batch_id = tok // Tp
    tpos = tok % Tp
    allow = (batch_id[:, None] == batch_id[None, :]) & (tpos[None, :] < T)
    mask = jnp.where(allow, 0.0, -1e9).astype(jnp.float32)          # (R, R)

    wc_pad = jnp.zeros((Tp,), jnp.float32).at[:T].set(params["wc"][0])
    wpool = jnp.kron(jnp.eye(N, dtype=jnp.float32), wc_pad[None, :])  # (N, R)

    pe_flat = jnp.tile(sinusoidal_pe(Tp, E), (N, 1))                 # (R, E)

    return {
        "cls": params["cls"],
        "pe_flat": pe_flat, "mask": mask,
        "w_in": params["w_in"], "b_in": params["b_in"],
        "wq": st("wq") * scale, "bq": st("bq") * scale,              # fold 1/sqrt(dh)
        "wk": st("wk"), "bk": st("bk"),
        "wv": st("wv"), "bv": st("bv"),
        "wo": st("wo"), "bo": st("bo"),
        "w1": st("w1"), "b1": st("b1"),
        "w2": st("w2"), "b2": st("b2"),
        "g1": st("g1"), "beta1": st("beta1"),
        "g2": st("g2"), "beta2": st("beta2"),
        "wpool": wpool, "bc": params["bc"],
        "w_heads": jnp.concatenate([params["w_out"], params["w_var"]], axis=1),
        "b_heads": jnp.concatenate([params["b_out"], params["b_var"]], axis=1),
    }


# -----------------------------------------------------------------------------
# Pure-JAX reference (for correctness check)
# -----------------------------------------------------------------------------
def reference_forward(x, params, pe, nh):
    N, S, E = x.shape
    dh = E // nh
    cls = jnp.broadcast_to(params["cls"][None, None, :], (N, 1, E))
    h = jnp.concatenate([cls, x], axis=1) + pe[None]
    h = h @ params["w_in"] + params["b_in"][0]
    T = h.shape[1]

    def ln(z, g, b):
        mu = jnp.mean(z, -1, keepdims=True)
        v = jnp.mean(jnp.square(z - mu), -1, keepdims=True)
        return (z - mu) * jax.lax.rsqrt(v + 1e-5) * g + b

    for lp in params["layers"]:
        q = (h @ lp["wq"] + lp["bq"][0]).reshape(N, T, nh, dh).transpose(0, 2, 1, 3)
        k = (h @ lp["wk"] + lp["bk"][0]).reshape(N, T, nh, dh).transpose(0, 2, 1, 3)
        v = (h @ lp["wv"] + lp["bv"][0]).reshape(N, T, nh, dh).transpose(0, 2, 1, 3)
        s = jnp.einsum("nhqd,nhkd->nhqk", q, k) / math.sqrt(dh)
        p = jax.nn.softmax(s, axis=-1)
        a = jnp.einsum("nhqk,nhkd->nhqd", p, v).transpose(0, 2, 1, 3).reshape(N, T, E)
        a = a @ lp["wo"] + lp["bo"][0]
        y = ln(h + a, lp["g1"][0], lp["beta1"][0])
        f = jnp.maximum(y @ lp["w1"] + lp["b1"][0], 0.0) @ lp["w2"] + lp["b2"][0]
        h = ln(y + f, lp["g2"][0], lp["beta2"][0])

    pooled = jnp.einsum("nte,t->ne", h, params["wc"][0]) + params["bc"][0, 0]
    return pooled @ params["w_out"] + params["b_out"][0], \
           pooled @ params["w_var"] + params["b_var"][0]


# -----------------------------------------------------------------------------
if __name__ == "__main__":
    # config: emb_size=32, num_heads=4, seq_len=8, num_layers=2,
    #         forward_expansion=4, output_size=16, batch=2 (eval mode, pad_mask=None)
    N, S, E, NH, NUM_LAYERS, FE, O = 2, 8, 32, 4, 2, 4, 16
    T = S + 1
    Tp = 16                      # T padded to a sublane multiple
    F = FE * E

    key = jax.random.PRNGKey(0)
    kp, kx = jax.random.split(key)
    params = init_params(kp, E, F, O, T, NUM_LAYERS)
    x = jax.random.normal(kx, (N, S, E), jnp.float32)

    packed = pack_params(params, NH, T, Tp, N)
    fwd = jax.jit(partial(transformer_disperse_forward, nh=NH))
    result, var = jax.block_until_ready(fwd(x, packed))

    ref_res, ref_var = reference_forward(x, params, sinusoidal_pe(T, E), NH)
    assert result.shape == (N, O) and var.shape == (N, O)
    # tolerance tightened vs 5e-2; small slack left for the approx-reciprocal softmax
    err_r = float(jnp.max(jnp.abs(result - ref_res)))
    err_v = float(jnp.max(jnp.abs(var - ref_var)))
    assert err_r < 2e-3, err_r
    assert err_v < 2e-3, err_v

    print("KERNEL_OK")
</pallas_src>

<mosaic_0001>
module attributes {stable_mosaic.version = 11 : i64} {
  func.func @_fused_kernel(%arg0: memref<32x32xf32, #tpu.memory_space<vmem>>, %arg1: memref<32x32xf32, #tpu.memory_space<vmem>>, %arg2: memref<32x32xf32, #tpu.memory_space<vmem>>, %arg3: memref<32x32xf32, #tpu.memory_space<vmem>>, %arg4: memref<1x32xf32, #tpu.memory_space<vmem>>, %arg5: memref<2x32x32xf32, #tpu.memory_space<vmem>>, %arg6: memref<2x32x32xf32, #tpu.memory_space<vmem>>, %arg7: memref<2x32x32xf32, #tpu.memory_space<vmem>>, %arg8: memref<2x1x32xf32, #tpu.memory_space<vmem>>, %arg9: memref<2x1x32xf32, #tpu.memory_space<vmem>>, %arg10: memref<2x1x32xf32, #tpu.memory_space<vmem>>, %arg11: memref<2x32x32xf32, #tpu.memory_space<vmem>>, %arg12: memref<2x1x32xf32, #tpu.memory_space<vmem>>, %arg13: memref<2x32x128xf32, #tpu.memory_space<vmem>>, %arg14: memref<2x1x128xf32, #tpu.memory_space<vmem>>, %arg15: memref<2x128x32xf32, #tpu.memory_space<vmem>>, %arg16: memref<2x1x32xf32, #tpu.memory_space<vmem>>, %arg17: memref<2x1x32xf32, #tpu.memory_space<vmem>>, %arg18: memref<2x1x32xf32, #tpu.memory_space<vmem>>, %arg19: memref<2x1x32xf32, #tpu.memory_space<vmem>>, %arg20: memref<2x1x32xf32, #tpu.memory_space<vmem>>, %arg21: memref<2x32xf32, #tpu.memory_space<vmem>>, %arg22: memref<1x1xf32, #tpu.memory_space<vmem>>, %arg23: memref<32x32xf32, #tpu.memory_space<vmem>>, %arg24: memref<1x32xf32, #tpu.memory_space<vmem>>, %arg25: memref<2x32xf32, #tpu.memory_space<vmem>>) attributes {dimension_semantics = [], scalar_prefetch = 0 : i64, scratch_operands = 0 : i64, tpu.core_type = #tpu.core_type<tc>} {
    %c0 = arith.constant 0 : index
    %c0_0 = arith.constant 0 : index
    %0 = vector.load %arg2[%c0, %c0_0] : memref<32x32xf32, #tpu.memory_space<vmem>>, vector<32x32xf32>
    %c0_1 = arith.constant 0 : index
    %c0_2 = arith.constant 0 : index
    %1 = vector.load %arg0[%c0_1, %c0_2] : memref<32x32xf32, #tpu.memory_space<vmem>>, vector<32x32xf32>
    %c0_3 = arith.constant 0 : index
    %c0_4 = arith.constant 0 : index
    %2 = vector.load %arg1[%c0_3, %c0_4] : memref<32x32xf32, #tpu.memory_space<vmem>>, vector<32x32xf32>
    %3 = arith.addf %1, %2 : vector<32x32xf32>
    %c0_5 = arith.constant 0 : index
    %c0_6 = arith.constant 0 : index
    %4 = vector.load %arg3[%c0_5, %c0_6] : memref<32x32xf32, #tpu.memory_space<vmem>>, vector<32x32xf32>
    %cst = arith.constant dense<0.000000e+00> : vector<32x32xf32>
    %5 = tpu.matmul %3, %4, %cst {dimension_numbers = #tpu.dot_dimension_numbers<[1], [0], [0], [1], [0, 0, 1, 1], [], []>} : vector<32x32xf32>, vector<32x32xf32>, vector<32x32xf32> -> vector<32x32xf32>
    %c0_7 = arith.constant 0 : index
    %c0_8 = arith.constant 0 : index
    %6 = vector.load %arg4[%c0_7, %c0_8] : memref<1x32xf32, #tpu.memory_space<vmem>>, vector<1x32xf32>
    %7 = vector.broadcast %6 : vector<1x32xf32> to vector<32x32xf32>
    %8 = arith.addf %5, %7 : vector<32x32xf32>
    %c0_9 = arith.constant 0 : index
    %c0_10 = arith.constant 0 : index
    %c0_11 = arith.constant 0 : index
    %9 = vector.load %arg5[%c0_9, %c0_10, %c0_11] : memref<2x32x32xf32, #tpu.memory_space<vmem>>, vector<1x32x32xf32>
    %10 = vector.shape_cast %9 : vector<1x32x32xf32> to vector<32x32xf32>
    %c0_12 = arith.constant 0 : index
    %c0_13 = arith.constant 0 : index
    %c0_14 = arith.constant 0 : index
    %11 = vector.load %arg6[%c0_12, %c0_13, %c0_14] : memref<2x32x32xf32, #tpu.memory_space<vmem>>, vector<1x32x32xf32>
    %12 = vector.shape_cast %11 : vector<1x32x32xf32> to vector<32x32xf32>
    %c0_15 = arith.constant 0 : index
    %c0_16 = arith.constant 0 : index
    %c0_17 = arith.constant 0 : index
    %13 = vector.load %arg7[%c0_15, %c0_16, %c0_17] : memref<2x32x32xf32, #tpu.memory_space<vmem>>, vector<1x32x32xf32>
    %14 = vector.shape_cast %13 : vector<1x32x32xf32> to vector<32x32xf32>
    %c0_18 = arith.constant 0 : index
    %c0_19 = arith.constant 0 : index
    %c0_20 = arith.constant 0 : index
    %15 = vector.load %arg11[%c0_18, %c0_19, %c0_20] : memref<2x32x32xf32, #tpu.memory_space<vmem>>, vector<1x32x32xf32>
    %16 = vector.shape_cast %15 : vector<1x32x32xf32> to vector<32x32xf32>
    %cst_21 = arith.constant dense<0.000000e+00> : vector<32x32xf32>
    %17 = tpu.matmul %8, %10, %cst_21 {dimension_numbers = #tpu.dot_dimension_numbers<[1], [0], [0], [1], [0, 0, 1, 1], [], []>} : vector<32x32xf32>, vector<32x32xf32>, vector<32x32xf32> -> vector<32x32xf32>
    %c0_22 = arith.constant 0 : index
    %c0_23 = arith.constant 0 : index
    %c0_24 = arith.constant 0 : index
    %18 = vector.load %arg8[%c0_22, %c0_23, %c0_24] : memref<2x1x32xf32, #tpu.memory_space<vmem>>, vector<1x1x32xf32>
    %19 = vector.shape_cast %18 : vector<1x1x32xf32> to vector<1x32xf32>
    %20 = vector.broadcast %19 : vector<1x32xf32> to vector<32x32xf32>
    %21 = arith.addf %17, %20 : vector<32x32xf32>
    %cst_25 = arith.constant dense<0.000000e+00> : vector<32x32xf32>
    %22 = tpu.matmul %8, %12, %cst_25 {dimension_numbers = #tpu.dot_dimension_numbers<[1], [0], [0], [1], [0, 0, 1, 1], [], []>} : vector<32x32xf32>, vector<32x32xf32>, vector<32x32xf32> -> vector<32x32xf32>
    %c0_26 = arith.constant 0 : index
    %c0_27 = arith.constant 0 : index
    %c0_28 = arith.constant 0 : index
    %23 = vector.load %arg9[%c0_26, %c0_27, %c0_28] : memref<2x1x32xf32, #tpu.memory_space<vmem>>, vector<1x1x32xf32>
    %24 = vector.shape_cast %23 : vector<1x1x32xf32> to vector<1x32xf32>
    %25 = vector.broadcast %24 : vector<1x32xf32> to vector<32x32xf32>
    %26 = arith.addf %22, %25 : vector<32x32xf32>
    %cst_29 = arith.constant dense<0.000000e+00> : vector<32x32xf32>
    %27 = tpu.matmul %8, %14, %cst_29 {dimension_numbers = #tpu.dot_dimension_numbers<[1], [0], [0], [1], [0, 0, 1, 1], [], []>} : vector<32x32xf32>, vector<32x32xf32>, vector<32x32xf32> -> vector<32x32xf32>
    %c0_30 = arith.constant 0 : index
    %c0_31 = arith.constant 0 : index
    %c0_32 = arith.constant 0 : index
    %28 = vector.load %arg10[%c0_30, %c0_31, %c0_32] : memref<2x1x32xf32, #tpu.memory_space<vmem>>, vector<1x1x32xf32>
    %29 = vector.shape_cast %28 : vector<1x1x32xf32> to vector<1x32xf32>
    %30 = vector.broadcast %29 : vector<1x32xf32> to vector<32x32xf32>
    %31 = arith.addf %27, %30 : vector<32x32xf32>
    %32 = vector.extract_strided_slice %21 {offsets = [0, 0], sizes = [32, 8], strides = [1, 1]} : vector<32x32xf32> to vector<32x8xf32>
    %33 = vector.extract_strided_slice %26 {offsets = [0, 0], sizes = [32, 8], strides = [1, 1]} : vector<32x32xf32> to vector<32x8xf32>
    %cst_33 = arith.constant dense<0.000000e+00> : vector<32x32xf32>
    %34 = tpu.matmul %32, %33, %cst_33 {dimension_numbers = #tpu.dot_dimension_numbers<[1], [1], [0], [0], [0, 0, 1, 0], [], []>} : vector<32x8xf32>, vector<32x8xf32>, vector<32x32xf32> -> vector<32x32xf32>
    %35 = arith.addf %34, %0 : vector<32x32xf32>
    %cst_34 = arith.constant dense<0xFF800000> : vector<32xf32>
    %36 = vector.multi_reduction <maximumf>, %35, %cst_34 [1] : vector<32x32xf32> to vector<32xf32>
    %37 = vector.shape_cast %36 : vector<32xf32> to vector<32x1xf32>
    %38 = vector.broadcast %37 : vector<32x1xf32> to vector<32x32xf32>
    %39 = arith.subf %35, %38 : vector<32x32xf32>
    %40 = math.exp %39 : vector<32x32xf32>
    %cst_35 = arith.constant dense<0.000000e+00> : vector<32xf32>
    %41 = vector.multi_reduction <add>, %40, %cst_35 [1] : vector<32x32xf32> to vector<32xf32>
    %42 = vector.shape_cast %41 : vector<32xf32> to vector<32x1xf32>
    %43 = tpu.reciprocal %42 {approx = true} : vector<32x1xf32> -> vector<32x1xf32>
    %44 = vector.broadcast %43 : vector<32x1xf32> to vector<32x32xf32>
    %45 = arith.mulf %40, %44 : vector<32x32xf32>
    %46 = vector.extract_strided_slice %31 {offsets = [0, 0], sizes = [32, 8], strides = [1, 1]} : vector<32x32xf32> to vector<32x8xf32>
    %cst_36 = arith.constant dense<0.000000e+00> : vector<32x8xf32>
    %47 = tpu.matmul %45, %46, %cst_36 {dimension_numbers = #tpu.dot_dimension_numbers<[1], [0], [0], [1], [0, 0, 1, 1], [], []>} : vector<32x32xf32>, vector<32x8xf32>, vector<32x8xf32> -> vector<32x8xf32>
    %48 = vector.extract_strided_slice %16 {offsets = [0, 0], sizes = [8, 32], strides = [1, 1]} : vector<32x32xf32> to vector<8x32xf32>
    %cst_37 = arith.constant dense<0.000000e+00> : vector<32x32xf32>
    %49 = tpu.matmul %47, %48, %cst_37 {dimension_numbers = #tpu.dot_dimension_numbers<[1], [0], [0], [1], [0, 0, 1, 1], [], []>} : vector<32x8xf32>, vector<8x32xf32>, vector<32x32xf32> -> vector<32x32xf32>
    %50 = vector.extract_strided_slice %21 {offsets = [0, 8], sizes = [32, 8], strides = [1, 1]} : vector<32x32xf32> to vector<32x8xf32>
    %51 = vector.extract_strided_slice %26 {offsets = [0, 8], sizes = [32, 8], strides = [1, 1]} : vector<32x32xf32> to vector<32x8xf32>
    %cst_38 = arith.constant dense<0.000000e+00> : vector<32x32xf32>
    %52 = tpu.matmul %50, %51, %cst_38 {dimension_numbers = #tpu.dot_dimension_numbers<[1], [1], [0], [0], [0, 0, 1, 0], [], []>} : vector<32x8xf32>, vector<32x8xf32>, vector<32x32xf32> -> vector<32x32xf32>
    %53 = arith.addf %52, %0 : vector<32x32xf32>
    %cst_39 = arith.constant dense<0xFF800000> : vector<32xf32>
    %54 = vector.multi_reduction <maximumf>, %53, %cst_39 [1] : vector<32x32xf32> to vector<32xf32>
    %55 = vector.shape_cast %54 : vector<32xf32> to vector<32x1xf32>
    %56 = vector.broadcast %55 : vector<32x1xf32> to vector<32x32xf32>
    %57 = arith.subf %53, %56 : vector<32x32xf32>
    %58 = math.exp %57 : vector<32x32xf32>
    %cst_40 = arith.constant dense<0.000000e+00> : vector<32xf32>
    %59 = vector.multi_reduction <add>, %58, %cst_40 [1] : vector<32x32xf32> to vector<32xf32>
    %60 = vector.shape_cast %59 : vector<32xf32> to vector<32x1xf32>
    %61 = tpu.reciprocal %60 {approx = true} : vector<32x1xf32> -> vector<32x1xf32>
    %62 = vector.broadcast %61 : vector<32x1xf32> to vector<32x32xf32>
    %63 = arith.mulf %58, %62 : vector<32x32xf32>
    %64 = vector.extract_strided_slice %31 {offsets = [0, 8], sizes = [32, 8], strides = [1, 1]} : vector<32x32xf32> to vector<32x8xf32>
    %cst_41 = arith.constant dense<0.000000e+00> : vector<32x8xf32>
    %65 = tpu.matmul %63, %64, %cst_41 {dimension_numbers = #tpu.dot_dimension_numbers<[1], [0], [0], [1], [0, 0, 1, 1], [], []>} : vector<32x32xf32>, vector<32x8xf32>, vector<32x8xf32> -> vector<32x8xf32>
    %66 = vector.extract_strided_slice %16 {offsets = [8, 0], sizes = [8, 32], strides = [1, 1]} : vector<32x32xf32> to vector<8x32xf32>
    %cst_42 = arith.constant dense<0.000000e+00> : vector<32x32xf32>
    %67 = tpu.matmul %65, %66, %cst_42 {dimension_numbers = #tpu.dot_dimension_numbers<[1], [0], [0], [1], [0, 0, 1, 1], [], []>} : vector<32x8xf32>, vector<8x32xf32>, vector<32x32xf32> -> vector<32x32xf32>
    %68 = arith.addf %49, %67 : vector<32x32xf32>
    %69 = vector.extract_strided_slice %21 {offsets = [0, 16], sizes = [32, 8], strides = [1, 1]} : vector<32x32xf32> to vector<32x8xf32>
    %70 = vector.extract_strided_slice %26 {offsets = [0, 16], sizes = [32, 8], strides = [1, 1]} : vector<32x32xf32> to vector<32x8xf32>
    %cst_43 = arith.constant dense<0.000000e+00> : vector<32x32xf32>
    %71 = tpu.matmul %69, %70, %cst_43 {dimension_numbers = #tpu.dot_dimension_numbers<[1], [1], [0], [0], [0, 0, 1, 0], [], []>} : vector<32x8xf32>, vector<32x8xf32>, vector<32x32xf32> -> vector<32x32xf32>
    %72 = arith.addf %71, %0 : vector<32x32xf32>
    %cst_44 = arith.constant dense<0xFF800000> : vector<32xf32>
    %73 = vector.multi_reduction <maximumf>, %72, %cst_44 [1] : vector<32x32xf32> to vector<32xf32>
    %74 = vector.shape_cast %73 : vector<32xf32> to vector<32x1xf32>
    %75 = vector.broadcast %74 : vector<32x1xf32> to vector<32x32xf32>
    %76 = arith.subf %72, %75 : vector<32x32xf32>
    %77 = math.exp %76 : vector<32x32xf32>
    %cst_45 = arith.constant dense<0.000000e+00> : vector<32xf32>
    %78 = vector.multi_reduction <add>, %77, %cst_45 [1] : vector<32x32xf32> to vector<32xf32>
    %79 = vector.shape_cast %78 : vector<32xf32> to vector<32x1xf32>
    %80 = tpu.reciprocal %79 {approx = true} : vector<32x1xf32> -> vector<32x1xf32>
    %81 = vector.broadcast %80 : vector<32x1xf32> to vector<32x32xf32>
    %82 = arith.mulf %77, %81 : vector<32x32xf32>
    %83 = vector.extract_strided_slice %31 {offsets = [0, 16], sizes = [32, 8], strides = [1, 1]} : vector<32x32xf32> to vector<32x8xf32>
    %cst_46 = arith.constant dense<0.000000e+00> : vector<32x8xf32>
    %84 = tpu.matmul %82, %83, %cst_46 {dimension_numbers = #tpu.dot_dimension_numbers<[1], [0], [0], [1], [0, 0, 1, 1], [], []>} : vector<32x32xf32>, vector<32x8xf32>, vector<32x8xf32> -> vector<32x8xf32>
    %85 = vector.extract_strided_slice %16 {offsets = [16, 0], sizes = [8, 32], strides = [1, 1]} : vector<32x32xf32> to vector<8x32xf32>
    %cst_47 = arith.constant dense<0.000000e+00> : vector<32x32xf32>
    %86 = tpu.matmul %84, %85, %cst_47 {dimension_numbers = #tpu.dot_dimension_numbers<[1], [0], [0], [1], [0, 0, 1, 1], [], []>} : vector<32x8xf32>, vector<8x32xf32>, vector<32x32xf32> -> vector<32x32xf32>
    %87 = arith.addf %68, %86 : vector<32x32xf32>
    %88 = vector.extract_strided_slice %21 {offsets = [0, 24], sizes = [32, 8], strides = [1, 1]} : vector<32x32xf32> to vector<32x8xf32>
    %89 = vector.extract_strided_slice %26 {offsets = [0, 24], sizes = [32, 8], strides = [1, 1]} : vector<32x32xf32> to vector<32x8xf32>
    %cst_48 = arith.constant dense<0.000000e+00> : vector<32x32xf32>
    %90 = tpu.matmul %88, %89, %cst_48 {dimension_numbers = #tpu.dot_dimension_numbers<[1], [1], [0], [0], [0, 0, 1, 0], [], []>} : vector<32x8xf32>, vector<32x8xf32>, vector<32x32xf32> -> vector<32x32xf32>
    %91 = arith.addf %90, %0 : vector<32x32xf32>
    %cst_49 = arith.constant dense<0xFF800000> : vector<32xf32>
    %92 = vector.multi_reduction <maximumf>, %91, %cst_49 [1] : vector<32x32xf32> to vector<32xf32>
    %93 = vector.shape_cast %92 : vector<32xf32> to vector<32x1xf32>
    %94 = vector.broadcast %93 : vector<32x1xf32> to vector<32x32xf32>
    %95 = arith.subf %91, %94 : vector<32x32xf32>
    %96 = math.exp %95 : vector<32x32xf32>
    %cst_50 = arith.constant dense<0.000000e+00> : vector<32xf32>
    %97 = vector.multi_reduction <add>, %96, %cst_50 [1] : vector<32x32xf32> to vector<32xf32>
    %98 = vector.shape_cast %97 : vector<32xf32> to vector<32x1xf32>
    %99 = tpu.reciprocal %98 {approx = true} : vector<32x1xf32> -> vector<32x1xf32>
    %100 = vector.broadcast %99 : vector<32x1xf32> to vector<32x32xf32>
    %101 = arith.mulf %96, %100 : vector<32x32xf32>
    %102 = vector.extract_strided_slice %31 {offsets = [0, 24], sizes = [32, 8], strides = [1, 1]} : vector<32x32xf32> to vector<32x8xf32>
    %cst_51 = arith.constant dense<0.000000e+00> : vector<32x8xf32>
    %103 = tpu.matmul %101, %102, %cst_51 {dimension_numbers = #tpu.dot_dimension_numbers<[1], [0], [0], [1], [0, 0, 1, 1], [], []>} : vector<32x32xf32>, vector<32x8xf32>, vector<32x8xf32> -> vector<32x8xf32>
    %104 = vector.extract_strided_slice %16 {offsets = [24, 0], sizes = [8, 32], strides = [1, 1]} : vector<32x32xf32> to vector<8x32xf32>
    %cst_52 = arith.constant dense<0.000000e+00> : vector<32x32xf32>
    %105 = tpu.matmul %103, %104, %cst_52 {dimension_numbers = #tpu.dot_dimension_numbers<[1], [0], [0], [1], [0, 0, 1, 1], [], []>} : vector<32x8xf32>, vector<8x32xf32>, vector<32x32xf32> -> vector<32x32xf32>
    %106 = arith.addf %87, %105 : vector<32x32xf32>
    %c0_53 = arith.constant 0 : index
    %c0_54 = arith.constant 0 : index
    %c0_55 = arith.constant 0 : index
    %107 = vector.load %arg12[%c0_53, %c0_54, %c0_55] : memref<2x1x32xf32, #tpu.memory_space<vmem>>, vector<1x1x32xf32>
    %108 = vector.shape_cast %107 : vector<1x1x32xf32> to vector<1x32xf32>
    %109 = vector.broadcast %108 : vector<1x32xf32> to vector<32x32xf32>
    %110 = arith.addf %106, %109 : vector<32x32xf32>
    %111 = arith.addf %8, %110 : vector<32x32xf32>
    %c0_56 = arith.constant 0 : index
    %c0_57 = arith.constant 0 : index
    %c0_58 = arith.constant 0 : index
    %112 = vector.load %arg17[%c0_56, %c0_57, %c0_58] : memref<2x1x32xf32, #tpu.memory_space<vmem>>, vector<1x1x32xf32>
    %113 = vector.shape_cast %112 : vector<1x1x32xf32> to vector<1x32xf32>
    %c0_59 = arith.constant 0 : index
    %c0_60 = arith.constant 0 : index
    %c0_61 = arith.constant 0 : index
    %114 = vector.load %arg18[%c0_59, %c0_60, %c0_61] : memref<2x1x32xf32, #tpu.memory_space<vmem>>, vector<1x1x32xf32>
    %115 = vector.shape_cast %114 : vector<1x1x32xf32> to vector<1x32xf32>
    %cst_62 = arith.constant dense<0.000000e+00> : vector<32xf32>
    %116 = vector.multi_reduction <add>, %111, %cst_62 [1] : vector<32x32xf32> to vector<32xf32>
    %117 = vector.shape_cast %116 : vector<32xf32> to vector<32x1xf32>
    %cst_63 = arith.constant 3.200000e+01 : f32
    %118 = vector.broadcast %cst_63 : f32 to vector<32x1xf32>
    %119 = arith.divf %117, %118 : vector<32x1xf32>
    %120 = vector.broadcast %119 : vector<32x1xf32> to vector<32x32xf32>
    %121 = arith.subf %111, %120 : vector<32x32xf32>
    %122 = arith.mulf %121, %121 : vector<32x32xf32>
    %cst_64 = arith.constant dense<0.000000e+00> : vector<32xf32>
    %123 = vector.multi_reduction <add>, %122, %cst_64 [1] : vector<32x32xf32> to vector<32xf32>
    %124 = vector.shape_cast %123 : vector<32xf32> to vector<32x1xf32>
    %cst_65 = arith.constant 3.200000e+01 : f32
    %125 = vector.broadcast %cst_65 : f32 to vector<32x1xf32>
    %126 = arith.divf %124, %125 : vector<32x1xf32>
    %127 = vector.broadcast %119 : vector<32x1xf32> to vector<32x32xf32>
    %128 = arith.subf %111, %127 : vector<32x32xf32>
    %cst_66 = arith.constant 9.99999974E-6 : f32
    %129 = vector.broadcast %cst_66 : f32 to vector<32x1xf32>
    %130 = arith.addf %126, %129 : vector<32x1xf32>
    %131 = math.rsqrt %130 : vector<32x1xf32>
    %132 = vector.broadcast %131 : vector<32x1xf32> to vector<32x32xf32>
    %133 = arith.mulf %128, %132 : vector<32x32xf32>
    %134 = vector.broadcast %113 : vector<1x32xf32> to vector<32x32xf32>
    %135 = arith.mulf %133, %134 : vector<32x32xf32>
    %136 = vector.broadcast %115 : vector<1x32xf32> to vector<32x32xf32>
    %137 = arith.addf %135, %136 : vector<32x32xf32>
    %c0_67 = arith.constant 0 : index
    %c0_68 = arith.constant 0 : index
    %c0_69 = arith.constant 0 : index
    %138 = vector.load %arg13[%c0_67, %c0_68, %c0_69] : memref<2x32x128xf32, #tpu.memory_space<vmem>>, vector<1x32x128xf32>
    %139 = vector.shape_cast %138 : vector<1x32x128xf32> to vector<32x128xf32>
    %cst_70 = arith.constant dense<0.000000e+00> : vector<32x128xf32>
    %140 = tpu.matmul %137, %139, %cst_70 {dimension_numbers = #tpu.dot_dimension_numbers<[1], [0], [0], [1], [0, 0, 1, 1], [], []>} : vector<32x32xf32>, vector<32x128xf32>, vector<32x128xf32> -> vector<32x128xf32>
    %c0_71 = arith.constant 0 : index
    %c0_72 = arith.constant 0 : index
    %c0_73 = arith.constant 0 : index
    %141 = vector.load %arg14[%c0_71, %c0_72, %c0_73] : memref<2x1x128xf32, #tpu.memory_space<vmem>>, vector<1x1x128xf32>
    %142 = vector.shape_cast %141 : vector<1x1x128xf32> to vector<1x128xf32>
    %143 = vector.broadcast %142 : vector<1x128xf32> to vector<32x128xf32>
    %144 = arith.addf %140, %143 : vector<32x128xf32>
    %cst_74 = arith.constant 0.000000e+00 : f32
    %145 = vector.broadcast %cst_74 : f32 to vector<32x128xf32>
    %146 = arith.maximumf %144, %145 : vector<32x128xf32>
    %c0_75 = arith.constant 0 : index
    %c0_76 = arith.constant 0 : index
    %c0_77 = arith.constant 0 : index
    %147 = vector.load %arg15[%c0_75, %c0_76, %c0_77] : memref<2x128x32xf32, #tpu.memory_space<vmem>>, vector<1x128x32xf32>
    %148 = vector.shape_cast %147 : vector<1x128x32xf32> to vector<128x32xf32>
    %cst_78 = arith.constant dense<0.000000e+00> : vector<32x32xf32>
    %149 = tpu.matmul %146, %148, %cst_78 {dimension_numbers = #tpu.dot_dimension_numbers<[1], [0], [0], [1], [0, 0, 1, 1], [], []>} : vector<32x128xf32>, vector<128x32xf32>, vector<32x32xf32> -> vector<32x32xf32>
    %c0_79 = arith.constant 0 : index
    %c0_80 = arith.constant 0 : index
    %c0_81 = arith.constant 0 : index
    %150 = vector.load %arg16[%c0_79, %c0_80, %c0_81] : memref<2x1x32xf32, #tpu.memory_space<vmem>>, vector<1x1x32xf32>
    %151 = vector.shape_cast %150 : vector<1x1x32xf32> to vector<1x32xf32>
    %152 = vector.broadcast %151 : vector<1x32xf32> to vector<32x32xf32>
    %153 = arith.addf %149, %152 : vector<32x32xf32>
    %154 = arith.addf %137, %153 : vector<32x32xf32>
    %c0_82 = arith.constant 0 : index
    %c0_83 = arith.constant 0 : index
    %c0_84 = arith.constant 0 : index
    %155 = vector.load %arg19[%c0_82, %c0_83, %c0_84] : memref<2x1x32xf32, #tpu.memory_space<vmem>>, vector<1x1x32xf32>
    %156 = vector.shape_cast %155 : vector<1x1x32xf32> to vector<1x32xf32>
    %c0_85 = arith.constant 0 : index
    %c0_86 = arith.constant 0 : index
    %c0_87 = arith.constant 0 : index
    %157 = vector.load %arg20[%c0_85, %c0_86, %c0_87] : memref<2x1x32xf32, #tpu.memory_space<vmem>>, vector<1x1x32xf32>
    %158 = vector.shape_cast %157 : vector<1x1x32xf32> to vector<1x32xf32>
    %cst_88 = arith.constant dense<0.000000e+00> : vector<32xf32>
    %159 = vector.multi_reduction <add>, %154, %cst_88 [1] : vector<32x32xf32> to vector<32xf32>
    %160 = vector.shape_cast %159 : vector<32xf32> to vector<32x1xf32>
    %cst_89 = arith.constant 3.200000e+01 : f32
    %161 = vector.broadcast %cst_89 : f32 to vector<32x1xf32>
    %162 = arith.divf %160, %161 : vector<32x1xf32>
    %163 = vector.broadcast %162 : vector<32x1xf32> to vector<32x32xf32>
    %164 = arith.subf %154, %163 : vector<32x32xf32>
    %165 = arith.mulf %164, %164 : vector<32x32xf32>
    %cst_90 = arith.constant dense<0.000000e+00> : vector<32xf32>
    %166 = vector.multi_reduction <add>, %165, %cst_90 [1] : vector<32x32xf32> to vector<32xf32>
    %167 = vector.shape_cast %166 : vector<32xf32> to vector<32x1xf32>
    %cst_91 = arith.constant 3.200000e+01 : f32
    %168 = vector.broadcast %cst_91 : f32 to vector<32x1xf32>
    %169 = arith.divf %167, %168 : vector<32x1xf32>
    %170 = vector.broadcast %162 : vector<32x1xf32> to vector<32x32xf32>
    %171 = arith.subf %154, %170 : vector<32x32xf32>
    %cst_92 = arith.constant 9.99999974E-6 : f32
    %172 = vector.broadcast %cst_92 : f32 to vector<32x1xf32>
    %173 = arith.addf %169, %172 : vector<32x1xf32>
    %174 = math.rsqrt %173 : vector<32x1xf32>
    %175 = vector.broadcast %174 : vector<32x1xf32> to vector<32x32xf32>
    %176 = arith.mulf %171, %175 : vector<32x32xf32>
    %177 = vector.broadcast %156 : vector<1x32xf32> to vector<32x32xf32>
    %178 = arith.mulf %176, %177 : vector<32x32xf32>
    %179 = vector.broadcast %158 : vector<1x32xf32> to vector<32x32xf32>
    %180 = arith.addf %178, %179 : vector<32x32xf32>
    %c1 = arith.constant 1 : index
    %c0_93 = arith.constant 0 : index
    %c0_94 = arith.constant 0 : index
    %181 = vector.load %arg5[%c1, %c0_93, %c0_94] : memref<2x32x32xf32, #tpu.memory_space<vmem>>, vector<1x32x32xf32>
    %182 = vector.shape_cast %181 : vector<1x32x32xf32> to vector<32x32xf32>
    %c1_95 = arith.constant 1 : index
    %c0_96 = arith.constant 0 : index
    %c0_97 = arith.constant 0 : index
    %183 = vector.load %arg6[%c1_95, %c0_96, %c0_97] : memref<2x32x32xf32, #tpu.memory_space<vmem>>, vector<1x32x32xf32>
    %184 = vector.shape_cast %183 : vector<1x32x32xf32> to vector<32x32xf32>
    %c1_98 = arith.constant 1 : index
    %c0_99 = arith.constant 0 : index
    %c0_100 = arith.constant 0 : index
    %185 = vector.load %arg7[%c1_98, %c0_99, %c0_100] : memref<2x32x32xf32, #tpu.memory_space<vmem>>, vector<1x32x32xf32>
    %186 = vector.shape_cast %185 : vector<1x32x32xf32> to vector<32x32xf32>
    %c1_101 = arith.constant 1 : index
    %c0_102 = arith.constant 0 : index
    %c0_103 = arith.constant 0 : index
    %187 = vector.load %arg11[%c1_101, %c0_102, %c0_103] : memref<2x32x32xf32, #tpu.memory_space<vmem>>, vector<1x32x32xf32>
    %188 = vector.shape_cast %187 : vector<1x32x32xf32> to vector<32x32xf32>
    %cst_104 = arith.constant dense<0.000000e+00> : vector<32x32xf32>
    %189 = tpu.matmul %180, %182, %cst_104 {dimension_numbers = #tpu.dot_dimension_numbers<[1], [0], [0], [1], [0, 0, 1, 1], [], []>} : vector<32x32xf32>, vector<32x32xf32>, vector<32x32xf32> -> vector<32x32xf32>
    %c1_105 = arith.constant 1 : index
    %c0_106 = arith.constant 0 : index
    %c0_107 = arith.constant 0 : index
    %190 = vector.load %arg8[%c1_105, %c0_106, %c0_107] : memref<2x1x32xf32, #tpu.memory_space<vmem>>, vector<1x1x32xf32>
    %191 = vector.shape_cast %190 : vector<1x1x32xf32> to vector<1x32xf32>
    %192 = vector.broadcast %191 : vector<1x32xf32> to vector<32x32xf32>
    %193 = arith.addf %189, %192 : vector<32x32xf32>
    %cst_108 = arith.constant dense<0.000000e+00> : vector<32x32xf32>
    %194 = tpu.matmul %180, %184, %cst_108 {dimension_numbers = #tpu.dot_dimension_numbers<[1], [0], [0], [1], [0, 0, 1, 1], [], []>} : vector<32x32xf32>, vector<32x32xf32>, vector<32x32xf32> -> vector<32x32xf32>
    %c1_109 = arith.constant 1 : index
    %c0_110 = arith.constant 0 : index
    %c0_111 = arith.constant 0 : index
    %195 = vector.load %arg9[%c1_109, %c0_110, %c0_111] : memref<2x1x32xf32, #tpu.memory_space<vmem>>, vector<1x1x32xf32>
    %196 = vector.shape_cast %195 : vector<1x1x32xf32> to vector<1x32xf32>
    %197 = vector.broadcast %196 : vector<1x32xf32> to vector<32x32xf32>
    %198 = arith.addf %194, %197 : vector<32x32xf32>
    %cst_112 = arith.constant dense<0.000000e+00> : vector<32x32xf32>
    %199 = tpu.matmul %180, %186, %cst_112 {dimension_numbers = #tpu.dot_dimension_numbers<[1], [0], [0], [1], [0, 0, 1, 1], [], []>} : vector<32x32xf32>, vector<32x32xf32>, vector<32x32xf32> -> vector<32x32xf32>
    %c1_113 = arith.constant 1 : index
    %c0_114 = arith.constant 0 : index
    %c0_115 = arith.constant 0 : index
    %200 = vector.load %arg10[%c1_113, %c0_114, %c0_115] : memref<2x1x32xf32, #tpu.memory_space<vmem>>, vector<1x1x32xf32>
    %201 = vector.shape_cast %200 : vector<1x1x32xf32> to vector<1x32xf32>
    %202 = vector.broadcast %201 : vector<1x32xf32> to vector<32x32xf32>
    %203 = arith.addf %199, %202 : vector<32x32xf32>
    %204 = vector.extract_strided_slice %193 {offsets = [0, 0], sizes = [32, 8], strides = [1, 1]} : vector<32x32xf32> to vector<32x8xf32>
    %205 = vector.extract_strided_slice %198 {offsets = [0, 0], sizes = [32, 8], strides = [1, 1]} : vector<32x32xf32> to vector<32x8xf32>
    %cst_116 = arith.constant dense<0.000000e+00> : vector<32x32xf32>
    %206 = tpu.matmul %204, %205, %cst_116 {dimension_numbers = #tpu.dot_dimension_numbers<[1], [1], [0], [0], [0, 0, 1, 0], [], []>} : vector<32x8xf32>, vector<32x8xf32>, vector<32x32xf32> -> vector<32x32xf32>
    %207 = arith.addf %206, %0 : vector<32x32xf32>
    %cst_117 = arith.constant dense<0xFF800000> : vector<32xf32>
    %208 = vector.multi_reduction <maximumf>, %207, %cst_117 [1] : vector<32x32xf32> to vector<32xf32>
    %209 = vector.shape_cast %208 : vector<32xf32> to vector<32x1xf32>
    %210 = vector.broadcast %209 : vector<32x1xf32> to vector<32x32xf32>
    %211 = arith.subf %207, %210 : vector<32x32xf32>
    %212 = math.exp %211 : vector<32x32xf32>
    %cst_118 = arith.constant dense<0.000000e+00> : vector<32xf32>
    %213 = vector.multi_reduction <add>, %212, %cst_118 [1] : vector<32x32xf32> to vector<32xf32>
    %214 = vector.shape_cast %213 : vector<32xf32> to vector<32x1xf32>
    %215 = tpu.reciprocal %214 {approx = true} : vector<32x1xf32> -> vector<32x1xf32>
    %216 = vector.broadcast %215 : vector<32x1xf32> to vector<32x32xf32>
    %217 = arith.mulf %212, %216 : vector<32x32xf32>
    %218 = vector.extract_strided_slice %203 {offsets = [0, 0], sizes = [32, 8], strides = [1, 1]} : vector<32x32xf32> to vector<32x8xf32>
    %cst_119 = arith.constant dense<0.000000e+00> : vector<32x8xf32>
    %219 = tpu.matmul %217, %218, %cst_119 {dimension_numbers = #tpu.dot_dimension_numbers<[1], [0], [0], [1], [0, 0, 1, 1], [], []>} : vector<32x32xf32>, vector<32x8xf32>, vector<32x8xf32> -> vector<32x8xf32>
    %220 = vector.extract_strided_slice %188 {offsets = [0, 0], sizes = [8, 32], strides = [1, 1]} : vector<32x32xf32> to vector<8x32xf32>
    %cst_120 = arith.constant dense<0.000000e+00> : vector<32x32xf32>
    %221 = tpu.matmul %219, %220, %cst_120 {dimension_numbers = #tpu.dot_dimension_numbers<[1], [0], [0], [1], [0, 0, 1, 1], [], []>} : vector<32x8xf32>, vector<8x32xf32>, vector<32x32xf32> -> vector<32x32xf32>
    %222 = vector.extract_strided_slice %193 {offsets = [0, 8], sizes = [32, 8], strides = [1, 1]} : vector<32x32xf32> to vector<32x8xf32>
    %223 = vector.extract_strided_slice %198 {offsets = [0, 8], sizes = [32, 8], strides = [1, 1]} : vector<32x32xf32> to vector<32x8xf32>
    %cst_121 = arith.constant dense<0.000000e+00> : vector<32x32xf32>
    %224 = tpu.matmul %222, %223, %cst_121 {dimension_numbers = #tpu.dot_dimension_numbers<[1], [1], [0], [0], [0, 0, 1, 0], [], []>} : vector<32x8xf32>, vector<32x8xf32>, vector<32x32xf32> -> vector<32x32xf32>
    %225 = arith.addf %224, %0 : vector<32x32xf32>
    %cst_122 = arith.constant dense<0xFF800000> : vector<32xf32>
    %226 = vector.multi_reduction <maximumf>, %225, %cst_122 [1] : vector<32x32xf32> to vector<32xf32>
    %227 = vector.shape_cast %226 : vector<32xf32> to vector<32x1xf32>
    %228 = vector.broadcast %227 : vector<32x1xf32> to vector<32x32xf32>
    %229 = arith.subf %225, %228 : vector<32x32xf32>
    %230 = math.exp %229 : vector<32x32xf32>
    %cst_123 = arith.constant dense<0.000000e+00> : vector<32xf32>
    %231 = vector.multi_reduction <add>, %230, %cst_123 [1] : vector<32x32xf32> to vector<32xf32>
    %232 = vector.shape_cast %231 : vector<32xf32> to vector<32x1xf32>
    %233 = tpu.reciprocal %232 {approx = true} : vector<32x1xf32> -> vector<32x1xf32>
    %234 = vector.broadcast %233 : vector<32x1xf32> to vector<32x32xf32>
    %235 = arith.mulf %230, %234 : vector<32x32xf32>
    %236 = vector.extract_strided_slice %203 {offsets = [0, 8], sizes = [32, 8], strides = [1, 1]} : vector<32x32xf32> to vector<32x8xf32>
    %cst_124 = arith.constant dense<0.000000e+00> : vector<32x8xf32>
    %237 = tpu.matmul %235, %236, %cst_124 {dimension_numbers = #tpu.dot_dimension_numbers<[1], [0], [0], [1], [0, 0, 1, 1], [], []>} : vector<32x32xf32>, vector<32x8xf32>, vector<32x8xf32> -> vector<32x8xf32>
    %238 = vector.extract_strided_slice %188 {offsets = [8, 0], sizes = [8, 32], strides = [1, 1]} : vector<32x32xf32> to vector<8x32xf32>
    %cst_125 = arith.constant dense<0.000000e+00> : vector<32x32xf32>
    %239 = tpu.matmul %237, %238, %cst_125 {dimension_numbers = #tpu.dot_dimension_numbers<[1], [0], [0], [1], [0, 0, 1, 1], [], []>} : vector<32x8xf32>, vector<8x32xf32>, vector<32x32xf32> -> vector<32x32xf32>
    %240 = arith.addf %221, %239 : vector<32x32xf32>
    %241 = vector.extract_strided_slice %193 {offsets = [0, 16], sizes = [32, 8], strides = [1, 1]} : vector<32x32xf32> to vector<32x8xf32>
    %242 = vector.extract_strided_slice %198 {offsets = [0, 16], sizes = [32, 8], strides = [1, 1]} : vector<32x32xf32> to vector<32x8xf32>
    %cst_126 = arith.constant dense<0.000000e+00> : vector<32x32xf32>
    %243 = tpu.matmul %241, %242, %cst_126 {dimension_numbers = #tpu.dot_dimension_numbers<[1], [1], [0], [0], [0, 0, 1, 0], [], []>} : vector<32x8xf32>, vector<32x8xf32>, vector<32x32xf32> -> vector<32x32xf32>
    %244 = arith.addf %243, %0 : vector<32x32xf32>
    %cst_127 = arith.constant dense<0xFF800000> : vector<32xf32>
    %245 = vector.multi_reduction <maximumf>, %244, %cst_127 [1] : vector<32x32xf32> to vector<32xf32>
    %246 = vector.shape_cast %245 : vector<32xf32> to vector<32x1xf32>
    %247 = vector.broadcast %246 : vector<32x1xf32> to vector<32x32xf32>
    %248 = arith.subf %244, %247 : vector<32x32xf32>
    %249 = math.exp %248 : vector<32x32xf32>
    %cst_128 = arith.constant dense<0.000000e+00> : vector<32xf32>
    %250 = vector.multi_reduction <add>, %249, %cst_128 [1] : vector<32x32xf32> to vector<32xf32>
    %251 = vector.shape_cast %250 : vector<32xf32> to vector<32x1xf32>
    %252 = tpu.reciprocal %251 {approx = true} : vector<32x1xf32> -> vector<32x1xf32>
    %253 = vector.broadcast %252 : vector<32x1xf32> to vector<32x32xf32>
    %254 = arith.mulf %249, %253 : vector<32x32xf32>
    %255 = vector.extract_strided_slice %203 {offsets = [0, 16], sizes = [32, 8], strides = [1, 1]} : vector<32x32xf32> to vector<32x8xf32>
    %cst_129 = arith.constant dense<0.000000e+00> : vector<32x8xf32>
    %256 = tpu.matmul %254, %255, %cst_129 {dimension_numbers = #tpu.dot_dimension_numbers<[1], [0], [0], [1], [0, 0, 1, 1], [], []>} : vector<32x32xf32>, vector<32x8xf32>, vector<32x8xf32> -> vector<32x8xf32>
    %257 = vector.extract_strided_slice %188 {offsets = [16, 0], sizes = [8, 32], strides = [1, 1]} : vector<32x32xf32> to vector<8x32xf32>
    %cst_130 = arith.constant dense<0.000000e+00> : vector<32x32xf32>
    %258 = tpu.matmul %256, %257, %cst_130 {dimension_numbers = #tpu.dot_dimension_numbers<[1], [0], [0], [1], [0, 0, 1, 1], [], []>} : vector<32x8xf32>, vector<8x32xf32>, vector<32x32xf32> -> vector<32x32xf32>
    %259 = arith.addf %240, %258 : vector<32x32xf32>
    %260 = vector.extract_strided_slice %193 {offsets = [0, 24], sizes = [32, 8], strides = [1, 1]} : vector<32x32xf32> to vector<32x8xf32>
    %261 = vector.extract_strided_slice %198 {offsets = [0, 24], sizes = [32, 8], strides = [1, 1]} : vector<32x32xf32> to vector<32x8xf32>
    %cst_131 = arith.constant dense<0.000000e+00> : vector<32x32xf32>
    %262 = tpu.matmul %260, %261, %cst_131 {dimension_numbers = #tpu.dot_dimension_numbers<[1], [1], [0], [0], [0, 0, 1, 0], [], []>} : vector<32x8xf32>, vector<32x8xf32>, vector<32x32xf32> -> vector<32x32xf32>
    %263 = arith.addf %262, %0 : vector<32x32xf32>
    %cst_132 = arith.constant dense<0xFF800000> : vector<32xf32>
    %264 = vector.multi_reduction <maximumf>, %263, %cst_132 [1] : vector<32x32xf32> to vector<32xf32>
    %265 = vector.shape_cast %264 : vector<32xf32> to vector<32x1xf32>
    %266 = vector.broadcast %265 : vector<32x1xf32> to vector<32x32xf32>
    %267 = arith.subf %263, %266 : vector<32x32xf32>
    %268 = math.exp %267 : vector<32x32xf32>
    %cst_133 = arith.constant dense<0.000000e+00> : vector<32xf32>
    %269 = vector.multi_reduction <add>, %268, %cst_133 [1] : vector<32x32xf32> to vector<32xf32>
    %270 = vector.shape_cast %269 : vector<32xf32> to vector<32x1xf32>
    %271 = tpu.reciprocal %270 {approx = true} : vector<32x1xf32> -> vector<32x1xf32>
    %272 = vector.broadcast %271 : vector<32x1xf32> to vector<32x32xf32>
    %273 = arith.mulf %268, %272 : vector<32x32xf32>
    %274 = vector.extract_strided_slice %203 {offsets = [0, 24], sizes = [32, 8], strides = [1, 1]} : vector<32x32xf32> to vector<32x8xf32>
    %cst_134 = arith.constant dense<0.000000e+00> : vector<32x8xf32>
    %275 = tpu.matmul %273, %274, %cst_134 {dimension_numbers = #tpu.dot_dimension_numbers<[1], [0], [0], [1], [0, 0, 1, 1], [], []>} : vector<32x32xf32>, vector<32x8xf32>, vector<32x8xf32> -> vector<32x8xf32>
    %276 = vector.extract_strided_slice %188 {offsets = [24, 0], sizes = [8, 32], strides = [1, 1]} : vector<32x32xf32> to vector<8x32xf32>
    %cst_135 = arith.constant dense<0.000000e+00> : vector<32x32xf32>
    %277 = tpu.matmul %275, %276, %cst_135 {dimension_numbers = #tpu.dot_dimension_numbers<[1], [0], [0], [1], [0, 0, 1, 1], [], []>} : vector<32x8xf32>, vector<8x32xf32>, vector<32x32xf32> -> vector<32x32xf32>
    %278 = arith.addf %259, %277 : vector<32x32xf32>
    %c1_136 = arith.constant 1 : index
    %c0_137 = arith.constant 0 : index
    %c0_138 = arith.constant 0 : index
    %279 = vector.load %arg12[%c1_136, %c0_137, %c0_138] : memref<2x1x32xf32, #tpu.memory_space<vmem>>, vector<1x1x32xf32>
    %280 = vector.shape_cast %279 : vector<1x1x32xf32> to vector<1x32xf32>
    %281 = vector.broadcast %280 : vector<1x32xf32> to vector<32x32xf32>
    %282 = arith.addf %278, %281 : vector<32x32xf32>
    %283 = arith.addf %180, %282 : vector<32x32xf32>
    %c1_139 = arith.constant 1 : index
    %c0_140 = arith.constant 0 : index
    %c0_141 = arith.constant 0 : index
    %284 = vector.load %arg17[%c1_139, %c0_140, %c0_141] : memref<2x1x32xf32, #tpu.memory_space<vmem>>, vector<1x1x32xf32>
    %285 = vector.shape_cast %284 : vector<1x1x32xf32> to vector<1x32xf32>
    %c1_142 = arith.constant 1 : index
    %c0_143 = arith.constant 0 : index
    %c0_144 = arith.constant 0 : index
    %286 = vector.load %arg18[%c1_142, %c0_143, %c0_144] : memref<2x1x32xf32, #tpu.memory_space<vmem>>, vector<1x1x32xf32>
    %287 = vector.shape_cast %286 : vector<1x1x32xf32> to vector<1x32xf32>
    %cst_145 = arith.constant dense<0.000000e+00> : vector<32xf32>
    %288 = vector.multi_reduction <add>, %283, %cst_145 [1] : vector<32x32xf32> to vector<32xf32>
    %289 = vector.shape_cast %288 : vector<32xf32> to vector<32x1xf32>
    %cst_146 = arith.constant 3.200000e+01 : f32
    %290 = vector.broadcast %cst_146 : f32 to vector<32x1xf32>
    %291 = arith.divf %289, %290 : vector<32x1xf32>
    %292 = vector.broadcast %291 : vector<32x1xf32> to vector<32x32xf32>
    %293 = arith.subf %283, %292 : vector<32x32xf32>
    %294 = arith.mulf %293, %293 : vector<32x32xf32>
    %cst_147 = arith.constant dense<0.000000e+00> : vector<32xf32>
    %295 = vector.multi_reduction <add>, %294, %cst_147 [1] : vector<32x32xf32> to vector<32xf32>
    %296 = vector.shape_cast %295 : vector<32xf32> to vector<32x1xf32>
    %cst_148 = arith.constant 3.200000e+01 : f32
    %297 = vector.broadcast %cst_148 : f32 to vector<32x1xf32>
    %298 = arith.divf %296, %297 : vector<32x1xf32>
    %299 = vector.broadcast %291 : vector<32x1xf32> to vector<32x32xf32>
    %300 = arith.subf %283, %299 : vector<32x32xf32>
    %cst_149 = arith.constant 9.99999974E-6 : f32
    %301 = vector.broadcast %cst_149 : f32 to vector<32x1xf32>
    %302 = arith.addf %298, %301 : vector<32x1xf32>
    %303 = math.rsqrt %302 : vector<32x1xf32>
    %304 = vector.broadcast %303 : vector<32x1xf32> to vector<32x32xf32>
    %305 = arith.mulf %300, %304 : vector<32x32xf32>
    %306 = vector.broadcast %285 : vector<1x32xf32> to vector<32x32xf32>
    %307 = arith.mulf %305, %306 : vector<32x32xf32>
    %308 = vector.broadcast %287 : vector<1x32xf32> to vector<32x32xf32>
    %309 = arith.addf %307, %308 : vector<32x32xf32>
    %c1_150 = arith.constant 1 : index
    %c0_151 = arith.constant 0 : index
    %c0_152 = arith.constant 0 : index
    %310 = vector.load %arg13[%c1_150, %c0_151, %c0_152] : memref<2x32x128xf32, #tpu.memory_space<vmem>>, vector<1x32x128xf32>
    %311 = vector.shape_cast %310 : vector<1x32x128xf32> to vector<32x128xf32>
    %cst_153 = arith.constant dense<0.000000e+00> : vector<32x128xf32>
    %312 = tpu.matmul %309, %311, %cst_153 {dimension_numbers = #tpu.dot_dimension_numbers<[1], [0], [0], [1], [0, 0, 1, 1], [], []>} : vector<32x32xf32>, vector<32x128xf32>, vector<32x128xf32> -> vector<32x128xf32>
    %c1_154 = arith.constant 1 : index
    %c0_155 = arith.constant 0 : index
    %c0_156 = arith.constant 0 : index
    %313 = vector.load %arg14[%c1_154, %c0_155, %c0_156] : memref<2x1x128xf32, #tpu.memory_space<vmem>>, vector<1x1x128xf32>
    %314 = vector.shape_cast %313 : vector<1x1x128xf32> to vector<1x128xf32>
    %315 = vector.broadcast %314 : vector<1x128xf32> to vector<32x128xf32>
    %316 = arith.addf %312, %315 : vector<32x128xf32>
    %cst_157 = arith.constant 0.000000e+00 : f32
    %317 = vector.broadcast %cst_157 : f32 to vector<32x128xf32>
    %318 = arith.maximumf %316, %317 : vector<32x128xf32>
    %c1_158 = arith.constant 1 : index
    %c0_159 = arith.constant 0 : index
    %c0_160 = arith.constant 0 : index
    %319 = vector.load %arg15[%c1_158, %c0_159, %c0_160] : memref<2x128x32xf32, #tpu.memory_space<vmem>>, vector<1x128x32xf32>
    %320 = vector.shape_cast %319 : vector<1x128x32xf32> to vector<128x32xf32>
    %cst_161 = arith.constant dense<0.000000e+00> : vector<32x32xf32>
    %321 = tpu.matmul %318, %320, %cst_161 {dimension_numbers = #tpu.dot_dimension_numbers<[1], [0], [0], [1], [0, 0, 1, 1], [], []>} : vector<32x128xf32>, vector<128x32xf32>, vector<32x32xf32> -> vector<32x32xf32>
    %c1_162 = arith.constant 1 : index
    %c0_163 = arith.constant 0 : index
    %c0_164 = arith.constant 0 : index
    %322 = vector.load %arg16[%c1_162, %c0_163, %c0_164] : memref<2x1x32xf32, #tpu.memory_space<vmem>>, vector<1x1x32xf32>
    %323 = vector.shape_cast %322 : vector<1x1x32xf32> to vector<1x32xf32>
    %324 = vector.broadcast %323 : vector<1x32xf32> to vector<32x32xf32>
    %325 = arith.addf %321, %324 : vector<32x32xf32>
    %326 = arith.addf %309, %325 : vector<32x32xf32>
    %c1_165 = arith.constant 1 : index
    %c0_166 = arith.constant 0 : index
    %c0_167 = arith.constant 0 : index
    %327 = vector.load %arg19[%c1_165, %c0_166, %c0_167] : memref<2x1x32xf32, #tpu.memory_space<vmem>>, vector<1x1x32xf32>
    %328 = vector.shape_cast %327 : vector<1x1x32xf32> to vector<1x32xf32>
    %c1_168 = arith.constant 1 : index
    %c0_169 = arith.constant 0 : index
    %c0_170 = arith.constant 0 : index
    %329 = vector.load %arg20[%c1_168, %c0_169, %c0_170] : memref<2x1x32xf32, #tpu.memory_space<vmem>>, vector<1x1x32xf32>
    %330 = vector.shape_cast %329 : vector<1x1x32xf32> to vector<1x32xf32>
    %cst_171 = arith.constant dense<0.000000e+00> : vector<32xf32>
    %331 = vector.multi_reduction <add>, %326, %cst_171 [1] : vector<32x32xf32> to vector<32xf32>
    %332 = vector.shape_cast %331 : vector<32xf32> to vector<32x1xf32>
    %cst_172 = arith.constant 3.200000e+01 : f32
    %333 = vector.broadcast %cst_172 : f32 to vector<32x1xf32>
    %334 = arith.divf %332, %333 : vector<32x1xf32>
    %335 = vector.broadcast %334 : vector<32x1xf32> to vector<32x32xf32>
    %336 = arith.subf %326, %335 : vector<32x32xf32>
    %337 = arith.mulf %336, %336 : vector<32x32xf32>
    %cst_173 = arith.constant dense<0.000000e+00> : vector<32xf32>
    %338 = vector.multi_reduction <add>, %337, %cst_173 [1] : vector<32x32xf32> to vector<32xf32>
    %339 = vector.shape_cast %338 : vector<32xf32> to vector<32x1xf32>
    %cst_174 = arith.constant 3.200000e+01 : f32
    %340 = vector.broadcast %cst_174 : f32 to vector<32x1xf32>
    %341 = arith.divf %339, %340 : vector<32x1xf32>
    %342 = vector.broadcast %334 : vector<32x1xf32> to vector<32x32xf32>
    %343 = arith.subf %326, %342 : vector<32x32xf32>
    %cst_175 = arith.constant 9.99999974E-6 : f32
    %344 = vector.broadcast %cst_175 : f32 to vector<32x1xf32>
    %345 = arith.addf %341, %344 : vector<32x1xf32>
    %346 = math.rsqrt %345 : vector<32x1xf32>
    %347 = vector.broadcast %346 : vector<32x1xf32> to vector<32x32xf32>
    %348 = arith.mulf %343, %347 : vector<32x32xf32>
    %349 = vector.broadcast %328 : vector<1x32xf32> to vector<32x32xf32>
    %350 = arith.mulf %348, %349 : vector<32x32xf32>
    %351 = vector.broadcast %330 : vector<1x32xf32> to vector<32x32xf32>
    %352 = arith.addf %350, %351 : vector<32x32xf32>
    %c0_176 = arith.constant 0 : index
    %c0_177 = arith.constant 0 : index
    %353 = vector.load %arg21[%c0_176, %c0_177] : memref<2x32xf32, #tpu.memory_space<vmem>>, vector<2x32xf32>
    %cst_178 = arith.constant dense<0.000000e+00> : vector<2x32xf32>
    %354 = tpu.matmul %353, %352, %cst_178 {dimension_numbers = #tpu.dot_dimension_numbers<[1], [0], [0], [1], [0, 0, 1, 1], [], []>} : vector<2x32xf32>, vector<32x32xf32>, vector<2x32xf32> -> vector<2x32xf32>
    %c0_179 = arith.constant 0 : index
    %c0_180 = arith.constant 0 : index
    %355 = vector.load %arg22[%c0_179, %c0_180] : memref<1x1xf32, #tpu.memory_space<vmem>>, vector<1x1xf32>
    %356 = vector.broadcast %355 : vector<1x1xf32> to vector<2x32xf32>
    %357 = arith.addf %354, %356 : vector<2x32xf32>
    %c0_181 = arith.constant 0 : index
    %c0_182 = arith.constant 0 : index
    %358 = vector.load %arg23[%c0_181, %c0_182] : memref<32x32xf32, #tpu.memory_space<vmem>>, vector<32x32xf32>
    %cst_183 = arith.constant dense<0.000000e+00> : vector<2x32xf32>
    %359 = tpu.matmul %357, %358, %cst_183 {dimension_numbers = #tpu.dot_dimension_numbers<[1], [0], [0], [1], [0, 0, 1, 1], [], []>} : vector<2x32xf32>, vector<32x32xf32>, vector<2x32xf32> -> vector<2x32xf32>
    %c0_184 = arith.constant 0 : index
    %c0_185 = arith.constant 0 : index
    %360 = vector.load %arg24[%c0_184, %c0_185] : memref<1x32xf32, #tpu.memory_space<vmem>>, vector<1x32xf32>
    %361 = vector.broadcast %360 : vector<1x32xf32> to vector<2x32xf32>
    %362 = arith.addf %359, %361 : vector<2x32xf32>
    %c0_186 = arith.constant 0 : index
    %c0_187 = arith.constant 0 : index
    %363 = vector.load %arg25[%c0_186, %c0_187] : memref<2x32xf32, #tpu.memory_space<vmem>>, vector<2x32xf32>
    tpu.vector_store %arg25[%c0_186, %c0_187], %362 {strides = array<i32>} : memref<2x32xf32, #tpu.memory_space<vmem>>, vector<2x32xf32>,
    return
  }
}

</mosaic_0001>

<llo_original>
// kernel: transformer_disperse_forward.1
$region0: #{transformer_disperse_forward.1}
  #allocation0 [shape = 'u32[]', space=smem, size = 0x4, offset = 0x4, fixed_abs, tag = 'smem constant byte address 0x4 - core index']
  #allocation1 [shape = 'u32[144,128]{1,0:T(1,128)}', space=vmem, size = 0x12000, scoped, tag = 'internal scratch']
  #allocation2 [shape = 'f32[1,1]{1,0:T(1,128)S(1)}', space=vmem, size = 0x200, scoped, tag = 'scoped memory for transformer_disperse_forward.1']
  %s0 = inlined_call_operand.vmem [shape: f32[32,32], index: 0, kind: input, shape index: {}]
  %s1 = inlined_call_operand.vmem [shape: f32[32,32], index: 1, kind: input, shape index: {}]
  %s2 = inlined_call_operand.hbm [shape: f32[32,32], index: 2, kind: input, shape index: {}]
  %s3 = inlined_call_operand.vmem [shape: f32[32,32], index: 3, kind: input, shape index: {}]
  %s4 = inlined_call_operand.hbm [shape: f32[1,32], index: 4, kind: input, shape index: {}]
  %s5 = inlined_call_operand.vmem [shape: f32[2,32,32], index: 5, kind: input, shape index: {}]
  %s6 = inlined_call_operand.vmem [shape: f32[2,32,32], index: 6, kind: input, shape index: {}]
  %s7 = inlined_call_operand.vmem [shape: f32[2,32,32], index: 7, kind: input, shape index: {}]
  %s8 = inlined_call_operand.vmem [shape: f32[2,1,32], index: 8, kind: input, shape index: {}]
  %s9 = inlined_call_operand.hbm [shape: f32[2,1,32], index: 9, kind: input, shape index: {}]
  %s10 = inlined_call_operand.hbm [shape: f32[2,1,32], index: 10, kind: input, shape index: {}]
  %s11 = inlined_call_operand.vmem [shape: f32[2,32,32], index: 11, kind: input, shape index: {}]
  %s12 = inlined_call_operand.hbm [shape: f32[2,1,32], index: 12, kind: input, shape index: {}]
  %s13 = inlined_call_operand.vmem [shape: f32[2,32,128], index: 13, kind: input, shape index: {}]
  %s14 = inlined_call_operand.hbm [shape: f32[2,1,128], index: 14, kind: input, shape index: {}]
  %s15 = inlined_call_operand.vmem [shape: f32[2,128,32], index: 15, kind: input, shape index: {}]
  %s16 = inlined_call_operand.hbm [shape: f32[2,1,32], index: 16, kind: input, shape index: {}]
  %s17 = inlined_call_operand.hbm [shape: f32[2,1,32], index: 17, kind: input, shape index: {}]
  %s18 = inlined_call_operand.hbm [shape: f32[2,1,32], index: 18, kind: input, shape index: {}]
  %s19 = inlined_call_operand.hbm [shape: f32[2,1,32], index: 19, kind: input, shape index: {}]
  %s20 = inlined_call_operand.hbm [shape: f32[2,1,32], index: 20, kind: input, shape index: {}]
  %s21 = inlined_call_operand.vmem [shape: f32[2,32], index: 21, kind: input, shape index: {}]
  %s22 = inlined_call_operand.<no memory space> [shape: f32[1,1], index: 22, kind: input, shape index: {}]
  %s23 = inlined_call_operand.hbm [shape: f32[32,32], index: 23, kind: input, shape index: {}]
  %s24 = inlined_call_operand.hbm [shape: f32[1,32], index: 24, kind: input, shape index: {}]
  %s25 = inlined_call_operand.vmem [shape: f32[2,32], index: 25, kind: output, shape index: {}]
  %s26 = sld [smem:[#allocation0]]
  $region162: #{transformer_disperse_forward.1} parent=0
    _
  %s28 = ssub.s32 1, %s26
  %s29 = scalar_select 0, %s28, %s26
  %v30 = vstv %s22
  %31 = vst [vmem:[#allocation2] sm:$0x1] %v30
  $region1: #{transformer_disperse_forward.1} parent=0
    #allocation3 [shape = 'u8[16384]{0}', space=vmem, size = 0x4000, scoped, tag = 'input window, operand 2, single buffered']
    #allocation4 [shape = 's32[1]{0}', space=sflag, size = 0x4, scoped, tag = 'scoped memory for transformer_disperse_forward.1']
    #allocation5 [shape = 'u8[512]{0}', space=vmem, size = 0x400, scoped, tag = 'input window, operand 4, single buffered']
    #allocation6 [shape = 's32[1]{0}', space=sflag, size = 0x4, scoped, tag = 'scoped memory for transformer_disperse_forward.1']
    #allocation7 [shape = 'u8[1024]{0}', space=vmem, size = 0x400, scoped, tag = 'input window, operand 9, single buffered']
    #allocation8 [shape = 'u8[1024]{0}', space=vmem, size = 0x400, scoped, tag = 'input window, operand 10, single buffered']
    #allocation9 [shape = 's32[1]{0}', space=sflag, size = 0x4, scoped, tag = 'scoped memory for transformer_disperse_forward.1']
    #allocation10 [shape = 'u8[1024]{0}', space=vmem, size = 0x400, scoped, tag = 'input window, operand 12, single buffered']
    #allocation11 [shape = 'u8[1024]{0}', space=vmem, size = 0x400, scoped, tag = 'input window, operand 14, single buffered']
    #allocation12 [shape = 's32[1]{0}', space=sflag, size = 0x4, scoped, tag = 'scoped memory for transformer_disperse_forward.1']
    #allocation13 [shape = 'u8[1024]{0}', space=vmem, size = 0x400, scoped, tag = 'input window, operand 16, single buffered']
    #allocation14 [shape = 'u8[1024]{0}', space=vmem, size = 0x400, scoped, tag = 'input window, operand 17, single buffered']
    #allocation15 [shape = 's32[1]{0}', space=sflag, size = 0x4, scoped, tag = 'scoped memory for transformer_disperse_forward.1']
    #allocation16 [shape = 'u8[1024]{0}', space=vmem, size = 0x400, scoped, tag = 'input window, operand 18, single buffered']
    #allocation17 [shape = 'u8[1024]{0}', space=vmem, size = 0x400, scoped, tag = 'input window, operand 19, single buffered']
    #allocation18 [shape = 's32[1]{0}', space=sflag, size = 0x4, scoped, tag = 'scoped memory for transformer_disperse_forward.1']
    #allocation19 [shape = 'u8[1024]{0}', space=vmem, size = 0x400, scoped, tag = 'input window, operand 20, single buffered']
    #allocation20 [shape = 'u8[16384]{0}', space=vmem, size = 0x4000, scoped, tag = 'input window, operand 23, single buffered']
    #allocation21 [shape = 's32[1]{0}', space=sflag, size = 0x4, scoped, tag = 'scoped memory for transformer_disperse_forward.1']
    #allocation22 [shape = 'u8[512]{0}', space=vmem, size = 0x400, scoped, tag = 'input window, operand 24, single buffered']
    %32 = vsyncpa [#allocation4], 0
    %33 = vsyncpa [#allocation6], 0
    %34 = vsyncpa [#allocation9], 0
    %35 = vsyncpa [#allocation12], 0
    %36 = vsyncpa [#allocation15], 0
    %37 = vsyncpa [#allocation18], 0
    %38 = vsyncpa [#allocation21], 0
    // Predicated region
    $region2: #{transformer_disperse_forward.1} parent=1 // pred_check
      _
    $region3: #{transformer_disperse_forward.1} parent=1 // pred_check_branch
      %40 = sbr.rel (0) target = $region5
    $region4: #{transformer_disperse_forward.1} parent=1 // pred_region
      _
    $region5: #{transformer_disperse_forward.1} parent=1 // pred_fallthru
      _
    // Predicated region
    $region6: #{transformer_disperse_forward.1} parent=1 // pred_check
      _
    $region7: #{transformer_disperse_forward.1} parent=1 // pred_check_branch
      %42 = sbr.rel (0) target = $region9
    $region8: #{transformer_disperse_forward.1} parent=1 // pred_region
      _
    $region9: #{transformer_disperse_forward.1} parent=1 // pred_fallthru
      _
    // Predicated region
    $region10: #{transformer_disperse_forward.1} parent=1 // pred_check
      _
    $region11: #{transformer_disperse_forward.1} parent=1 // pred_check_branch
      %44 = sbr.rel (0) target = $region13
    $region12: #{transformer_disperse_forward.1} parent=1 // pred_region
      %s46 = ssub.s32 512, 512
      %47 = vsyncadd [#allocation4], %s46
      %s48 = sshll.u32 [#allocation3], 4
      %s49 = int_to_ptr.vmem [resolvable:$true] %s48
      %54 = dma.hbm_to_vmem [thread:$0]  %s2, 512, %s49, [#allocation4], 128, 128, 8
    $region13: #{transformer_disperse_forward.1} parent=1 // pred_fallthru
      _
    // Predicated region
    $region14: #{transformer_disperse_forward.1} parent=1 // pred_check
      _
    $region15: #{transformer_disperse_forward.1} parent=1 // pred_check_branch
      %56 = sbr.rel (0) target = $region17
    $region16: #{transformer_disperse_forward.1} parent=1 // pred_region
      _
    $region17: #{transformer_disperse_forward.1} parent=1 // pred_fallthru
      _
    // Predicated region
    $region18: #{transformer_disperse_forward.1} parent=1 // pred_check
      _
    $region19: #{transformer_disperse_forward.1} parent=1 // pred_check_branch
      %58 = sbr.rel (0) target = $region21
    $region20: #{transformer_disperse_forward.1} parent=1 // pred_region
      %s60 = ssub.s32 16, 16
      %61 = vsyncadd [#allocation6], %s60
      %s63 = sshll.u32 [#allocation5], 4
      %s64 = int_to_ptr.vmem [resolvable:$true] %s63
      %66 = dma.hbm_to_vmem [thread:$0]  %s4, 16, %s64, [#allocation6]
    $region21: #{transformer_disperse_forward.1} parent=1 // pred_fallthru
      _
    // Predicated region
    $region22: #{transformer_disperse_forward.1} parent=1 // pred_check
      _
    $region23: #{transformer_disperse_forward.1} parent=1 // pred_check_branch
      %68 = sbr.rel (0) target = $region25
    $region24: #{transformer_disperse_forward.1} parent=1 // pred_region
      _
    $region25: #{transformer_disperse_forward.1} parent=1 // pred_fallthru
      _
    // Predicated region
    $region26: #{transformer_disperse_forward.1} parent=1 // pred_check
      _
    $region27: #{transformer_disperse_forward.1} parent=1 // pred_check_branch
      %70 = sbr.rel (0) target = $region29
    $region28: #{transformer_disperse_forward.1} parent=1 // pred_region
      _
    $region29: #{transformer_disperse_forward.1} parent=1 // pred_fallthru
      _
    // Predicated region
    $region30: #{transformer_disperse_forward.1} parent=1 // pred_check
      _
    $region31: #{transformer_disperse_forward.1} parent=1 // pred_check_branch
      %72 = sbr.rel (0) target = $region33
    $region32: #{transformer_disperse_forward.1} parent=1 // pred_region
      _
    $region33: #{transformer_disperse_forward.1} parent=1 // pred_fallthru
      _
    // Predicated region
    $region34: #{transformer_disperse_forward.1} parent=1 // pred_check
      _
    $region35: #{transformer_disperse_forward.1} parent=1 // pred_check_branch
      %74 = sbr.rel (0) target = $region37
    $region36: #{transformer_disperse_forward.1} parent=1 // pred_region
      _
    $region37: #{transformer_disperse_forward.1} parent=1 // pred_fallthru
      _
    // Predicated region
    $region38: #{transformer_disperse_forward.1} parent=1 // pred_check
      _
    $region39: #{transformer_disperse_forward.1} parent=1 // pred_check_branch
      %76 = sbr.rel (0) target = $region41
    $region40: #{transformer_disperse_forward.1} parent=1 // pred_region
      %s78 = ssub.s32 32, 32
      %79 = vsyncadd [#allocation6], %s78
      %s80 = sshll.u32 [#allocation7], 4
      %s81 = int_to_ptr.vmem [resolvable:$true] %s80
      %86 = dma.hbm_to_vmem [thread:$0]  %s9, 32, %s81, [#allocation6], 16, 16, 1
    $region41: #{transformer_disperse_forward.1} parent=1 // pred_fallthru
      _
    // Predicated region
    $region42: #{transformer_disperse_forward.1} parent=1 // pred_check
      _
    $region43: #{transformer_disperse_forward.1} parent=1 // pred_check_branch
      %88 = sbr.rel (0) target = $region45
    $region44: #{transformer_disperse_forward.1} parent=1 // pred_region
      %s90 = ssub.s32 32, 32
      %91 = vsyncadd [#allocation9], %s90
      %s92 = sshll.u32 [#allocation8], 4
      %s93 = int_to_ptr.vmem [resolvable:$true] %s92
      %98 = dma.hbm_to_vmem [thread:$0]  %s10, 32, %s93, [#allocation9], 16, 16, 1
    $region45: #{transformer_disperse_forward.1} parent=1 // pred_fallthru
      _
    // Predicated region
    $region46: #{transformer_disperse_forward.1} parent=1 // pred_check
      _
    $region47: #{transformer_disperse_forward.1} parent=1 // pred_check_branch
      %100 = sbr.rel (0) target = $region49
    $region48: #{transformer_disperse_forward.1} parent=1 // pred_region
      _
    $region49: #{transformer_disperse_forward.1} parent=1 // pred_fallthru
      _
    // Predicated region
    $region50: #{transformer_disperse_forward.1} parent=1 // pred_check
      _
    $region51: #{transformer_disperse_forward.1} parent=1 // pred_check_branch
      %102 = sbr.rel (0) target = $region53
    $region52: #{transformer_disperse_forward.1} parent=1 // pred_region
      %s104 = ssub.s32 32, 32
      %105 = vsyncadd [#allocation9], %s104
      %s106 = sshll.u32 [#allocation10], 4
      %s107 = int_to_ptr.vmem [resolvable:$true] %s106
      %112 = dma.hbm_to_vmem [thread:$0]  %s12, 32, %s107, [#allocation9], 16, 16, 1
    $region53: #{transformer_disperse_forward.1} parent=1 // pred_fallthru
      _
    // Predicated region
    $region54: #{transformer_disperse_forward.1} parent=1 // pred_check
      _
    $region55: #{transformer_disperse_forward.1} parent=1 // pred_check_branch
      %114 = sbr.rel (0) target = $region57
    $region56: #{transformer_disperse_forward.1} parent=1 // pred_region
      _
    $region57: #{transformer_disperse_forward.1} parent=1 // pred_fallthru
      _
    // Predicated region
    $region58: #{transformer_disperse_forward.1} parent=1 // pred_check
      _
    $region59: #{transformer_disperse_forward.1} parent=1 // pred_check_branch
      %116 = sbr.rel (0) target = $region61
    $region60: #{transformer_disperse_forward.1} parent=1 // pred_region
      %s118 = ssub.s32 32, 32
      %119 = vsyncadd [#allocation12], %s118
      %s120 = sshll.u32 [#allocation11], 4
      %s121 = int_to_ptr.vmem [resolvable:$true] %s120
      %126 = dma.hbm_to_vmem [thread:$0]  %s14, 32, %s121, [#allocation12], 16, 16, 1
    $region61: #{transformer_disperse_forward.1} parent=1 // pred_fallthru
      _
    // Predicated region
    $region62: #{transformer_disperse_forward.1} parent=1 // pred_check
      _
    $region63: #{transformer_disperse_forward.1} parent=1 // pred_check_branch
      %128 = sbr.rel (0) target = $region65
    $region64: #{transformer_disperse_forward.1} parent=1 // pred_region
      _
    $region65: #{transformer_disperse_forward.1} parent=1 // pred_fallthru
      _
    // Predicated region
    $region66: #{transformer_disperse_forward.1} parent=1 // pred_check
      _
    $region67: #{transformer_disperse_forward.1} parent=1 // pred_check_branch
      %130 = sbr.rel (0) target = $region69
    $region68: #{transformer_disperse_forward.1} parent=1 // pred_region
      %s132 = ssub.s32 32, 32
      %133 = vsyncadd [#allocation12], %s132
      %s134 = sshll.u32 [#allocation13], 4
      %s135 = int_to_ptr.vmem [resolvable:$true] %s134
      %140 = dma.hbm_to_vmem [thread:$0]  %s16, 32, %s135, [#allocation12], 16, 16, 1
    $region69: #{transformer_disperse_forward.1} parent=1 // pred_fallthru
      _
    // Predicated region
    $region70: #{transformer_disperse_forward.1} parent=1 // pred_check
      _
    $region71: #{transformer_disperse_forward.1} parent=1 // pred_check_branch
      %142 = sbr.rel (0) target = $region73
    $region72: #{transformer_disperse_forward.1} parent=1 // pred_region
      %s144 = ssub.s32 32, 32
      %145 = vsyncadd [#allocation15], %s144
      %s146 = sshll.u32 [#allocation14], 4
      %s147 = int_to_ptr.vmem [resolvable:$true] %s146
      %152 = dma.hbm_to_vmem [thread:$0]  %s17, 32, %s147, [#allocation15], 16, 16, 1
    $region73: #{transformer_disperse_forward.1} parent=1 // pred_fallthru
      _
    // Predicated region
    $region74: #{transformer_disperse_forward.1} parent=1 // pred_check
      _
    $region75: #{transformer_disperse_forward.1} parent=1 // pred_check_branch
      %154 = sbr.rel (0) target = $region77
    $region76: #{transformer_disperse_forward.1} parent=1 // pred_region
      %s156 = ssub.s32 32, 32
      %157 = vsyncadd [#allocation15], %s156
      %s158 = sshll.u32 [#allocation16], 4
      %s159 = int_to_ptr.vmem [resolvable:$true] %s158
      %164 = dma.hbm_to_vmem [thread:$0]  %s18, 32, %s159, [#allocation15], 16, 16, 1
    $region77: #{transformer_disperse_forward.1} parent=1 // pred_fallthru
      _
    // Predicated region
    $region78: #{transformer_disperse_forward.1} parent=1 // pred_check
      _
    $region79: #{transformer_disperse_forward.1} parent=1 // pred_check_branch
      %166 = sbr.rel (0) target = $region81
    $region80: #{transformer_disperse_forward.1} parent=1 // pred_region
      %s168 = ssub.s32 32, 32
      %169 = vsyncadd [#allocation18], %s168
      %s170 = sshll.u32 [#allocation17], 4
      %s171 = int_to_ptr.vmem [resolvable:$true] %s170
      %176 = dma.hbm_to_vmem [thread:$0]  %s19, 32, %s171, [#allocation18], 16, 16, 1
    $region81: #{transformer_disperse_forward.1} parent=1 // pred_fallthru
      _
    // Predicated region
    $region82: #{transformer_disperse_forward.1} parent=1 // pred_check
      _
    $region83: #{transformer_disperse_forward.1} parent=1 // pred_check_branch
      %178 = sbr.rel (0) target = $region85
    $region84: #{transformer_disperse_forward.1} parent=1 // pred_region
      %s180 = ssub.s32 32, 32
      %181 = vsyncadd [#allocation18], %s180
      %s182 = sshll.u32 [#allocation19], 4
      %s183 = int_to_ptr.vmem [resolvable:$true] %s182
      %188 = dma.hbm_to_vmem [thread:$0]  %s20, 32, %s183, [#allocation18], 16, 16, 1
    $region85: #{transformer_disperse_forward.1} parent=1 // pred_fallthru
      _
    // Predicated region
    $region86: #{transformer_disperse_forward.1} parent=1 // pred_check
      _
    $region87: #{transformer_disperse_forward.1} parent=1 // pred_check_branch
      %190 = sbr.rel (0) target = $region89
    $region88: #{transformer_disperse_forward.1} parent=1 // pred_region
      _
    $region89: #{transformer_disperse_forward.1} parent=1 // pred_fallthru
      _
    // Predicated region
    $region90: #{transformer_disperse_forward.1} parent=1 // pred_check
      _
    $region91: #{transformer_disperse_forward.1} parent=1 // pred_check_branch
      %192 = sbr.rel (0) target = $region93
    $region92: #{transformer_disperse_forward.1} parent=1 // pred_region
      _
    $region93: #{transformer_disperse_forward.1} parent=1 // pred_fallthru
      _
    // Predicated region
    $region94: #{transformer_disperse_forward.1} parent=1 // pred_check
      _
    $region95: #{transformer_disperse_forward.1} parent=1 // pred_check_branch
      %194 = sbr.rel (0) target = $region97
    $region96: #{transformer_disperse_forward.1} parent=1 // pred_region
      %s196 = ssub.s32 512, 512
      %197 = vsyncadd [#allocation21], %s196
      %s198 = sshll.u32 [#allocation20], 4
      %s199 = int_to_ptr.vmem [resolvable:$true] %s198
      %204 = dma.hbm_to_vmem [thread:$0]  %s23, 512, %s199, [#allocation21], 128, 128, 8
    $region97: #{transformer_disperse_forward.1} parent=1 // pred_fallthru
      _
    // Predicated region
    $region98: #{transformer_disperse_forward.1} parent=1 // pred_check
      _
    $region99: #{transformer_disperse_forward.1} parent=1 // pred_check_branch
      %206 = sbr.rel (0) target = $region101
    $region100: #{transformer_disperse_forward.1} parent=1 // pred_region
      %s208 = ssub.s32 16, 16
      %209 = vsyncadd [#allocation21], %s208
      %s211 = sshll.u32 [#allocation22], 4
      %s212 = int_to_ptr.vmem [resolvable:$true] %s211
      %214 = dma.hbm_to_vmem [thread:$0]  %s24, 16, %s212, [#allocation21]
    $region101: #{transformer_disperse_forward.1} parent=1 // pred_fallthru
      _
    // Predicated region
    $region102: #{transformer_disperse_forward.1} parent=1 // pred_check
      _
    $region103: #{transformer_disperse_forward.1} parent=1 // pred_check_branch
      %216 = sbr.rel (0) target = $region105
    $region104: #{transformer_disperse_forward.1} parent=1 // pred_region
      %217 = dma.done [#allocation4], 512
    $region105: #{transformer_disperse_forward.1} parent=1 // pred_fallthru
      _
    // Predicated region
    $region106: #{transformer_disperse_forward.1} parent=1 // pred_check
      _
    $region107: #{transformer_disperse_forward.1} parent=1 // pred_check_branch
      %219 = sbr.rel (0) target = $region109
    $region108: #{transformer_disperse_forward.1} parent=1 // pred_region
      %220 = dma.done [#allocation6], 16
    $region109: #{transformer_disperse_forward.1} parent=1 // pred_fallthru
      _
    // Predicated region
    $region110: #{transformer_disperse_forward.1} parent=1 // pred_check
      _
    $region111: #{transformer_disperse_forward.1} parent=1 // pred_check_branch
      %222 = sbr.rel (0) target = $region113
    $region112: #{transformer_disperse_forward.1} parent=1 // pred_region
      %223 = dma.done [#allocation6], 32
    $region113: #{transformer_disperse_forward.1} parent=1 // pred_fallthru
      _
    // Predicated region
    $region114: #{transformer_disperse_forward.1} parent=1 // pred_check
      _
    $region115: #{transformer_disperse_forward.1} parent=1 // pred_check_branch
      %225 = sbr.rel (0) target = $region117
    $region116: #{transformer_disperse_forward.1} parent=1 // pred_region
      %226 = dma.done [#allocation9], 32
    $region117: #{transformer_disperse_forward.1} parent=1 // pred_fallthru
      _
    // Predicated region
    $region118: #{transformer_disperse_forward.1} parent=1 // pred_check
      _
    $region119: #{transformer_disperse_forward.1} parent=1 // pred_check_branch
      %228 = sbr.rel (0) target = $region121
    $region120: #{transformer_disperse_forward.1} parent=1 // pred_region
      %229 = dma.done [#allocation9], 32
    $region121: #{transformer_disperse_forward.1} parent=1 // pred_fallthru
      _
    // Predicated region
    $region122: #{transformer_disperse_forward.1} parent=1 // pred_check
      _
    $region123: #{transformer_disperse_forward.1} parent=1 // pred_check_branch
      %231 = sbr.rel (0) target = $region125
    $region124: #{transformer_disperse_forward.1} parent=1 // pred_region
      %232 = dma.done [#allocation12], 32
    $region125: #{transformer_disperse_forward.1} parent=1 // pred_fallthru
      _
    // Predicated region
    $region126: #{transformer_disperse_forward.1} parent=1 // pred_check
      _
    $region127: #{transformer_disperse_forward.1} parent=1 // pred_check_branch
      %234 = sbr.rel (0) target = $region129
    $region128: #{transformer_disperse_forward.1} parent=1 // pred_region
      %235 = dma.done [#allocation12], 32
    $region129: #{transformer_disperse_forward.1} parent=1 // pred_fallthru
      _
    // Predicated region
    $region130: #{transformer_disperse_forward.1} parent=1 // pred_check
      _
    $region131: #{transformer_disperse_forward.1} parent=1 // pred_check_branch
      %237 = sbr.rel (0) target = $region133
    $region132: #{transformer_disperse_forward.1} parent=1 // pred_region
      %238 = dma.done [#allocation15], 32
    $region133: #{transformer_disperse_forward.1} parent=1 // pred_fallthru
      _
    // Predicated region
    $region134: #{transformer_disperse_forward.1} parent=1 // pred_check
      _
    $region135: #{transformer_disperse_forward.1} parent=1 // pred_check_branch
      %240 = sbr.rel (0) target = $region137
    $region136: #{transformer_disperse_forward.1} parent=1 // pred_region
      %241 = dma.done [#allocation15], 32
    $region137: #{transformer_disperse_forward.1} parent=1 // pred_fallthru
      _
    // Predicated region
    $region138: #{transformer_disperse_forward.1} parent=1 // pred_check
      _
    $region139: #{transformer_disperse_forward.1} parent=1 // pred_check_branch
      %243 = sbr.rel (0) target = $region141
    $region140: #{transformer_disperse_forward.1} parent=1 // pred_region
      %244 = dma.done [#allocation18], 32
    $region141: #{transformer_disperse_forward.1} parent=1 // pred_fallthru
      _
    // Predicated region
    $region142: #{transformer_disperse_forward.1} parent=1 // pred_check
      _
    $region143: #{transformer_disperse_forward.1} parent=1 // pred_check_branch
      %246 = sbr.rel (0) target = $region145
    $region144: #{transformer_disperse_forward.1} parent=1 // pred_region
      %247 = dma.done [#allocation18], 32
    $region145: #{transformer_disperse_forward.1} parent=1 // pred_fallthru
      _
    // Predicated region
    $region146: #{transformer_disperse_forward.1} parent=1 // pred_check
      _
    $region147: #{transformer_disperse_forward.1} parent=1 // pred_check_branch
      %249 = sbr.rel (0) target = $region149
    $region148: #{transformer_disperse_forward.1} parent=1 // pred_region
      %250 = dma.done [#allocation21], 512
    $region149: #{transformer_disperse_forward.1} parent=1 // pred_fallthru
      _
    // Predicated region
    $region150: #{transformer_disperse_forward.1} parent=1 // pred_check
      _
    $region151: #{transformer_disperse_forward.1} parent=1 // pred_check_branch
      %252 = sbr.rel (0) target = $region153
    $region152: #{transformer_disperse_forward.1} parent=1 // pred_region
      %253 = dma.done [#allocation21], 16
    $region153: #{transformer_disperse_forward.1} parent=1 // pred_fallthru
      _
    %v254 = vld [vmem:[#allocation3] sm:$0xff]
    %v255 = vld [vmem:[#allocation3 + $0x8] sm:$0xff]
    %v256 = vld [vmem:[#allocation3 + $0x10] sm:$0xff]
    %v257 = vld [vmem:[#allocation3 + $0x18] sm:$0xff]
    %v258 = vld [vmem:[%s0] sm:$0xff]
    %v259 = vld [vmem:[%s0 + $0x8] sm:$0xff]
    %v260 = vld [vmem:[%s0 + $0x10] sm:$0xff]
    %v261 = vld [vmem:[%s0 + $0x18] sm:$0xff]
    %v262 = vld [vmem:[%s1] sm:$0xff]
    %v263 = vld [vmem:[%s1 + $0x8] sm:$0xff]
    %v264 = vld [vmem:[%s1 + $0x10] sm:$0xff]
    %v265 = vld [vmem:[%s1 + $0x18] sm:$0xff]
    %v266 = vadd.f32 %v258, %v262
    %v267 = vadd.f32 %v259, %v263
    %v268 = vadd.f32 %v260, %v264
    %v269 = vadd.f32 %v261, %v265
    %v270 = vld [vmem:[%s3] sm:$0xff]
    %v271 = vld [vmem:[%s3 + $0x8] sm:$0xff]
    %v272 = vld [vmem:[%s3 + $0x10] sm:$0xff]
    %v273 = vld [vmem:[%s3 + $0x18] sm:$0xff]
    %v274 = vld [vmem:[#allocation5] sm:$0x1]
    %v276 = vlaneseq
    %v277 = vshrl.u32 %v276, 7
    %v278 = vsub.s32 0, %v277
    %v279 = vrot.slane %v274, %v278
    %vm281 = vcmask 261120
    %v283 = vsel %vm281, %v266, 0
    %v286 = vsel %vm281, %v267, 0
    %v289 = vsel %vm281, %v268, 0
    %v292 = vsel %vm281, %v269, 0
    %294 = vmatprep.subr.mxu0 0.0
    %295 = vmatpush1.msra.mxu0 %v270
    %296 = vmatprep.subr.mxu0 0.0
    %297 = vmatpush1.msra.mxu0 %v271
    %298 = vmatprep.subr.mxu0 0.0
    %299 = vmatpush1.msra.mxu0 %v272
    %300 = vmatprep.subr.mxu0 0.0
    %301 = vmatpush1.msra.mxu0 %v273
    %302 = vmatprep.subr.mxu0 0.0
    %303 = vmatpush1.msra.mxu0 0.0
    %304 = vmatprep.subr.mxu0 0.0
    %305 = vmatpush1.msra.mxu0 0.0
    %306 = vmatprep.subr.mxu0 0.0
    %307 = vmatpush1.msra.mxu0 0.0
    %308 = vmatprep.subr.mxu0 0.0
    %309 = vmatpush1.msra.mxu0 0.0
    %310 = vmatprep.subr.mxu0 0.0
    %311 = vmatpush1.msra.mxu0 0.0
    %312 = vmatprep.subr.mxu0 0.0
    %313 = vmatpush1.msra.mxu0 0.0
    %314 = vmatprep.subr.mxu0 0.0
    %315 = vmatpush1.msra.mxu0 0.0
    %316 = vmatprep.subr.mxu0 0.0
    %317 = vmatpush1.msra.mxu0 0.0
    %318 = vmatprep.subr.mxu0 0.0
    %319 = vmatpush1.msra.mxu0 0.0
    %320 = vmatprep.subr.mxu0 0.0
    %321 = vmatpush1.msra.mxu0 0.0
    %322 = vmatprep.subr.mxu0 0.0
    %323 = vmatpush1.msra.mxu0 0.0
    %324 = vmatprep.subr.mxu0 0.0
    %325 = vmatpush1.msra.mxu0 0.0
    %326 = vmatprep.subr.mxu0 0.0
    %327 = vmatpush1.msra.mxu0 0.0
    %328 = vmatprep.subr.mxu0 0.0
    %329 = vmatpush1.msra.mxu0 0.0
    %330 = vmatprep.subr.mxu0 0.0
    %331 = vmatpush1.msra.mxu0 0.0
    %332 = vmatprep.subr.mxu0 0.0
    %333 = vmatpush1.msra.mxu0 0.0
    %334 = vmatprep.subr.mxu0 0.0
    %335 = vmatpush1.msra.mxu0 0.0
    %336 = vmatprep.subr.mxu0 0.0
    %337 = vmatpush1.msra.mxu0 0.0
    %338 = vmatprep.subr.mxu0 0.0
    %339 = vmatpush1.msra.mxu0 0.0
    %340 = vmatprep.subr.mxu0 0.0
    %341 = vmatpush1.msra.mxu0 0.0
    %342 = vmatprep.subr.mxu0 0.0
    %343 = vmatpush1.msra.mxu0 0.0
    %344 = vmatprep.subr.mxu0 0.0
    %345 = vmatpush1.msra.mxu0 0.0
    %346 = vmatprep.subr.mxu0 0.0
    %347 = vmatpush1.msra.mxu0 0.0
    %348 = vmatprep.subr.mxu0 0.0
    %349 = vmatpush1.msra.mxu0 0.0
    %350 = vmatprep.subr.mxu0 0.0
    %351 = vmatpush1.msra.mxu0 0.0
    %352 = vmatprep.subr.mxu0 0.0
    %353 = vmatpush1.msra.mxu0 0.0
    %354 = vmatprep.subr.mxu0 0.0
    %355 = vmatpush1.msra.mxu0 0.0
    %356 = vmatprep.subr.mxu0 0.0
    %357 = vmatpush1.msra.mxu0 0.0
    %358 = vmatprep.mubr.f32.mxu0 0.0
    %359 = vmatmul.mubr.f32.gmra.mrb[0].mxu0 %v283
    %v360 = vpop.f32.mrb[0].mxu0
    %v361 = vadd.f32 %v279, %v360
    %v362 = vpop.f32.mrb[0].mxu0
    %363 = vmatprep.mubr.f32.mxu0 0.0
    %364 = vmatmul.mubr.f32.gmra.mrb[0].mxu0 %v286
    %v365 = vpop.f32.mrb[0].mxu0
    %v366 = vadd.f32 %v279, %v365
    %v367 = vpop.f32.mrb[0].mxu0
    %368 = vmatprep.mubr.f32.mxu0 0.0
    %369 = vmatmul.mubr.f32.gmra.mrb[0].mxu0 %v289
    %v370 = vpop.f32.mrb[0].mxu0
    %v371 = vadd.f32 %v279, %v370
    %v372 = vpop.f32.mrb[0].mxu0
    %373 = vmatprep.mubr.f32.mxu0 0.0
    %374 = vmatmul.mubr.f32.gmra.mrb[0].mxu0 %v292
    %v375 = vpop.f32.mrb[0].mxu0
    %v376 = vadd.f32 %v279, %v375
    %v377 = vpop.f32.mrb[0].mxu0
    %378 = vdwg.mxu0
    %v379 = vld [vmem:[%s5] sm:$0xff]
    %v380 = vld [vmem:[%s5 + $0x8] sm:$0xff]
    %v381 = vld [vmem:[%s5 + $0x10] sm:$0xff]
    %v382 = vld [vmem:[%s5 + $0x18] sm:$0xff]
    %v383 = vld [vmem:[%s6] sm:$0xff]
    %v384 = vld [vmem:[%s6 + $0x8] sm:$0xff]
    %v385 = vld [vmem:[%s6 + $0x10] sm:$0xff]
    %v386 = vld [vmem:[%s6 + $0x18] sm:$0xff]
    %v387 = vld [vmem:[%s7] sm:$0xff]
    %v388 = vld [vmem:[%s7 + $0x8] sm:$0xff]
    %v389 = vld [vmem:[%s7 + $0x10] sm:$0xff]
    %v390 = vld [vmem:[%s7 + $0x18] sm:$0xff]
    %v391 = vld [vmem:[%s11] sm:$0xff]
    %v392 = vld [vmem:[%s11 + $0x8] sm:$0xff]
    %v393 = vld [vmem:[%s11 + $0x10] sm:$0xff]
    %v394 = vld [vmem:[%s11 + $0x18] sm:$0xff]
    %v395 = vld [vmem:[%s8] sm:$0x1]
    %v397 = vlaneseq
    %v398 = vshrl.u32 %v397, 7
    %v399 = vsub.s32 0, %v398
    %v400 = vrot.slane %v395, %v399
    %v403 = vsel %vm281, %v361, 0
    %v406 = vsel %vm281, %v366, 0
    %v409 = vsel %vm281, %v371, 0
    %v412 = vsel %vm281, %v376, 0
    %414 = vmatprep.subr.mxu0 0.0
    %415 = vmatpush1.msra.mxu0 %v379
    %416 = vmatprep.subr.mxu0 0.0
    %417 = vmatpush1.msra.mxu0 %v380
    %418 = vmatprep.subr.mxu0 0.0
    %419 = vmatpush1.msra.mxu0 %v381
    %420 = vmatprep.subr.mxu0 0.0
    %421 = vmatpush1.msra.mxu0 %v382
    %422 = vmatprep.subr.mxu0 0.0
    %423 = vmatpush1.msra.mxu0 0.0
    %424 = vmatprep.subr.mxu0 0.0
    %425 = vmatpush1.msra.mxu0 0.0
    %426 = vmatprep.subr.mxu0 0.0
    %427 = vmatpush1.msra.mxu0 0.0
    %428 = vmatprep.subr.mxu0 0.0
    %429 = vmatpush1.msra.mxu0 0.0
    %430 = vmatprep.subr.mxu0 0.0
    %431 = vmatpush1.msra.mxu0 0.0
    %432 = vmatprep.subr.mxu0 0.0
    %433 = vmatpush1.msra.mxu0 0.0
    %434 = vmatprep.subr.mxu0 0.0
    %435 = vmatpush1.msra.mxu0 0.0
    %436 = vmatprep.subr.mxu0 0.0
    %437 = vmatpush1.msra.mxu0 0.0
    %438 = vmatprep.subr.mxu0 0.0
    %439 = vmatpush1.msra.mxu0 0.0
    %440 = vmatprep.subr.mxu0 0.0
    %441 = vmatpush1.msra.mxu0 0.0
    %442 = vmatprep.subr.mxu0 0.0
    %443 = vmatpush1.msra.mxu0 0.0
    %444 = vmatprep.subr.mxu0 0.0
    %445 = vmatpush1.msra.mxu0 0.0
    %446 = vmatprep.subr.mxu0 0.0
    %447 = vmatpush1.msra.mxu0 0.0
    %448 = vmatprep.subr.mxu0 0.0
    %449 = vmatpush1.msra.mxu0 0.0
    %450 = vmatprep.subr.mxu0 0.0
    %451 = vmatpush1.msra.mxu0 0.0
    %452 = vmatprep.subr.mxu0 0.0
    %453 = vmatpush1.msra.mxu0 0.0
    %454 = vmatprep.subr.mxu0 0.0
    %455 = vmatpush1.msra.mxu0 0.0
    %456 = vmatprep.subr.mxu0 0.0
    %457 = vmatpush1.msra.mxu0 0.0
    %458 = vmatprep.subr.mxu0 0.0
    %459 = vmatpush1.msra.mxu0 0.0
    %460 = vmatprep.subr.mxu0 0.0
    %461 = vmatpush1.msra.mxu0 0.0
    %462 = vmatprep.subr.mxu0 0.0
    %463 = vmatpush1.msra.mxu0 0.0
    %464 = vmatprep.subr.mxu0 0.0
    %465 = vmatpush1.msra.mxu0 0.0
    %466 = vmatprep.subr.mxu0 0.0
    %467 = vmatpush1.msra.mxu0 0.0
    %468 = vmatprep.subr.mxu0 0.0
    %469 = vmatpush1.msra.mxu0 0.0
    %470 = vmatprep.subr.mxu0 0.0
    %471 = vmatpush1.msra.mxu0 0.0
    %472 = vmatprep.subr.mxu0 0.0
    %473 = vmatpush1.msra.mxu0 0.0
    %474 = vmatprep.subr.mxu0 0.0
    %475 = vmatpush1.msra.mxu0 0.0
    %476 = vmatprep.subr.mxu0 0.0
    %477 = vmatpush1.msra.mxu0 0.0
    %478 = vmatprep.mubr.f32.mxu0 0.0
    %479 = vmatmul.mubr.f32.gmra.mrb[0].mxu0 %v403
    %v480 = vpop.f32.mrb[0].mxu0
    %v481 = vadd.f32 %v400, %v480
    %v482 = vpop.f32.mrb[0].mxu0
    %483 = vmatprep.mubr.f32.mxu0 0.0
    %484 = vmatmul.mubr.f32.gmra.mrb[0].mxu0 %v406
    %v485 = vpop.f32.mrb[0].mxu0
    %v486 = vadd.f32 %v400, %v485
    %v487 = vpop.f32.mrb[0].mxu0
    %488 = vmatprep.mubr.f32.mxu0 0.0
    %489 = vmatmul.mubr.f32.gmra.mrb[0].mxu0 %v409
    %v490 = vpop.f32.mrb[0].mxu0
    %v491 = vadd.f32 %v400, %v490
    %v492 = vpop.f32.mrb[0].mxu0
    %493 = vmatprep.mubr.f32.mxu0 0.0
    %494 = vmatmul.mubr.f32.gmra.mrb[0].mxu0 %v412
    %v495 = vpop.f32.mrb[0].mxu0
    %v496 = vadd.f32 %v400, %v495
    %v497 = vpop.f32.mrb[0].mxu0
    %498 = vdwg.mxu0
    %v499 = vld [vmem:[#allocation7] sm:$0x1]
    %v501 = vlaneseq
    %v502 = vshrl.u32 %v501, 7
    %v503 = vsub.s32 0, %v502
    %v504 = vrot.slane %v499, %v503
    %506 = vmatprep.subr.mxu0 0.0
    %507 = vmatpush1.msra.mxu0 %v383
    %508 = vmatprep.subr.mxu0 0.0
    %509 = vmatpush1.msra.mxu0 %v384
    %510 = vmatprep.subr.mxu0 0.0
    %511 = vmatpush1.msra.mxu0 %v385
    %512 = vmatprep.subr.mxu0 0.0
    %513 = vmatpush1.msra.mxu0 %v386
    %514 = vmatprep.subr.mxu0 0.0
    %515 = vmatpush1.msra.mxu0 0.0
    %516 = vmatprep.subr.mxu0 0.0
    %517 = vmatpush1.msra.mxu0 0.0
    %518 = vmatprep.subr.mxu0 0.0
    %519 = vmatpush1.msra.mxu0 0.0
    %520 = vmatprep.subr.mxu0 0.0
    %521 = vmatpush1.msra.mxu0 0.0
    %522 = vmatprep.subr.mxu0 0.0
    %523 = vmatpush1.msra.mxu0 0.0
    %524 = vmatprep.subr.mxu0 0.0
    %525 = vmatpush1.msra.mxu0 0.0
    %526 = vmatprep.subr.mxu0 0.0
    %527 = vmatpush1.msra.mxu0 0.0
    %528 = vmatprep.subr.mxu0 0.0
    %529 = vmatpush1.msra.mxu0 0.0
    %530 = vmatprep.subr.mxu0 0.0
    %531 = vmatpush1.msra.mxu0 0.0
    %532 = vmatprep.subr.mxu0 0.0
    %533 = vmatpush1.msra.mxu0 0.0
    %534 = vmatprep.subr.mxu0 0.0
    %535 = vmatpush1.msra.mxu0 0.0
    %536 = vmatprep.subr.mxu0 0.0
    %537 = vmatpush1.msra.mxu0 0.0
    %538 = vmatprep.subr.mxu0 0.0
    %539 = vmatpush1.msra.mxu0 0.0
    %540 = vmatprep.subr.mxu0 0.0
    %541 = vmatpush1.msra.mxu0 0.0
    %542 = vmatprep.subr.mxu0 0.0
    %543 = vmatpush1.msra.mxu0 0.0
    %544 = vmatprep.subr.mxu0 0.0
    %545 = vmatpush1.msra.mxu0 0.0
    %546 = vmatprep.subr.mxu0 0.0
    %547 = vmatpush1.msra.mxu0 0.0
    %548 = vmatprep.subr.mxu0 0.0
    %549 = vmatpush1.msra.mxu0 0.0
    %550 = vmatprep.subr.mxu0 0.0
    %551 = vmatpush1.msra.mxu0 0.0
    %552 = vmatprep.subr.mxu0 0.0
    %553 = vmatpush1.msra.mxu0 0.0
    %554 = vmatprep.subr.mxu0 0.0
    %555 = vmatpush1.msra.mxu0 0.0
    %556 = vmatprep.subr.mxu0 0.0
    %557 = vmatpush1.msra.mxu0 0.0
    %558 = vmatprep.subr.mxu0 0.0
    %559 = vmatpush1.msra.mxu0 0.0
    %560 = vmatprep.subr.mxu0 0.0
    %561 = vmatpush1.msra.mxu0 0.0
    %562 = vmatprep.subr.mxu0 0.0
    %563 = vmatpush1.msra.mxu0 0.0
    %564 = vmatprep.subr.mxu0 0.0
    %565 = vmatpush1.msra.mxu0 0.0
    %566 = vmatprep.subr.mxu0 0.0
    %567 = vmatpush1.msra.mxu0 0.0
    %568 = vmatprep.subr.mxu0 0.0
    %569 = vmatpush1.msra.mxu0 0.0
    %570 = vmatprep.mubr.f32.mxu0 0.0
    %571 = vmatmul.mubr.f32.gmra.mrb[0].mxu0 %v403
    %v572 = vpop.f32.mrb[0].mxu0
    %v573 = vadd.f32 %v504, %v572
    %v574 = vpop.f32.mrb[0].mxu0
    %575 = vmatprep.mubr.f32.mxu0 0.0
    %576 = vmatmul.mubr.f32.gmra.mrb[0].mxu0 %v406
    %v577 = vpop.f32.mrb[0].mxu0
    %v578 = vadd.f32 %v504, %v577
    %v579 = vpop.f32.mrb[0].mxu0
    %580 = vmatprep.mubr.f32.mxu0 0.0
    %581 = vmatmul.mubr.f32.gmra.mrb[0].mxu0 %v409
    %v582 = vpop.f32.mrb[0].mxu0
    %v583 = vadd.f32 %v504, %v582
    %v584 = vpop.f32.mrb[0].mxu0
    %585 = vmatprep.mubr.f32.mxu0 0.0
    %586 = vmatmul.mubr.f32.gmra.mrb[0].mxu0 %v412
    %v587 = vpop.f32.mrb[0].mxu0
    %v588 = vadd.f32 %v504, %v587
    %v589 = vpop.f32.mrb[0].mxu0
    %590 = vdwg.mxu0
    %v591 = vld [vmem:[#allocation8] sm:$0x1]
    %v593 = vlaneseq
    %v594 = vshrl.u32 %v593, 7
    %v595 = vsub.s32 0, %v594
    %v596 = vrot.slane %v591, %v595
    %598 = vmatprep.subr.mxu0 0.0
    %599 = vmatpush1.msra.mxu0 %v387
    %600 = vmatprep.subr.mxu0 0.0
    %601 = vmatpush1.msra.mxu0 %v388
    %602 = vmatprep.subr.mxu0 0.0
    %603 = vmatpush1.msra.mxu0 %v389
    %604 = vmatprep.subr.mxu0 0.0
    %605 = vmatpush1.msra.mxu0 %v390
    %606 = vmatprep.subr.mxu0 0.0
    %607 = vmatpush1.msra.mxu0 0.0
    %608 = vmatprep.subr.mxu0 0.0
    %609 = vmatpush1.msra.mxu0 0.0
    %610 = vmatprep.subr.mxu0 0.0
    %611 = vmatpush1.msra.mxu0 0.0
    %612 = vmatprep.subr.mxu0 0.0
    %613 = vmatpush1.msra.mxu0 0.0
    %614 = vmatprep.subr.mxu0 0.0
    %615 = vmatpush1.msra.mxu0 0.0
    %616 = vmatprep.subr.mxu0 0.0
    %617 = vmatpush1.msra.mxu0 0.0
    %618 = vmatprep.subr.mxu0 0.0
    %619 = vmatpush1.msra.mxu0 0.0
    %620 = vmatprep.subr.mxu0 0.0
    %621 = vmatpush1.msra.mxu0 0.0
    %622 = vmatprep.subr.mxu0 0.0
    %623 = vmatpush1.msra.mxu0 0.0
    %624 = vmatprep.subr.mxu0 0.0
    %625 = vmatpush1.msra.mxu0 0.0
    %626 = vmatprep.subr.mxu0 0.0
    %627 = vmatpush1.msra.mxu0 0.0
    %628 = vmatprep.subr.mxu0 0.0
    %629 = vmatpush1.msra.mxu0 0.0
    %630 = vmatprep.subr.mxu0 0.0
    %631 = vmatpush1.msra.mxu0 0.0
    %632 = vmatprep.subr.mxu0 0.0
    %633 = vmatpush1.msra.mxu0 0.0
    %634 = vmatprep.subr.mxu0 0.0
    %635 = vmatpush1.msra.mxu0 0.0
    %636 = vmatprep.subr.mxu0 0.0
    %637 = vmatpush1.msra.mxu0 0.0
    %638 = vmatprep.subr.mxu0 0.0
    %639 = vmatpush1.msra.mxu0 0.0
    %640 = vmatprep.subr.mxu0 0.0
    %641 = vmatpush1.msra.mxu0 0.0
    %642 = vmatprep.subr.mxu0 0.0
    %643 = vmatpush1.msra.mxu0 0.0
    %644 = vmatprep.subr.mxu0 0.0
    %645 = vmatpush1.msra.mxu0 0.0
    %646 = vmatprep.subr.mxu0 0.0
    %647 = vmatpush1.msra.mxu0 0.0
    %648 = vmatprep.subr.mxu0 0.0
    %649 = vmatpush1.msra.mxu0 0.0
    %650 = vmatprep.subr.mxu0 0.0
    %651 = vmatpush1.msra.mxu0 0.0
    %652 = vmatprep.subr.mxu0 0.0
    %653 = vmatpush1.msra.mxu0 0.0
    %654 = vmatprep.subr.mxu0 0.0
    %655 = vmatpush1.msra.mxu0 0.0
    %656 = vmatprep.subr.mxu0 0.0
    %657 = vmatpush1.msra.mxu0 0.0
    %658 = vmatprep.subr.mxu0 0.0
    %659 = vmatpush1.msra.mxu0 0.0
    %660 = vmatprep.subr.mxu0 0.0
    %661 = vmatpush1.msra.mxu0 0.0
    %662 = vmatprep.mubr.f32.mxu0 0.0
    %663 = vmatmul.mubr.f32.gmra.mrb[0].mxu0 %v403
    %v664 = vpop.f32.mrb[0].mxu0
    %v665 = vadd.f32 %v596, %v664
    %v666 = vpop.f32.mrb[0].mxu0
    %667 = vmatprep.mubr.f32.mxu0 0.0
    %668 = vmatmul.mubr.f32.gmra.mrb[0].mxu0 %v406
    %v669 = vpop.f32.mrb[0].mxu0
    %v670 = vadd.f32 %v596, %v669
    %v671 = vpop.f32.mrb[0].mxu0
    %672 = vmatprep.mubr.f32.mxu0 0.0
    %673 = vmatmul.mubr.f32.gmra.mrb[0].mxu0 %v409
    %v674 = vpop.f32.mrb[0].mxu0
    %v675 = vadd.f32 %v596, %v674
    %v676 = vpop.f32.mrb[0].mxu0
    %677 = vmatprep.mubr.f32.mxu0 0.0
    %678 = vmatmul.mubr.f32.gmra.mrb[0].mxu0 %v412
    %v679 = vpop.f32.mrb[0].mxu0
    %v680 = vadd.f32 %v596, %v679
    %v681 = vpop.f32.mrb[0].mxu0
    %682 = vdwg.mxu0
    %vm683 = vcmask 64512
    %v685 = vsel %vm683, %v481, 0
    %v688 = vsel %vm683, %v486, 0
    %v691 = vsel %vm683, %v491, 0
    %v694 = vsel %vm683, %v496, 0
    %v697 = vsel %vm683, %v573, 0
    %v700 = vsel %vm683, %v578, 0
    %v703 = vsel %vm683, %v583, 0
    %v706 = vsel %vm683, %v588, 0
    %708 = vmatprep.subr.mxu0 0.0
    %709 = vmatpush1.xpose.msra.mxu0 %v697
    %710 = vmatprep.subr.mxu0 0.0
    %711 = vmatpush1.xpose.msra.mxu0 %v700
    %712 = vmatprep.subr.mxu0 0.0
    %713 = vmatpush1.xpose.msra.mxu0 %v703
    %714 = vmatprep.subr.mxu0 0.0
    %715 = vmatpush1.xpose.msra.mxu0 %v706
    %716 = vmatprep.subr.mxu0 0.0
    %717 = vmatpush1.xpose.msra.mxu0 0.0
    %718 = vmatprep.subr.mxu0 0.0
    %719 = vmatpush1.xpose.msra.mxu0 0.0
    %720 = vmatprep.subr.mxu0 0.0
    %721 = vmatpush1.xpose.msra.mxu0 0.0
    %722 = vmatprep.subr.mxu0 0.0
    %723 = vmatpush1.xpose.msra.mxu0 0.0
    %724 = vmatprep.subr.mxu0 0.0
    %725 = vmatpush1.xpose.msra.mxu0 0.0
    %726 = vmatprep.subr.mxu0 0.0
    %727 = vmatpush1.xpose.msra.mxu0 0.0
    %728 = vmatprep.subr.mxu0 0.0
    %729 = vmatpush1.xpose.msra.mxu0 0.0
    %730 = vmatprep.subr.mxu0 0.0
    %731 = vmatpush1.xpose.msra.mxu0 0.0
    %732 = vmatprep.subr.mxu0 0.0
    %733 = vmatpush1.xpose.msra.mxu0 0.0
    %734 = vmatprep.subr.mxu0 0.0
    %735 = vmatpush1.xpose.msra.mxu0 0.0
    %736 = vmatprep.subr.mxu0 0.0
    %737 = vmatpush1.xpose.msra.mxu0 0.0
    %738 = vmatprep.subr.mxu0 0.0
    %739 = vmatpush1.xpose.msra.mxu0 0.0
    %740 = vmatprep.subr.mxu0 0.0
    %741 = vmatpush1.xpose.msra.mxu0 0.0
    %742 = vmatprep.subr.mxu0 0.0
    %743 = vmatpush1.xpose.msra.mxu0 0.0
    %744 = vmatprep.subr.mxu0 0.0
    %745 = vmatpush1.xpose.msra.mxu0 0.0
    %746 = vmatprep.subr.mxu0 0.0
    %747 = vmatpush1.xpose.msra.mxu0 0.0
    %748 = vmatprep.subr.mxu0 0.0
    %749 = vmatpush1.xpose.msra.mxu0 0.0
    %750 = vmatprep.subr.mxu0 0.0
    %751 = vmatpush1.xpose.msra.mxu0 0.0
    %752 = vmatprep.subr.mxu0 0.0
    %753 = vmatpush1.xpose.msra.mxu0 0.0
    %754 = vmatprep.subr.mxu0 0.0
    %755 = vmatpush1.xpose.msra.mxu0 0.0
    %756 = vmatprep.subr.mxu0 0.0
    %757 = vmatpush1.xpose.msra.mxu0 0.0
    %758 = vmatprep.subr.mxu0 0.0
    %759 = vmatpush1.xpose.msra.mxu0 0.0
    %760 = vmatprep.subr.mxu0 0.0
    %761 = vmatpush1.xpose.msra.mxu0 0.0
    %762 = vmatprep.subr.mxu0 0.0
    %763 = vmatpush1.xpose.msra.mxu0 0.0
    %764 = vmatprep.subr.mxu0 0.0
    %765 = vmatpush1.xpose.msra.mxu0 0.0
    %766 = vmatprep.subr.mxu0 0.0
    %767 = vmatpush1.xpose.msra.mxu0 0.0
    %768 = vmatprep.subr.mxu0 0.0
    %769 = vmatpush1.xpose.msra.mxu0 0.0
    %770 = vmatprep.subr.mxu0 0.0
    %771 = vmatpush1.xpose.msra.mxu0 0.0
    %772 = vmatprep.mubr.f32.mxu0 0.0
    %773 = vmatmul.mubr.f32.gmra.mrb[0].mxu0 %v685
    %v774 = vpop.f32.mrb[0].mxu0
    %v775 = vadd.f32 %v254, %v774
    %v776 = vpop.f32.mrb[0].mxu0
    %777 = vmatprep.mubr.f32.mxu0 0.0
    %778 = vmatmul.mubr.f32.gmra.mrb[0].mxu0 %v688
    %v779 = vpop.f32.mrb[0].mxu0
    %v780 = vadd.f32 %v255, %v779
    %v781 = vpop.f32.mrb[0].mxu0
    %782 = vmatprep.mubr.f32.mxu0 0.0
    %783 = vmatmul.mubr.f32.gmra.mrb[0].mxu0 %v691
    %v784 = vpop.f32.mrb[0].mxu0
    %v785 = vadd.f32 %v256, %v784
    %v786 = vpop.f32.mrb[0].mxu0
    %787 = vmatprep.mubr.f32.mxu0 0.0
    %788 = vmatmul.mubr.f32.gmra.mrb[0].mxu0 %v694
    %v789 = vpop.f32.mrb[0].mxu0
    %v790 = vadd.f32 %v257, %v789
    %v791 = vpop.f32.mrb[0].mxu0
    %792 = vdwg.mxu0
    %v793 = vsel %vm281, %v775, -inf
    %794 = vmax.xlane.f32.xlu0 %v793
    %v795 = vpop.xlane.xlu0 %794
    %v796 = vsel %vm281, %v780, -inf
    %797 = vmax.xlane.f32.xlu0 %v796
    %v798 = vpop.xlane.xlu0 %797
    %v799 = vsel %vm281, %v785, -inf
    %800 = vmax.xlane.f32.xlu0 %v799
    %v801 = vpop.xlane.xlu0 %800
    %v802 = vsel %vm281, %v790, -inf
    %803 = vmax.xlane.f32.xlu0 %v802
    %v804 = vpop.xlane.xlu0 %803
    %v805 = vsub.f32 %v775, %v795
    %v806 = vsub.f32 %v780, %v798
    %v807 = vsub.f32 %v785, %v801
    %v808 = vsub.f32 %v790, %v804
    %v809 = vmul.f32 %v805, 1.442695
    %v810 = vpow.pop %v809
    %v811 = vmul.f32 %v806, 1.442695
    %v812 = vpow.pop %v811
    %v813 = vmul.f32 %v807, 1.442695
    %v814 = vpow.pop %v813
    %v815 = vmul.f32 %v808, 1.442695
    %v816 = vpow.pop %v815
    %v817 = vsel %vm281, %v810, 0.0
    %818 = vadd.xlane.f32.xlu0 %v817
    %v819 = vpop.xlane.xlu0 %818
    %v820 = vsel %vm281, %v812, 0.0
    %821 = vadd.xlane.f32.xlu0 %v820
    %v822 = vpop.xlane.xlu0 %821
    %v823 = vsel %vm281, %v814, 0.0
    %824 = vadd.xlane.f32.xlu0 %v823
    %v825 = vpop.xlane.xlu0 %824
    %v826 = vsel %vm281, %v816, 0.0
    %827 = vadd.xlane.f32.xlu0 %v826
    %v828 = vpop.xlane.xlu0 %827
    %v829 = vrcp.pop %v819
    %v830 = vrcp.pop %v822
    %v831 = vrcp.pop %v825
    %v832 = vrcp.pop %v828
    %v833 = vmul.f32 %v810, %v829
    %v834 = vmul.f32 %v812, %v830
    %v835 = vmul.f32 %v814, %v831
    %v836 = vmul.f32 %v816, %v832
    %v838 = vsel %vm281, %v833, 0
    %v841 = vsel %vm281, %v834, 0
    %v844 = vsel %vm281, %v835, 0
    %v847 = vsel %vm281, %v836, 0
    %849 = vmatprep.subr.mxu0 0.0
    %850 = vmatpush1.msra.mxu0 %v665
    %851 = vmatprep.subr.mxu0 0.0
    %852 = vmatpush1.msra.mxu0 %v670
    %853 = vmatprep.subr.mxu0 0.0
    %854 = vmatpush1.msra.mxu0 %v675
    %855 = vmatprep.subr.mxu0 0.0
    %856 = vmatpush1.msra.mxu0 %v680
    %857 = vmatprep.subr.mxu0 0.0
    %858 = vmatpush1.msra.mxu0 0.0
    %859 = vmatprep.subr.mxu0 0.0
    %860 = vmatpush1.msra.mxu0 0.0
    %861 = vmatprep.subr.mxu0 0.0
    %862 = vmatpush1.msra.mxu0 0.0
    %863 = vmatprep.subr.mxu0 0.0
    %864 = vmatpush1.msra.mxu0 0.0
    %865 = vmatprep.subr.mxu0 0.0
    %866 = vmatpush1.msra.mxu0 0.0
    %867 = vmatprep.subr.mxu0 0.0
    %868 = vmatpush1.msra.mxu0 0.0
    %869 = vmatprep.subr.mxu0 0.0
    %870 = vmatpush1.msra.mxu0 0.0
    %871 = vmatprep.subr.mxu0 0.0
    %872 = vmatpush1.msra.mxu0 0.0
    %873 = vmatprep.subr.mxu0 0.0
    %874 = vmatpush1.msra.mxu0 0.0
    %875 = vmatprep.subr.mxu0 0.0
    %876 = vmatpush1.msra.mxu0 0.0
    %877 = vmatprep.subr.mxu0 0.0
    %878 = vmatpush1.msra.mxu0 0.0
    %879 = vmatprep.subr.mxu0 0.0
    %880 = vmatpush1.msra.mxu0 0.0
    %881 = vmatprep.subr.mxu0 0.0
    %882 = vmatpush1.msra.mxu0 0.0
    %883 = vmatprep.subr.mxu0 0.0
    %884 = vmatpush1.msra.mxu0 0.0
    %885 = vmatprep.subr.mxu0 0.0
    %886 = vmatpush1.msra.mxu0 0.0
    %887 = vmatprep.subr.mxu0 0.0
    %888 = vmatpush1.msra.mxu0 0.0
    %889 = vmatprep.subr.mxu0 0.0
    %890 = vmatpush1.msra.mxu0 0.0
    %891 = vmatprep.subr.mxu0 0.0
    %892 = vmatpush1.msra.mxu0 0.0
    %893 = vmatprep.subr.mxu0 0.0
    %894 = vmatpush1.msra.mxu0 0.0
    %895 = vmatprep.subr.mxu0 0.0
    %896 = vmatpush1.msra.mxu0 0.0
    %897 = vmatprep.subr.mxu0 0.0
    %898 = vmatpush1.msra.mxu0 0.0
    %899 = vmatprep.subr.mxu0 0.0
    %900 = vmatpush1.msra.mxu0 0.0
    %901 = vmatprep.subr.mxu0 0.0
    %902 = vmatpush1.msra.mxu0 0.0
    %903 = vmatprep.subr.mxu0 0.0
    %904 = vmatpush1.msra.mxu0 0.0
    %905 = vmatprep.subr.mxu0 0.0
    %906 = vmatpush1.msra.mxu0 0.0
    %907 = vmatprep.subr.mxu0 0.0
    %908 = vmatpush1.msra.mxu0 0.0
    %909 = vmatprep.subr.mxu0 0.0
    %910 = vmatpush1.msra.mxu0 0.0
    %911 = vmatprep.subr.mxu0 0.0
    %912 = vmatpush1.msra.mxu0 0.0
    %913 = vmatprep.mubr.f32.mxu0 0.0
    %914 = vmatmul.mubr.f32.gmra.mrb[0].mxu0 %v838
    %v915 = vpop.f32.mrb[0].mxu0
    %v916 = vadd.f32 0.0, %v915
    %v917 = vpop.f32.mrb[0].mxu0
    %918 = vmatprep.mubr.f32.mxu0 0.0
    %919 = vmatmul.mubr.f32.gmra.mrb[0].mxu0 %v841
    %v920 = vpop.f32.mrb[0].mxu0
    %v921 = vadd.f32 0.0, %v920
    %v922 = vpop.f32.mrb[0].mxu0
    %923 = vmatprep.mubr.f32.mxu0 0.0
    %924 = vmatmul.mubr.f32.gmra.mrb[0].mxu0 %v844
    %v925 = vpop.f32.mrb[0].mxu0
    %v926 = vadd.f32 0.0, %v925
    %v927 = vpop.f32.mrb[0].mxu0
    %928 = vmatprep.mubr.f32.mxu0 0.0
    %929 = vmatmul.mubr.f32.gmra.mrb[0].mxu0 %v847
    %v930 = vpop.f32.mrb[0].mxu0
    %v931 = vadd.f32 0.0, %v930
    %v932 = vpop.f32.mrb[0].mxu0
    %933 = vdwg.mxu0
    %934 = vrot.lane.b32.xlu0 %v481, 120
    %v935 = vpop.permute.xlu0 %934
    %936 = vrot.lane.b32.xlu0 %v486, 120
    %v937 = vpop.permute.xlu0 %936
    %938 = vrot.lane.b32.xlu0 %v491, 120
    %v939 = vpop.permute.xlu0 %938
    %940 = vrot.lane.b32.xlu0 %v496, 120
    %v941 = vpop.permute.xlu0 %940
    %942 = vrot.lane.b32.xlu0 %v573, 120
    %v943 = vpop.permute.xlu0 %942
    %944 = vrot.lane.b32.xlu0 %v578, 120
    %v945 = vpop.permute.xlu0 %944
    %946 = vrot.lane.b32.xlu0 %v583, 120
    %v947 = vpop.permute.xlu0 %946
    %948 = vrot.lane.b32.xlu0 %v588, 120
    %v949 = vpop.permute.xlu0 %948
    %v950 = vsel %vm683, %v935, 0
    %v952 = vsel %vm683, %v937, 0
    %v954 = vsel %vm683, %v939, 0
    %v956 = vsel %vm683, %v941, 0
    %v958 = vsel %vm683, %v943, 0
    %v960 = vsel %vm683, %v945, 0
    %v962 = vsel %vm683, %v947, 0
    %v964 = vsel %vm683, %v949, 0
    %966 = vmatprep.subr.mxu0 0.0
    %967 = vmatpush1.xpose.msra.mxu0 %v958
    %968 = vmatprep.subr.mxu0 0.0
    %969 = vmatpush1.xpose.msra.mxu0 %v960
    %970 = vmatprep.subr.mxu0 0.0
    %971 = vmatpush1.xpose.msra.mxu0 %v962
    %972 = vmatprep.subr.mxu0 0.0
    %973 = vmatpush1.xpose.msra.mxu0 %v964
    %974 = vmatprep.subr.mxu0 0.0
    %975 = vmatpush1.xpose.msra.mxu0 0.0
    %976 = vmatprep.subr.mxu0 0.0
    %977 = vmatpush1.xpose.msra.mxu0 0.0
    %978 = vmatprep.subr.mxu0 0.0
    %979 = vmatpush1.xpose.msra.mxu0 0.0
    %980 = vmatprep.subr.mxu0 0.0
    %981 = vmatpush1.xpose.msra.mxu0 0.0
    %982 = vmatprep.subr.mxu0 0.0
    %983 = vmatpush1.xpose.msra.mxu0 0.0
    %984 = vmatprep.subr.mxu0 0.0
    %985 = vmatpush1.xpose.msra.mxu0 0.0
    %986 = vmatprep.subr.mxu0 0.0
    %987 = vmatpush1.xpose.msra.mxu0 0.0
    %988 = vmatprep.subr.mxu0 0.0
    %989 = vmatpush1.xpose.msra.mxu0 0.0
    %990 = vmatprep.subr.mxu0 0.0
    %991 = vmatpush1.xpose.msra.mxu0 0.0
    %992 = vmatprep.subr.mxu0 0.0
    %993 = vmatpush1.xpose.msra.mxu0 0.0
    %994 = vmatprep.subr.mxu0 0.0
    %995 = vmatpush1.xpose.msra.mxu0 0.0
    %996 = vmatprep.subr.mxu0 0.0
    %997 = vmatpush1.xpose.msra.mxu0 0.0
    %998 = vmatprep.subr.mxu0 0.0
    %999 = vmatpush1.xpose.msra.mxu0 0.0
    %1000 = vmatprep.subr.mxu0 0.0
    %1001 = vmatpush1.xpose.msra.mxu0 0.0
    %1002 = vmatprep.subr.mxu0 0.0
    %1003 = vmatpush1.xpose.msra.mxu0 0.0
    %1004 = vmatprep.subr.mxu0 0.0
    %1005 = vmatpush1.xpose.msra.mxu0 0.0
    %1006 = vmatprep.subr.mxu0 0.0
    %1007 = vmatpush1.xpose.msra.mxu0 0.0
    %1008 = vmatprep.subr.mxu0 0.0
    %1009 = vmatpush1.xpose.msra.mxu0 0.0
    %1010 = vmatprep.subr.mxu0 0.0
    %1011 = vmatpush1.xpose.msra.mxu0 0.0
    %1012 = vmatprep.subr.mxu0 0.0
    %1013 = vmatpush1.xpose.msra.mxu0 0.0
    %1014 = vmatprep.subr.mxu0 0.0
    %1015 = vmatpush1.xpose.msra.mxu0 0.0
    %1016 = vmatprep.subr.mxu0 0.0
    %1017 = vmatpush1.xpose.msra.mxu0 0.0
    %1018 = vmatprep.subr.mxu0 0.0
    %1019 = vmatpush1.xpose.msra.mxu0 0.0
    %1020 = vmatprep.subr.mxu0 0.0
    %1021 = vmatpush1.xpose.msra.mxu0 0.0
    %1022 = vmatprep.subr.mxu0 0.0
    %1023 = vmatpush1.xpose.msra.mxu0 0.0
    %1024 = vmatprep.subr.mxu0 0.0
    %1025 = vmatpush1.xpose.msra.mxu0 0.0
    %1026 = vmatprep.subr.mxu0 0.0
    %1027 = vmatpush1.xpose.msra.mxu0 0.0
    %1028 = vmatprep.subr.mxu0 0.0
    %1029 = vmatpush1.xpose.msra.mxu0 0.0
    %1030 = vmatprep.mubr.f32.mxu0 0.0
    %1031 = vmatmul.mubr.f32.gmra.mrb[0].mxu0 %v950
    %v1032 = vpop.f32.mrb[0].mxu0
    %v1033 = vadd.f32 %v254, %v1032
    %v1034 = vpop.f32.mrb[0].mxu0
    %1035 = vmatprep.mubr.f32.mxu0 0.0
    %1036 = vmatmul.mubr.f32.gmra.mrb[0].mxu0 %v952
    %v1037 = vpop.f32.mrb[0].mxu0
    %v1038 = vadd.f32 %v255, %v1037
    %v1039 = vpop.f32.mrb[0].mxu0
    %1040 = vmatprep.mubr.f32.mxu0 0.0
    %1041 = vmatmul.mubr.f32.gmra.mrb[0].mxu0 %v954
    %v1042 = vpop.f32.mrb[0].mxu0
    %v1043 = vadd.f32 %v256, %v1042
    %v1044 = vpop.f32.mrb[0].mxu0
    %1045 = vmatprep.mubr.f32.mxu0 0.0
    %1046 = vmatmul.mubr.f32.gmra.mrb[0].mxu0 %v956
    %v1047 = vpop.f32.mrb[0].mxu0
    %v1048 = vadd.f32 %v257, %v1047
    %v1049 = vpop.f32.mrb[0].mxu0
    %1050 = vdwg.mxu0
    %v1051 = vsel %vm281, %v1033, -inf
    %1052 = vmax.xlane.f32.xlu0 %v1051
    %v1053 = vpop.xlane.xlu0 %1052
    %v1054 = vsel %vm281, %v1038, -inf
    %1055 = vmax.xlane.f32.xlu0 %v1054
    %v1056 = vpop.xlane.xlu0 %1055
    %v1057 = vsel %vm281, %v1043, -inf
    %1058 = vmax.xlane.f32.xlu0 %v1057
    %v1059 = vpop.xlane.xlu0 %1058
    %v1060 = vsel %vm281, %v1048, -inf
    %1061 = vmax.xlane.f32.xlu0 %v1060
    %v1062 = vpop.xlane.xlu0 %1061
    %v1063 = vsub.f32 %v1033, %v1053
    %v1064 = vsub.f32 %v1038, %v1056
    %v1065 = vsub.f32 %v1043, %v1059
    %v1066 = vsub.f32 %v1048, %v1062
    %v1067 = vmul.f32 %v1063, 1.442695
    %v1068 = vpow.pop %v1067
    %v1069 = vmul.f32 %v1064, 1.442695
    %v1070 = vpow.pop %v1069
    %v1071 = vmul.f32 %v1065, 1.442695
    %v1072 = vpow.pop %v1071
    %v1073 = vmul.f32 %v1066, 1.442695
    %v1074 = vpow.pop %v1073
    %v1075 = vsel %vm281, %v1068, 0.0
    %1076 = vadd.xlane.f32.xlu0 %v1075
    %v1077 = vpop.xlane.xlu0 %1076
    %v1078 = vsel %vm281, %v1070, 0.0
    %1079 = vadd.xlane.f32.xlu0 %v1078
    %v1080 = vpop.xlane.xlu0 %1079
    %v1081 = vsel %vm281, %v1072, 0.0
    %1082 = vadd.xlane.f32.xlu0 %v1081
    %v1083 = vpop.xlane.xlu0 %1082
    %v1084 = vsel %vm281, %v1074, 0.0
    %1085 = vadd.xlane.f32.xlu0 %v1084
    %v1086 = vpop.xlane.xlu0 %1085
    %v1087 = vrcp.pop %v1077
    %v1088 = vrcp.pop %v1080
    %v1089 = vrcp.pop %v1083
    %v1090 = vrcp.pop %v1086
    %v1091 = vmul.f32 %v1068, %v1087
    %v1092 = vmul.f32 %v1070, %v1088
    %v1093 = vmul.f32 %v1072, %v1089
    %v1094 = vmul.f32 %v1074, %v1090
    %1099 = vrot.lane.b32.xlu0 %v665, 120
    %v1100 = vpop.permute.xlu0 %1099
    %1101 = vrot.lane.b32.xlu0 %v670, 120
    %v1102 = vpop.permute.xlu0 %1101
    %1103 = vrot.lane.b32.xlu0 %v675, 120
    %v1104 = vpop.permute.xlu0 %1103
    %1105 = vrot.lane.b32.xlu0 %v680, 120
    %v1106 = vpop.permute.xlu0 %1105
    %v1112 = vsel %vm281, %v1091, 0
    %v1115 = vsel %vm281, %v1092, 0
    %v1118 = vsel %vm281, %v1093, 0
    %v1121 = vsel %vm281, %v1094, 0
    %1123 = vmatprep.subr.mxu0 0.0
    %1124 = vmatpush1.msra.mxu0 %v1100
    %1125 = vmatprep.subr.mxu0 0.0
    %1126 = vmatpush1.msra.mxu0 %v1102
    %1127 = vmatprep.subr.mxu0 0.0
    %1128 = vmatpush1.msra.mxu0 %v1104
    %1129 = vmatprep.subr.mxu0 0.0
    %1130 = vmatpush1.msra.mxu0 %v1106
    %1131 = vmatprep.subr.mxu0 0.0
    %1132 = vmatpush1.msra.mxu0 0.0
    %1133 = vmatprep.subr.mxu0 0.0
    %1134 = vmatpush1.msra.mxu0 0.0
    %1135 = vmatprep.subr.mxu0 0.0
    %1136 = vmatpush1.msra.mxu0 0.0
    %1137 = vmatprep.subr.mxu0 0.0
    %1138 = vmatpush1.msra.mxu0 0.0
    %1139 = vmatprep.subr.mxu0 0.0
    %1140 = vmatpush1.msra.mxu0 0.0
    %1141 = vmatprep.subr.mxu0 0.0
    %1142 = vmatpush1.msra.mxu0 0.0
    %1143 = vmatprep.subr.mxu0 0.0
    %1144 = vmatpush1.msra.mxu0 0.0
    %1145 = vmatprep.subr.mxu0 0.0
    %1146 = vmatpush1.msra.mxu0 0.0
    %1147 = vmatprep.subr.mxu0 0.0
    %1148 = vmatpush1.msra.mxu0 0.0
    %1149 = vmatprep.subr.mxu0 0.0
    %1150 = vmatpush1.msra.mxu0 0.0
    %1151 = vmatprep.subr.mxu0 0.0
    %1152 = vmatpush1.msra.mxu0 0.0
    %1153 = vmatprep.subr.mxu0 0.0
    %1154 = vmatpush1.msra.mxu0 0.0
    %1155 = vmatprep.subr.mxu0 0.0
    %1156 = vmatpush1.msra.mxu0 0.0
    %1157 = vmatprep.subr.mxu0 0.0
    %1158 = vmatpush1.msra.mxu0 0.0
    %1159 = vmatprep.subr.mxu0 0.0
    %1160 = vmatpush1.msra.mxu0 0.0
    %1161 = vmatprep.subr.mxu0 0.0
    %1162 = vmatpush1.msra.mxu0 0.0
    %1163 = vmatprep.subr.mxu0 0.0
    %1164 = vmatpush1.msra.mxu0 0.0
    %1165 = vmatprep.subr.mxu0 0.0
    %1166 = vmatpush1.msra.mxu0 0.0
    %1167 = vmatprep.subr.mxu0 0.0
    %1168 = vmatpush1.msra.mxu0 0.0
    %1169 = vmatprep.subr.mxu0 0.0
    %1170 = vmatpush1.msra.mxu0 0.0
    %1171 = vmatprep.subr.mxu0 0.0
    %1172 = vmatpush1.msra.mxu0 0.0
    %1173 = vmatprep.subr.mxu0 0.0
    %1174 = vmatpush1.msra.mxu0 0.0
    %1175 = vmatprep.subr.mxu0 0.0
    %1176 = vmatpush1.msra.mxu0 0.0
    %1177 = vmatprep.subr.mxu0 0.0
    %1178 = vmatpush1.msra.mxu0 0.0
    %1179 = vmatprep.subr.mxu0 0.0
    %1180 = vmatpush1.msra.mxu0 0.0
    %1181 = vmatprep.subr.mxu0 0.0
    %1182 = vmatpush1.msra.mxu0 0.0
    %1183 = vmatprep.subr.mxu0 0.0
    %1184 = vmatpush1.msra.mxu0 0.0
    %1185 = vmatprep.subr.mxu0 0.0
    %1186 = vmatpush1.msra.mxu0 0.0
    %1187 = vmatprep.mubr.f32.mxu0 0.0
    %1188 = vmatmul.mubr.f32.gmra.mrb[0].mxu0 %v1112
    %v1189 = vpop.f32.mrb[0].mxu0
    %v1190 = vadd.f32 0.0, %v1189
    %v1191 = vpop.f32.mrb[0].mxu0
    %1192 = vmatprep.mubr.f32.mxu0 0.0
    %1193 = vmatmul.mubr.f32.gmra.mrb[0].mxu0 %v1115
    %v1194 = vpop.f32.mrb[0].mxu0
    %v1195 = vadd.f32 0.0, %v1194
    %v1196 = vpop.f32.mrb[0].mxu0
    %1197 = vmatprep.mubr.f32.mxu0 0.0
    %1198 = vmatmul.mubr.f32.gmra.mrb[0].mxu0 %v1118
    %v1199 = vpop.f32.mrb[0].mxu0
    %v1200 = vadd.f32 0.0, %v1199
    %v1201 = vpop.f32.mrb[0].mxu0
    %1202 = vmatprep.mubr.f32.mxu0 0.0
    %1203 = vmatmul.mubr.f32.gmra.mrb[0].mxu0 %v1121
    %v1204 = vpop.f32.mrb[0].mxu0
    %v1205 = vadd.f32 0.0, %v1204
    %v1206 = vpop.f32.mrb[0].mxu0
    %1207 = vdwg.mxu0
    %v1209 = vsel %vm683, %v1190, 0
    %v1212 = vsel %vm683, %v1195, 0
    %v1215 = vsel %vm683, %v1200, 0
    %v1218 = vsel %vm683, %v1205, 0
    %1220 = vmatprep.subr.mxu0 0.0
    %1221 = vmatpush1.msra.mxu0 %v392
    %1222 = vmatprep.subr.mxu0 0.0
    %1223 = vmatpush1.msra.mxu0 0.0
    %1224 = vmatprep.subr.mxu0 0.0
    %1225 = vmatpush1.msra.mxu0 0.0
    %1226 = vmatprep.subr.mxu0 0.0
    %1227 = vmatpush1.msra.mxu0 0.0
    %1228 = vmatprep.subr.mxu0 0.0
    %1229 = vmatpush1.msra.mxu0 0.0
    %1230 = vmatprep.subr.mxu0 0.0
    %1231 = vmatpush1.msra.mxu0 0.0
    %1232 = vmatprep.subr.mxu0 0.0
    %1233 = vmatpush1.msra.mxu0 0.0
    %1234 = vmatprep.subr.mxu0 0.0
    %1235 = vmatpush1.msra.mxu0 0.0
    %1236 = vmatprep.subr.mxu0 0.0
    %1237 = vmatpush1.msra.mxu0 0.0
    %1238 = vmatprep.subr.mxu0 0.0
    %1239 = vmatpush1.msra.mxu0 0.0
    %1240 = vmatprep.subr.mxu0 0.0
    %1241 = vmatpush1.msra.mxu0 0.0
    %1242 = vmatprep.subr.mxu0 0.0
    %1243 = vmatpush1.msra.mxu0 0.0
    %1244 = vmatprep.subr.mxu0 0.0
    %1245 = vmatpush1.msra.mxu0 0.0
    %1246 = vmatprep.subr.mxu0 0.0
    %1247 = vmatpush1.msra.mxu0 0.0
    %1248 = vmatprep.subr.mxu0 0.0
    %1249 = vmatpush1.msra.mxu0 0.0
    %1250 = vmatprep.subr.mxu0 0.0
    %1251 = vmatpush1.msra.mxu0 0.0
    %1252 = vmatprep.subr.mxu0 0.0
    %1253 = vmatpush1.msra.mxu0 0.0
    %1254 = vmatprep.subr.mxu0 0.0
    %1255 = vmatpush1.msra.mxu0 0.0
    %1256 = vmatprep.subr.mxu0 0.0
    %1257 = vmatpush1.msra.mxu0 0.0
    %1258 = vmatprep.subr.mxu0 0.0
    %1259 = vmatpush1.msra.mxu0 0.0
    %1260 = vmatprep.subr.mxu0 0.0
    %1261 = vmatpush1.msra.mxu0 0.0
    %1262 = vmatprep.subr.mxu0 0.0
    %1263 = vmatpush1.msra.mxu0 0.0
    %1264 = vmatprep.subr.mxu0 0.0
    %1265 = vmatpush1.msra.mxu0 0.0
    %1266 = vmatprep.subr.mxu0 0.0
    %1267 = vmatpush1.msra.mxu0 0.0
    %1268 = vmatprep.subr.mxu0 0.0
    %1269 = vmatpush1.msra.mxu0 0.0
    %1270 = vmatprep.subr.mxu0 0.0
    %1271 = vmatpush1.msra.mxu0 0.0
    %1272 = vmatprep.subr.mxu0 0.0
    %1273 = vmatpush1.msra.mxu0 0.0
    %1274 = vmatprep.subr.mxu0 0.0
    %1275 = vmatpush1.msra.mxu0 0.0
    %1276 = vmatprep.subr.mxu0 0.0
    %1277 = vmatpush1.msra.mxu0 0.0
    %1278 = vmatprep.subr.mxu0 0.0
    %1279 = vmatpush1.msra.mxu0 0.0
    %1280 = vmatprep.subr.mxu0 0.0
    %1281 = vmatpush1.msra.mxu0 0.0
    %1282 = vmatprep.subr.mxu0 0.0
    %1283 = vmatpush1.msra.mxu0 0.0
    %1284 = vmatprep.mubr.f32.mxu0 0.0
    %1285 = vmatmul.mubr.f32.gmra.mrb[0].mxu0 %v1209
    %v1286 = vpop.f32.mrb[0].mxu0
    %v1287 = vadd.f32 0.0, %v1286
    %v1288 = vpop.f32.mrb[0].mxu0
    %1289 = vmatprep.mubr.f32.mxu0 0.0
    %1290 = vmatmul.mubr.f32.gmra.mrb[0].mxu0 %v1212
    %v1291 = vpop.f32.mrb[0].mxu0
    %v1292 = vadd.f32 0.0, %v1291
    %v1293 = vpop.f32.mrb[0].mxu0
    %1294 = vmatprep.mubr.f32.mxu0 0.0
    %1295 = vmatmul.mubr.f32.gmra.mrb[0].mxu0 %v1215
    %v1296 = vpop.f32.mrb[0].mxu0
    %v1297 = vadd.f32 0.0, %v1296
    %v1298 = vpop.f32.mrb[0].mxu0
    %1299 = vmatprep.mubr.f32.mxu0 0.0
    %1300 = vmatmul.mubr.f32.gmra.mrb[0].mxu0 %v1218
    %v1301 = vpop.f32.mrb[0].mxu0
    %v1302 = vadd.f32 0.0, %v1301
    %v1303 = vpop.f32.mrb[0].mxu0
    %1304 = vdwg.mxu0
    %v1306 = vsel %vm683, %v916, 0
    %v1309 = vsel %vm683, %v921, 0
    %v1312 = vsel %vm683, %v926, 0
    %v1315 = vsel %vm683, %v931, 0
    %1317 = vmatprep.subr.mxu0 0.0
    %1318 = vmatpush1.msra.mxu0 %v391
    %1319 = vmatprep.subr.mxu0 0.0
    %1320 = vmatpush1.msra.mxu0 0.0
    %1321 = vmatprep.subr.mxu0 0.0
    %1322 = vmatpush1.msra.mxu0 0.0
    %1323 = vmatprep.subr.mxu0 0.0
    %1324 = vmatpush1.msra.mxu0 0.0
    %1325 = vmatprep.subr.mxu0 0.0
    %1326 = vmatpush1.msra.mxu0 0.0
    %1327 = vmatprep.subr.mxu0 0.0
    %1328 = vmatpush1.msra.mxu0 0.0
    %1329 = vmatprep.subr.mxu0 0.0
    %1330 = vmatpush1.msra.mxu0 0.0
    %1331 = vmatprep.subr.mxu0 0.0
    %1332 = vmatpush1.msra.mxu0 0.0
    %1333 = vmatprep.subr.mxu0 0.0
    %1334 = vmatpush1.msra.mxu0 0.0
    %1335 = vmatprep.subr.mxu0 0.0
    %1336 = vmatpush1.msra.mxu0 0.0
    %1337 = vmatprep.subr.mxu0 0.0
    %1338 = vmatpush1.msra.mxu0 0.0
    %1339 = vmatprep.subr.mxu0 0.0
    %1340 = vmatpush1.msra.mxu0 0.0
    %1341 = vmatprep.subr.mxu0 0.0
    %1342 = vmatpush1.msra.mxu0 0.0
    %1343 = vmatprep.subr.mxu0 0.0
    %1344 = vmatpush1.msra.mxu0 0.0
    %1345 = vmatprep.subr.mxu0 0.0
    %1346 = vmatpush1.msra.mxu0 0.0
    %1347 = vmatprep.subr.mxu0 0.0
    %1348 = vmatpush1.msra.mxu0 0.0
    %1349 = vmatprep.subr.mxu0 0.0
    %1350 = vmatpush1.msra.mxu0 0.0
    %1351 = vmatprep.subr.mxu0 0.0
    %1352 = vmatpush1.msra.mxu0 0.0
    %1353 = vmatprep.subr.mxu0 0.0
    %1354 = vmatpush1.msra.mxu0 0.0
    %1355 = vmatprep.subr.mxu0 0.0
    %1356 = vmatpush1.msra.mxu0 0.0
    %1357 = vmatprep.subr.mxu0 0.0
    %1358 = vmatpush1.msra.mxu0 0.0
    %1359 = vmatprep.subr.mxu0 0.0
    %1360 = vmatpush1.msra.mxu0 0.0
    %1361 = vmatprep.subr.mxu0 0.0
    %1362 = vmatpush1.msra.mxu0 0.0
    %1363 = vmatprep.subr.mxu0 0.0
    %1364 = vmatpush1.msra.mxu0 0.0
    %1365 = vmatprep.subr.mxu0 0.0
    %1366 = vmatpush1.msra.mxu0 0.0
    %1367 = vmatprep.subr.mxu0 0.0
    %1368 = vmatpush1.msra.mxu0 0.0
    %1369 = vmatprep.subr.mxu0 0.0
    %1370 = vmatpush1.msra.mxu0 0.0
    %1371 = vmatprep.subr.mxu0 0.0
    %1372 = vmatpush1.msra.mxu0 0.0
    %1373 = vmatprep.subr.mxu0 0.0
    %1374 = vmatpush1.msra.mxu0 0.0
    %1375 = vmatprep.subr.mxu0 0.0
    %1376 = vmatpush1.msra.mxu0 0.0
    %1377 = vmatprep.subr.mxu0 0.0
    %1378 = vmatpush1.msra.mxu0 0.0
    %1379 = vmatprep.subr.mxu0 0.0
    %1380 = vmatpush1.msra.mxu0 0.0
    %1381 = vmatprep.mubr.f32.mxu0 0.0
    %1382 = vmatmul.mubr.f32.gmra.mrb[0].mxu0 %v1306
    %v1383 = vpop.f32.mrb[0].mxu0
    %v1384 = vadd.f32 %v1287, %v1383
    %v1385 = vpop.f32.mrb[0].mxu0
    %1386 = vmatprep.mubr.f32.mxu0 0.0
    %1387 = vmatmul.mubr.f32.gmra.mrb[0].mxu0 %v1309
    %v1388 = vpop.f32.mrb[0].mxu0
    %v1389 = vadd.f32 %v1292, %v1388
    %v1390 = vpop.f32.mrb[0].mxu0
    %1391 = vmatprep.mubr.f32.mxu0 0.0
    %1392 = vmatmul.mubr.f32.gmra.mrb[0].mxu0 %v1312
    %v1393 = vpop.f32.mrb[0].mxu0
    %v1394 = vadd.f32 %v1297, %v1393
    %v1395 = vpop.f32.mrb[0].mxu0
    %1396 = vmatprep.mubr.f32.mxu0 0.0
    %1397 = vmatmul.mubr.f32.gmra.mrb[0].mxu0 %v1315
    %v1398 = vpop.f32.mrb[0].mxu0
    %v1399 = vadd.f32 %v1302, %v1398
    %v1400 = vpop.f32.mrb[0].mxu0
    %1401 = vdwg.mxu0
    %1402 = vrot.lane.b32.xlu0 %v481, 112
    %v1403 = vpop.permute.xlu0 %1402
    %1404 = vrot.lane.b32.xlu0 %v486, 112
    %v1405 = vpop.permute.xlu0 %1404
    %1406 = vrot.lane.b32.xlu0 %v491, 112
    %v1407 = vpop.permute.xlu0 %1406
    %1408 = vrot.lane.b32.xlu0 %v496, 112
    %v1409 = vpop.permute.xlu0 %1408
    %1410 = vrot.lane.b32.xlu0 %v573, 112
    %v1411 = vpop.permute.xlu0 %1410
    %1412 = vrot.lane.b32.xlu0 %v578, 112
    %v1413 = vpop.permute.xlu0 %1412
    %1414 = vrot.lane.b32.xlu0 %v583, 112
    %v1415 = vpop.permute.xlu0 %1414
    %1416 = vrot.lane.b32.xlu0 %v588, 112
    %v1417 = vpop.permute.xlu0 %1416
    %v1418 = vsel %vm683, %v1403, 0
    %v1420 = vsel %vm683, %v1405, 0
    %v1422 = vsel %vm683, %v1407, 0
    %v1424 = vsel %vm683, %v1409, 0
    %v1426 = vsel %vm683, %v1411, 0
    %v1428 = vsel %vm683, %v1413, 0
    %v1430 = vsel %vm683, %v1415, 0
    %v1432 = vsel %vm683, %v1417, 0
    %1434 = vmatprep.subr.mxu0 0.0
    %1435 = vmatpush1.xpose.msra.mxu0 %v1426
    %1436 = vmatprep.subr.mxu0 0.0
    %1437 = vmatpush1.xpose.msra.mxu0 %v1428
    %1438 = vmatprep.subr.mxu0 0.0
    %1439 = vmatpush1.xpose.msra.mxu0 %v1430
    %1440 = vmatprep.subr.mxu0 0.0
    %1441 = vmatpush1.xpose.msra.mxu0 %v1432
    %1442 = vmatprep.subr.mxu0 0.0
    %1443 = vmatpush1.xpose.msra.mxu0 0.0
    %1444 = vmatprep.subr.mxu0 0.0
    %1445 = vmatpush1.xpose.msra.mxu0 0.0
    %1446 = vmatprep.subr.mxu0 0.0
    %1447 = vmatpush1.xpose.msra.mxu0 0.0
    %1448 = vmatprep.subr.mxu0 0.0
    %1449 = vmatpush1.xpose.msra.mxu0 0.0
    %1450 = vmatprep.subr.mxu0 0.0
    %1451 = vmatpush1.xpose.msra.mxu0 0.0
    %1452 = vmatprep.subr.mxu0 0.0
    %1453 = vmatpush1.xpose.msra.mxu0 0.0
    %1454 = vmatprep.subr.mxu0 0.0
    %1455 = vmatpush1.xpose.msra.mxu0 0.0
    %1456 = vmatprep.subr.mxu0 0.0
    %1457 = vmatpush1.xpose.msra.mxu0 0.0
    %1458 = vmatprep.subr.mxu0 0.0
    %1459 = vmatpush1.xpose.msra.mxu0 0.0
    %1460 = vmatprep.subr.mxu0 0.0
    %1461 = vmatpush1.xpose.msra.mxu0 0.0
    %1462 = vmatprep.subr.mxu0 0.0
    %1463 = vmatpush1.xpose.msra.mxu0 0.0
    %1464 = vmatprep.subr.mxu0 0.0
    %1465 = vmatpush1.xpose.msra.mxu0 0.0
    %1466 = vmatprep.subr.mxu0 0.0
    %1467 = vmatpush1.xpose.msra.mxu0 0.0
    %1468 = vmatprep.subr.mxu0 0.0
    %1469 = vmatpush1.xpose.msra.mxu0 0.0
    %1470 = vmatprep.subr.mxu0 0.0
    %1471 = vmatpush1.xpose.msra.mxu0 0.0
    %1472 = vmatprep.subr.mxu0 0.0
    %1473 = vmatpush1.xpose.msra.mxu0 0.0
    %1474 = vmatprep.subr.mxu0 0.0
    %1475 = vmatpush1.xpose.msra.mxu0 0.0
    %1476 = vmatprep.subr.mxu0 0.0
    %1477 = vmatpush1.xpose.msra.mxu0 0.0
    %1478 = vmatprep.subr.mxu0 0.0
    %1479 = vmatpush1.xpose.msra.mxu0 0.0
    %1480 = vmatprep.subr.mxu0 0.0
    %1481 = vmatpush1.xpose.msra.mxu0 0.0
    %1482 = vmatprep.subr.mxu0 0.0
    %1483 = vmatpush1.xpose.msra.mxu0 0.0
    %1484 = vmatprep.subr.mxu0 0.0
    %1485 = vmatpush1.xpose.msra.mxu0 0.0
    %1486 = vmatprep.subr.mxu0 0.0
    %1487 = vmatpush1.xpose.msra.mxu0 0.0
    %1488 = vmatprep.subr.mxu0 0.0
    %1489 = vmatpush1.xpose.msra.mxu0 0.0
    %1490 = vmatprep.subr.mxu0 0.0
    %1491 = vmatpush1.xpose.msra.mxu0 0.0
    %1492 = vmatprep.subr.mxu0 0.0
    %1493 = vmatpush1.xpose.msra.mxu0 0.0
    %1494 = vmatprep.subr.mxu0 0.0
    %1495 = vmatpush1.xpose.msra.mxu0 0.0
    %1496 = vmatprep.subr.mxu0 0.0
    %1497 = vmatpush1.xpose.msra.mxu0 0.0
    %1498 = vmatprep.mubr.f32.mxu0 0.0
    %1499 = vmatmul.mubr.f32.gmra.mrb[0].mxu0 %v1418
    %v1500 = vpop.f32.mrb[0].mxu0
    %v1501 = vadd.f32 %v254, %v1500
    %v1502 = vpop.f32.mrb[0].mxu0
    %1503 = vmatprep.mubr.f32.mxu0 0.0
    %1504 = vmatmul.mubr.f32.gmra.mrb[0].mxu0 %v1420
    %v1505 = vpop.f32.mrb[0].mxu0
    %v1506 = vadd.f32 %v255, %v1505
    %v1507 = vpop.f32.mrb[0].mxu0
    %1508 = vmatprep.mubr.f32.mxu0 0.0
    %1509 = vmatmul.mubr.f32.gmra.mrb[0].mxu0 %v1422
    %v1510 = vpop.f32.mrb[0].mxu0
    %v1511 = vadd.f32 %v256, %v1510
    %v1512 = vpop.f32.mrb[0].mxu0
    %1513 = vmatprep.mubr.f32.mxu0 0.0
    %1514 = vmatmul.mubr.f32.gmra.mrb[0].mxu0 %v1424
    %v1515 = vpop.f32.mrb[0].mxu0
    %v1516 = vadd.f32 %v257, %v1515
    %v1517 = vpop.f32.mrb[0].mxu0
    %1518 = vdwg.mxu0
    %v1519 = vsel %vm281, %v1501, -inf
    %1520 = vmax.xlane.f32.xlu0 %v1519
    %v1521 = vpop.xlane.xlu0 %1520
    %v1522 = vsel %vm281, %v1506, -inf
    %1523 = vmax.xlane.f32.xlu0 %v1522
    %v1524 = vpop.xlane.xlu0 %1523
    %v1525 = vsel %vm281, %v1511, -inf
    %1526 = vmax.xlane.f32.xlu0 %v1525
    %v1527 = vpop.xlane.xlu0 %1526
    %v1528 = vsel %vm281, %v1516, -inf
    %1529 = vmax.xlane.f32.xlu0 %v1528
    %v1530 = vpop.xlane.xlu0 %1529
    %v1531 = vsub.f32 %v1501, %v1521
    %v1532 = vsub.f32 %v1506, %v1524
    %v1533 = vsub.f32 %v1511, %v1527
    %v1534 = vsub.f32 %v1516, %v1530
    %v1535 = vmul.f32 %v1531, 1.442695
    %v1536 = vpow.pop %v1535
    %v1537 = vmul.f32 %v1532, 1.442695
    %v1538 = vpow.pop %v1537
    %v1539 = vmul.f32 %v1533, 1.442695
    %v1540 = vpow.pop %v1539
    %v1541 = vmul.f32 %v1534, 1.442695
    %v1542 = vpow.pop %v1541
    %v1543 = vsel %vm281, %v1536, 0.0
    %1544 = vadd.xlane.f32.xlu0 %v1543
    %v1545 = vpop.xlane.xlu0 %1544
    %v1546 = vsel %vm281, %v1538, 0.0
    %1547 = vadd.xlane.f32.xlu0 %v1546
    %v1548 = vpop.xlane.xlu0 %1547
    %v1549 = vsel %vm281, %v1540, 0.0
    %1550 = vadd.xlane.f32.xlu0 %v1549
    %v1551 = vpop.xlane.xlu0 %1550
    %v1552 = vsel %vm281, %v1542, 0.0
    %1553 = vadd.xlane.f32.xlu0 %v1552
    %v1554 = vpop.xlane.xlu0 %1553
    %v1555 = vrcp.pop %v1545
    %v1556 = vrcp.pop %v1548
    %v1557 = vrcp.pop %v1551
    %v1558 = vrcp.pop %v1554
    %v1559 = vmul.f32 %v1536, %v1555
    %v1560 = vmul.f32 %v1538, %v1556
    %v1561 = vmul.f32 %v1540, %v1557
    %v1562 = vmul.f32 %v1542, %v1558
    %1563 = vrot.lane.b32.xlu0 %v665, 112
    %v1564 = vpop.permute.xlu0 %1563
    %1565 = vrot.lane.b32.xlu0 %v670, 112
    %v1566 = vpop.permute.xlu0 %1565
    %1567 = vrot.lane.b32.xlu0 %v675, 112
    %v1568 = vpop.permute.xlu0 %1567
    %1569 = vrot.lane.b32.xlu0 %v680, 112
    %v1570 = vpop.permute.xlu0 %1569
    %v1576 = vsel %vm281, %v1559, 0
    %v1579 = vsel %vm281, %v1560, 0
    %v1582 = vsel %vm281, %v1561, 0
    %v1585 = vsel %vm281, %v1562, 0
    %1587 = vmatprep.subr.mxu0 0.0
    %1588 = vmatpush1.msra.mxu0 %v1564
    %1589 = vmatprep.subr.mxu0 0.0
    %1590 = vmatpush1.msra.mxu0 %v1566
    %1591 = vmatprep.subr.mxu0 0.0
    %1592 = vmatpush1.msra.mxu0 %v1568
    %1593 = vmatprep.subr.mxu0 0.0
    %1594 = vmatpush1.msra.mxu0 %v1570
    %1595 = vmatprep.subr.mxu0 0.0
    %1596 = vmatpush1.msra.mxu0 0.0
    %1597 = vmatprep.subr.mxu0 0.0
    %1598 = vmatpush1.msra.mxu0 0.0
    %1599 = vmatprep.subr.mxu0 0.0
    %1600 = vmatpush1.msra.mxu0 0.0
    %1601 = vmatprep.subr.mxu0 0.0
    %1602 = vmatpush1.msra.mxu0 0.0
    %1603 = vmatprep.subr.mxu0 0.0
    %1604 = vmatpush1.msra.mxu0 0.0
    %1605 = vmatprep.subr.mxu0 0.0
    %1606 = vmatpush1.msra.mxu0 0.0
    %1607 = vmatprep.subr.mxu0 0.0
    %1608 = vmatpush1.msra.mxu0 0.0
    %1609 = vmatprep.subr.mxu0 0.0
    %1610 = vmatpush1.msra.mxu0 0.0
    %1611 = vmatprep.subr.mxu0 0.0
    %1612 = vmatpush1.msra.mxu0 0.0
    %1613 = vmatprep.subr.mxu0 0.0
    %1614 = vmatpush1.msra.mxu0 0.0
    %1615 = vmatprep.subr.mxu0 0.0
    %1616 = vmatpush1.msra.mxu0 0.0
    %1617 = vmatprep.subr.mxu0 0.0
    %1618 = vmatpush1.msra.mxu0 0.0
    %1619 = vmatprep.subr.mxu0 0.0
    %1620 = vmatpush1.msra.mxu0 0.0
    %1621 = vmatprep.subr.mxu0 0.0
    %1622 = vmatpush1.msra.mxu0 0.0
    %1623 = vmatprep.subr.mxu0 0.0
    %1624 = vmatpush1.msra.mxu0 0.0
    %1625 = vmatprep.subr.mxu0 0.0
    %1626 = vmatpush1.msra.mxu0 0.0
    %1627 = vmatprep.subr.mxu0 0.0
    %1628 = vmatpush1.msra.mxu0 0.0
    %1629 = vmatprep.subr.mxu0 0.0
    %1630 = vmatpush1.msra.mxu0 0.0
    %1631 = vmatprep.subr.mxu0 0.0
    %1632 = vmatpush1.msra.mxu0 0.0
    %1633 = vmatprep.subr.mxu0 0.0
    %1634 = vmatpush1.msra.mxu0 0.0
    %1635 = vmatprep.subr.mxu0 0.0
    %1636 = vmatpush1.msra.mxu0 0.0
    %1637 = vmatprep.subr.mxu0 0.0
    %1638 = vmatpush1.msra.mxu0 0.0
    %1639 = vmatprep.subr.mxu0 0.0
    %1640 = vmatpush1.msra.mxu0 0.0
    %1641 = vmatprep.subr.mxu0 0.0
    %1642 = vmatpush1.msra.mxu0 0.0
    %1643 = vmatprep.subr.mxu0 0.0
    %1644 = vmatpush1.msra.mxu0 0.0
    %1645 = vmatprep.subr.mxu0 0.0
    %1646 = vmatpush1.msra.mxu0 0.0
    %1647 = vmatprep.subr.mxu0 0.0
    %1648 = vmatpush1.msra.mxu0 0.0
    %1649 = vmatprep.subr.mxu0 0.0
    %1650 = vmatpush1.msra.mxu0 0.0
    %1651 = vmatprep.mubr.f32.mxu0 0.0
    %1652 = vmatmul.mubr.f32.gmra.mrb[0].mxu0 %v1576
    %v1653 = vpop.f32.mrb[0].mxu0
    %v1654 = vadd.f32 0.0, %v1653
    %v1655 = vpop.f32.mrb[0].mxu0
    %1656 = vmatprep.mubr.f32.mxu0 0.0
    %1657 = vmatmul.mubr.f32.gmra.mrb[0].mxu0 %v1579
    %v1658 = vpop.f32.mrb[0].mxu0
    %v1659 = vadd.f32 0.0, %v1658
    %v1660 = vpop.f32.mrb[0].mxu0
    %1661 = vmatprep.mubr.f32.mxu0 0.0
    %1662 = vmatmul.mubr.f32.gmra.mrb[0].mxu0 %v1582
    %v1663 = vpop.f32.mrb[0].mxu0
    %v1664 = vadd.f32 0.0, %v1663
    %v1665 = vpop.f32.mrb[0].mxu0
    %1666 = vmatprep.mubr.f32.mxu0 0.0
    %1667 = vmatmul.mubr.f32.gmra.mrb[0].mxu0 %v1585
    %v1668 = vpop.f32.mrb[0].mxu0
    %v1669 = vadd.f32 0.0, %v1668
    %v1670 = vpop.f32.mrb[0].mxu0
    %1671 = vdwg.mxu0
    %v1673 = vsel %vm683, %v1654, 0
    %v1676 = vsel %vm683, %v1659, 0
    %v1679 = vsel %vm683, %v1664, 0
    %v1682 = vsel %vm683, %v1669, 0
    %1684 = vmatprep.subr.mxu0 0.0
    %1685 = vmatpush1.msra.mxu0 %v393
    %1686 = vmatprep.subr.mxu0 0.0
    %1687 = vmatpush1.msra.mxu0 0.0
    %1688 = vmatprep.subr.mxu0 0.0
    %1689 = vmatpush1.msra.mxu0 0.0
    %1690 = vmatprep.subr.mxu0 0.0
    %1691 = vmatpush1.msra.mxu0 0.0
    %1692 = vmatprep.subr.mxu0 0.0
    %1693 = vmatpush1.msra.mxu0 0.0
    %1694 = vmatprep.subr.mxu0 0.0
    %1695 = vmatpush1.msra.mxu0 0.0
    %1696 = vmatprep.subr.mxu0 0.0
    %1697 = vmatpush1.msra.mxu0 0.0
    %1698 = vmatprep.subr.mxu0 0.0
    %1699 = vmatpush1.msra.mxu0 0.0
    %1700 = vmatprep.subr.mxu0 0.0
    %1701 = vmatpush1.msra.mxu0 0.0
    %1702 = vmatprep.subr.mxu0 0.0
    %1703 = vmatpush1.msra.mxu0 0.0
    %1704 = vmatprep.subr.mxu0 0.0
    %1705 = vmatpush1.msra.mxu0 0.0
    %1706 = vmatprep.subr.mxu0 0.0
    %1707 = vmatpush1.msra.mxu0 0.0
    %1708 = vmatprep.subr.mxu0 0.0
    %1709 = vmatpush1.msra.mxu0 0.0
    %1710 = vmatprep.subr.mxu0 0.0
    %1711 = vmatpush1.msra.mxu0 0.0
    %1712 = vmatprep.subr.mxu0 0.0
    %1713 = vmatpush1.msra.mxu0 0.0
    %1714 = vmatprep.subr.mxu0 0.0
    %1715 = vmatpush1.msra.mxu0 0.0
    %1716 = vmatprep.subr.mxu0 0.0
    %1717 = vmatpush1.msra.mxu0 0.0
    %1718 = vmatprep.subr.mxu0 0.0
    %1719 = vmatpush1.msra.mxu0 0.0
    %1720 = vmatprep.subr.mxu0 0.0
    %1721 = vmatpush1.msra.mxu0 0.0
    %1722 = vmatprep.subr.mxu0 0.0
    %1723 = vmatpush1.msra.mxu0 0.0
    %1724 = vmatprep.subr.mxu0 0.0
    %1725 = vmatpush1.msra.mxu0 0.0
    %1726 = vmatprep.subr.mxu0 0.0
    %1727 = vmatpush1.msra.mxu0 0.0
    %1728 = vmatprep.subr.mxu0 0.0
    %1729 = vmatpush1.msra.mxu0 0.0
    %1730 = vmatprep.subr.mxu0 0.0
    %1731 = vmatpush1.msra.mxu0 0.0
    %1732 = vmatprep.subr.mxu0 0.0
    %1733 = vmatpush1.msra.mxu0 0.0
    %1734 = vmatprep.subr.mxu0 0.0
    %1735 = vmatpush1.msra.mxu0 0.0
    %1736 = vmatprep.subr.mxu0 0.0
    %1737 = vmatpush1.msra.mxu0 0.0
    %1738 = vmatprep.subr.mxu0 0.0
    %1739 = vmatpush1.msra.mxu0 0.0
    %1740 = vmatprep.subr.mxu0 0.0
    %1741 = vmatpush1.msra.mxu0 0.0
    %1742 = vmatprep.subr.mxu0 0.0
    %1743 = vmatpush1.msra.mxu0 0.0
    %1744 = vmatprep.subr.mxu0 0.0
    %1745 = vmatpush1.msra.mxu0 0.0
    %1746 = vmatprep.subr.mxu0 0.0
    %1747 = vmatpush1.msra.mxu0 0.0
    %1748 = vmatprep.mubr.f32.mxu0 0.0
    %1749 = vmatmul.mubr.f32.gmra.mrb[0].mxu0 %v1673
    %v1750 = vpop.f32.mrb[0].mxu0
    %v1751 = vadd.f32 0.0, %v1750
    %v1752 = vpop.f32.mrb[0].mxu0
    %1753 = vmatprep.mubr.f32.mxu0 0.0
    %1754 = vmatmul.mubr.f32.gmra.mrb[0].mxu0 %v1676
    %v1755 = vpop.f32.mrb[0].mxu0
    %v1756 = vadd.f32 0.0, %v1755
    %v1757 = vpop.f32.mrb[0].mxu0
    %1758 = vmatprep.mubr.f32.mxu0 0.0
    %1759 = vmatmul.mubr.f32.gmra.mrb[0].mxu0 %v1679
    %v1760 = vpop.f32.mrb[0].mxu0
    %v1761 = vadd.f32 0.0, %v1760
    %v1762 = vpop.f32.mrb[0].mxu0
    %1763 = vmatprep.mubr.f32.mxu0 0.0
    %1764 = vmatmul.mubr.f32.gmra.mrb[0].mxu0 %v1682
    %v1765 = vpop.f32.mrb[0].mxu0
    %v1766 = vadd.f32 0.0, %v1765
    %v1767 = vpop.f32.mrb[0].mxu0
    %1768 = vdwg.mxu0
    %v1769 = vadd.f32 %v1384, %v1751
    %v1770 = vadd.f32 %v1389, %v1756
    %v1771 = vadd.f32 %v1394, %v1761
    %v1772 = vadd.f32 %v1399, %v1766
    %1773 = vrot.lane.b32.xlu0 %v481, 104
    %v1774 = vpop.permute.xlu0 %1773
    %1775 = vrot.lane.b32.xlu0 %v486, 104
    %v1776 = vpop.permute.xlu0 %1775
    %1777 = vrot.lane.b32.xlu0 %v491, 104
    %v1778 = vpop.permute.xlu0 %1777
    %1779 = vrot.lane.b32.xlu0 %v496, 104
    %v1780 = vpop.permute.xlu0 %1779
    %1781 = vrot.lane.b32.xlu0 %v573, 104
    %v1782 = vpop.permute.xlu0 %1781
    %1783 = vrot.lane.b32.xlu0 %v578, 104
    %v1784 = vpop.permute.xlu0 %1783
    %1785 = vrot.lane.b32.xlu0 %v583, 104
    %v1786 = vpop.permute.xlu0 %1785
    %1787 = vrot.lane.b32.xlu0 %v588, 104
    %v1788 = vpop.permute.xlu0 %1787
    %v1789 = vsel %vm683, %v1774, 0
    %v1791 = vsel %vm683, %v1776, 0
    %v1793 = vsel %vm683, %v1778, 0
    %v1795 = vsel %vm683, %v1780, 0
    %v1797 = vsel %vm683, %v1782, 0
    %v1799 = vsel %vm683, %v1784, 0
    %v1801 = vsel %vm683, %v1786, 0
    %v1803 = vsel %vm683, %v1788, 0
    %1805 = vmatprep.subr.mxu0 0.0
    %1806 = vmatpush1.xpose.msra.mxu0 %v1797
    %1807 = vmatprep.subr.mxu0 0.0
    %1808 = vmatpush1.xpose.msra.mxu0 %v1799
    %1809 = vmatprep.subr.mxu0 0.0
    %1810 = vmatpush1.xpose.msra.mxu0 %v1801
    %1811 = vmatprep.subr.mxu0 0.0
    %1812 = vmatpush1.xpose.msra.mxu0 %v1803
    %1813 = vmatprep.subr.mxu0 0.0
    %1814 = vmatpush1.xpose.msra.mxu0 0.0
    %1815 = vmatprep.subr.mxu0 0.0
    %1816 = vmatpush1.xpose.msra.mxu0 0.0
    %1817 = vmatprep.subr.mxu0 0.0
    %1818 = vmatpush1.xpose.msra.mxu0 0.0
    %1819 = vmatprep.subr.mxu0 0.0
    %1820 = vmatpush1.xpose.msra.mxu0 0.0
    %1821 = vmatprep.subr.mxu0 0.0
    %1822 = vmatpush1.xpose.msra.mxu0 0.0
    %1823 = vmatprep.subr.mxu0 0.0
    %1824 = vmatpush1.xpose.msra.mxu0 0.0
    %1825 = vmatprep.subr.mxu0 0.0
    %1826 = vmatpush1.xpose.msra.mxu0 0.0
    %1827 = vmatprep.subr.mxu0 0.0
    %1828 = vmatpush1.xpose.msra.mxu0 0.0
    %1829 = vmatprep.subr.mxu0 0.0
    %1830 = vmatpush1.xpose.msra.mxu0 0.0
    %1831 = vmatprep.subr.mxu0 0.0
    %1832 = vmatpush1.xpose.msra.mxu0 0.0
    %1833 = vmatprep.subr.mxu0 0.0
    %1834 = vmatpush1.xpose.msra.mxu0 0.0
    %1835 = vmatprep.subr.mxu0 0.0
    %1836 = vmatpush1.xpose.msra.mxu0 0.0
    %1837 = vmatprep.subr.mxu0 0.0
    %1838 = vmatpush1.xpose.msra.mxu0 0.0
    %1839 = vmatprep.subr.mxu0 0.0
    %1840 = vmatpush1.xpose.msra.mxu0 0.0
    %1841 = vmatprep.subr.mxu0 0.0
    %1842 = vmatpush1.xpose.msra.mxu0 0.0
    %1843 = vmatprep.subr.mxu0 0.0
    %1844 = vmatpush1.xpose.msra.mxu0 0.0
    %1845 = vmatprep.subr.mxu0 0.0
    %1846 = vmatpush1.xpose.msra.mxu0 0.0
    %1847 = vmatprep.subr.mxu0 0.0
    %1848 = vmatpush1.xpose.msra.mxu0 0.0
    %1849 = vmatprep.subr.mxu0 0.0
    %1850 = vmatpush1.xpose.msra.mxu0 0.0
    %1851 = vmatprep.subr.mxu0 0.0
    %1852 = vmatpush1.xpose.msra.mxu0 0.0
    %1853 = vmatprep.subr.mxu0 0.0
    %1854 = vmatpush1.xpose.msra.mxu0 0.0
    %1855 = vmatprep.subr.mxu0 0.0
    %1856 = vmatpush1.xpose.msra.mxu0 0.0
    %1857 = vmatprep.subr.mxu0 0.0
    %1858 = vmatpush1.xpose.msra.mxu0 0.0
    %1859 = vmatprep.subr.mxu0 0.0
    %1860 = vmatpush1.xpose.msra.mxu0 0.0
    %1861 = vmatprep.subr.mxu0 0.0
    %1862 = vmatpush1.xpose.msra.mxu0 0.0
    %1863 = vmatprep.subr.mxu0 0.0
    %1864 = vmatpush1.xpose.msra.mxu0 0.0
    %1865 = vmatprep.subr.mxu0 0.0
    %1866 = vmatpush1.xpose.msra.mxu0 0.0
    %1867 = vmatprep.subr.mxu0 0.0
    %1868 = vmatpush1.xpose.msra.mxu0 0.0
    %1869 = vmatprep.mubr.f32.mxu0 0.0
    %1870 = vmatmul.mubr.f32.gmra.mrb[0].mxu0 %v1789
    %v1871 = vpop.f32.mrb[0].mxu0
    %v1872 = vadd.f32 %v254, %v1871
    %v1873 = vpop.f32.mrb[0].mxu0
    %1874 = vmatprep.mubr.f32.mxu0 0.0
    %1875 = vmatmul.mubr.f32.gmra.mrb[0].mxu0 %v1791
    %v1876 = vpop.f32.mrb[0].mxu0
    %v1877 = vadd.f32 %v255, %v1876
    %v1878 = vpop.f32.mrb[0].mxu0
    %1879 = vmatprep.mubr.f32.mxu0 0.0
    %1880 = vmatmul.mubr.f32.gmra.mrb[0].mxu0 %v1793
    %v1881 = vpop.f32.mrb[0].mxu0
    %v1882 = vadd.f32 %v256, %v1881
    %v1883 = vpop.f32.mrb[0].mxu0
    %1884 = vmatprep.mubr.f32.mxu0 0.0
    %1885 = vmatmul.mubr.f32.gmra.mrb[0].mxu0 %v1795
    %v1886 = vpop.f32.mrb[0].mxu0
    %v1887 = vadd.f32 %v257, %v1886
    %v1888 = vpop.f32.mrb[0].mxu0
    %1889 = vdwg.mxu0
    %v1890 = vsel %vm281, %v1872, -inf
    %1891 = vmax.xlane.f32.xlu0 %v1890
    %v1892 = vpop.xlane.xlu0 %1891
    %v1893 = vsel %vm281, %v1877, -inf
    %1894 = vmax.xlane.f32.xlu0 %v1893
    %v1895 = vpop.xlane.xlu0 %1894
    %v1896 = vsel %vm281, %v1882, -inf
    %1897 = vmax.xlane.f32.xlu0 %v1896
    %v1898 = vpop.xlane.xlu0 %1897
    %v1899 = vsel %vm281, %v1887, -inf
    %1900 = vmax.xlane.f32.xlu0 %v1899
    %v1901 = vpop.xlane.xlu0 %1900
    %v1902 = vsub.f32 %v1872, %v1892
    %v1903 = vsub.f32 %v1877, %v1895
    %v1904 = vsub.f32 %v1882, %v1898
    %v1905 = vsub.f32 %v1887, %v1901
    %v1906 = vmul.f32 %v1902, 1.442695
    %v1907 = vpow.pop %v1906
    %v1908 = vmul.f32 %v1903, 1.442695
    %v1909 = vpow.pop %v1908
    %v1910 = vmul.f32 %v1904, 1.442695
    %v1911 = vpow.pop %v1910
    %v1912 = vmul.f32 %v1905, 1.442695
    %v1913 = vpow.pop %v1912
    %v1914 = vsel %vm281, %v1907, 0.0
    %1915 = vadd.xlane.f32.xlu0 %v1914
    %v1916 = vpop.xlane.xlu0 %1915
    %v1917 = vsel %vm281, %v1909, 0.0
    %1918 = vadd.xlane.f32.xlu0 %v1917
    %v1919 = vpop.xlane.xlu0 %1918
    %v1920 = vsel %vm281, %v1911, 0.0
    %1921 = vadd.xlane.f32.xlu0 %v1920
    %v1922 = vpop.xlane.xlu0 %1921
    %v1923 = vsel %vm281, %v1913, 0.0
    %1924 = vadd.xlane.f32.xlu0 %v1923
    %v1925 = vpop.xlane.xlu0 %1924
    %v1926 = vrcp.pop %v1916
    %v1927 = vrcp.pop %v1919
    %v1928 = vrcp.pop %v1922
    %v1929 = vrcp.pop %v1925
    %v1930 = vmul.f32 %v1907, %v1926
    %v1931 = vmul.f32 %v1909, %v1927
    %v1932 = vmul.f32 %v1911, %v1928
    %v1933 = vmul.f32 %v1913, %v1929
    %1934 = vrot.lane.b32.xlu0 %v665, 104
    %v1935 = vpop.permute.xlu0 %1934
    %1936 = vrot.lane.b32.xlu0 %v670, 104
    %v1937 = vpop.permute.xlu0 %1936
    %1938 = vrot.lane.b32.xlu0 %v675, 104
    %v1939 = vpop.permute.xlu0 %1938
    %1940 = vrot.lane.b32.xlu0 %v680, 104
    %v1941 = vpop.permute.xlu0 %1940
    %v1947 = vsel %vm281, %v1930, 0
    %v1950 = vsel %vm281, %v1931, 0
    %v1953 = vsel %vm281, %v1932, 0
    %v1956 = vsel %vm281, %v1933, 0
    %1958 = vmatprep.subr.mxu0 0.0
    %1959 = vmatpush1.msra.mxu0 %v1935
    %1960 = vmatprep.subr.mxu0 0.0
    %1961 = vmatpush1.msra.mxu0 %v1937
    %1962 = vmatprep.subr.mxu0 0.0
    %1963 = vmatpush1.msra.mxu0 %v1939
    %1964 = vmatprep.subr.mxu0 0.0
    %1965 = vmatpush1.msra.mxu0 %v1941
    %1966 = vmatprep.subr.mxu0 0.0
    %1967 = vmatpush1.msra.mxu0 0.0
    %1968 = vmatprep.subr.mxu0 0.0
    %1969 = vmatpush1.msra.mxu0 0.0
    %1970 = vmatprep.subr.mxu0 0.0
    %1971 = vmatpush1.msra.mxu0 0.0
    %1972 = vmatprep.subr.mxu0 0.0
    %1973 = vmatpush1.msra.mxu0 0.0
    %1974 = vmatprep.subr.mxu0 0.0
    %1975 = vmatpush1.msra.mxu0 0.0
    %1976 = vmatprep.subr.mxu0 0.0
    %1977 = vmatpush1.msra.mxu0 0.0
    %1978 = vmatprep.subr.mxu0 0.0
    %1979 = vmatpush1.msra.mxu0 0.0
    %1980 = vmatprep.subr.mxu0 0.0
    %1981 = vmatpush1.msra.mxu0 0.0
    %1982 = vmatprep.subr.mxu0 0.0
    %1983 = vmatpush1.msra.mxu0 0.0
    %1984 = vmatprep.subr.mxu0 0.0
    %1985 = vmatpush1.msra.mxu0 0.0
    %1986 = vmatprep.subr.mxu0 0.0
    %1987 = vmatpush1.msra.mxu0 0.0
    %1988 = vmatprep.subr.mxu0 0.0
    %1989 = vmatpush1.msra.mxu0 0.0
    %1990 = vmatprep.subr.mxu0 0.0
    %1991 = vmatpush1.msra.mxu0 0.0
    %1992 = vmatprep.subr.mxu0 0.0
    %1993 = vmatpush1.msra.mxu0 0.0
    %1994 = vmatprep.subr.mxu0 0.0
    %1995 = vmatpush1.msra.mxu0 0.0
    %1996 = vmatprep.subr.mxu0 0.0
    %1997 = vmatpush1.msra.mxu0 0.0
    %1998 = vmatprep.subr.mxu0 0.0
    %1999 = vmatpush1.msra.mxu0 0.0
    %2000 = vmatprep.subr.mxu0 0.0
    %2001 = vmatpush1.msra.mxu0 0.0
    %2002 = vmatprep.subr.mxu0 0.0
    %2003 = vmatpush1.msra.mxu0 0.0
    %2004 = vmatprep.subr.mxu0 0.0
    %2005 = vmatpush1.msra.mxu0 0.0
    %2006 = vmatprep.subr.mxu0 0.0
    %2007 = vmatpush1.msra.mxu0 0.0
    %2008 = vmatprep.subr.mxu0 0.0
    %2009 = vmatpush1.msra.mxu0 0.0
    %2010 = vmatprep.subr.mxu0 0.0
    %2011 = vmatpush1.msra.mxu0 0.0
    %2012 = vmatprep.subr.mxu0 0.0
    %2013 = vmatpush1.msra.mxu0 0.0
    %2014 = vmatprep.subr.mxu0 0.0
    %2015 = vmatpush1.msra.mxu0 0.0
    %2016 = vmatprep.subr.mxu0 0.0
    %2017 = vmatpush1.msra.mxu0 0.0
    %2018 = vmatprep.subr.mxu0 0.0
    %2019 = vmatpush1.msra.mxu0 0.0
    %2020 = vmatprep.subr.mxu0 0.0
    %2021 = vmatpush1.msra.mxu0 0.0
    %2022 = vmatprep.mubr.f32.mxu0 0.0
    %2023 = vmatmul.mubr.f32.gmra.mrb[0].mxu0 %v1947
    %v2024 = vpop.f32.mrb[0].mxu0
    %v2025 = vadd.f32 0.0, %v2024
    %v2026 = vpop.f32.mrb[0].mxu0
    %2027 = vmatprep.mubr.f32.mxu0 0.0
    %2028 = vmatmul.mubr.f32.gmra.mrb[0].mxu0 %v1950
    %v2029 = vpop.f32.mrb[0].mxu0
    %v2030 = vadd.f32 0.0, %v2029
    %v2031 = vpop.f32.mrb[0].mxu0
    %2032 = vmatprep.mubr.f32.mxu0 0.0
    %2033 = vmatmul.mubr.f32.gmra.mrb[0].mxu0 %v1953
    %v2034 = vpop.f32.mrb[0].mxu0
    %v2035 = vadd.f32 0.0, %v2034
    %v2036 = vpop.f32.mrb[0].mxu0
    %2037 = vmatprep.mubr.f32.mxu0 0.0
    %2038 = vmatmul.mubr.f32.gmra.mrb[0].mxu0 %v1956
    %v2039 = vpop.f32.mrb[0].mxu0
    %v2040 = vadd.f32 0.0, %v2039
    %v2041 = vpop.f32.mrb[0].mxu0
    %2042 = vdwg.mxu0
    %v2044 = vsel %vm683, %v2025, 0
    %v2047 = vsel %vm683, %v2030, 0
    %v2050 = vsel %vm683, %v2035, 0
    %v2053 = vsel %vm683, %v2040, 0
    %2055 = vmatprep.subr.mxu0 0.0
    %2056 = vmatpush1.msra.mxu0 %v394
    %2057 = vmatprep.subr.mxu0 0.0
    %2058 = vmatpush1.msra.mxu0 0.0
    %2059 = vmatprep.subr.mxu0 0.0
    %2060 = vmatpush1.msra.mxu0 0.0
    %2061 = vmatprep.subr.mxu0 0.0
    %2062 = vmatpush1.msra.mxu0 0.0
    %2063 = vmatprep.subr.mxu0 0.0
    %2064 = vmatpush1.msra.mxu0 0.0
    %2065 = vmatprep.subr.mxu0 0.0
    %2066 = vmatpush1.msra.mxu0 0.0
    %2067 = vmatprep.subr.mxu0 0.0
    %2068 = vmatpush1.msra.mxu0 0.0
    %2069 = vmatprep.subr.mxu0 0.0
    %2070 = vmatpush1.msra.mxu0 0.0
    %2071 = vmatprep.subr.mxu0 0.0
    %2072 = vmatpush1.msra.mxu0 0.0
    %2073 = vmatprep.subr.mxu0 0.0
    %2074 = vmatpush1.msra.mxu0 0.0
    %2075 = vmatprep.subr.mxu0 0.0
    %2076 = vmatpush1.msra.mxu0 0.0
    %2077 = vmatprep.subr.mxu0 0.0
    %2078 = vmatpush1.msra.mxu0 0.0
    %2079 = vmatprep.subr.mxu0 0.0
    %2080 = vmatpush1.msra.mxu0 0.0
    %2081 = vmatprep.subr.mxu0 0.0
    %2082 = vmatpush1.msra.mxu0 0.0
    %2083 = vmatprep.subr.mxu0 0.0
    %2084 = vmatpush1.msra.mxu0 0.0
    %2085 = vmatprep.subr.mxu0 0.0
    %2086 = vmatpush1.msra.mxu0 0.0
    %2087 = vmatprep.subr.mxu0 0.0
    %2088 = vmatpush1.msra.mxu0 0.0
    %2089 = vmatprep.subr.mxu0 0.0
    %2090 = vmatpush1.msra.mxu0 0.0
    %2091 = vmatprep.subr.mxu0 0.0
    %2092 = vmatpush1.msra.mxu0 0.0
    %2093 = vmatprep.subr.mxu0 0.0
    %2094 = vmatpush1.msra.mxu0 0.0
    %2095 = vmatprep.subr.mxu0 0.0
    %2096 = vmatpush1.msra.mxu0 0.0
    %2097 = vmatprep.subr.mxu0 0.0
    %2098 = vmatpush1.msra.mxu0 0.0
    %2099 = vmatprep.subr.mxu0 0.0
    %2100 = vmatpush1.msra.mxu0 0.0
    %2101 = vmatprep.subr.mxu0 0.0
    %2102 = vmatpush1.msra.mxu0 0.0
    %2103 = vmatprep.subr.mxu0 0.0
    %2104 = vmatpush1.msra.mxu0 0.0
    %2105 = vmatprep.subr.mxu0 0.0
    %2106 = vmatpush1.msra.mxu0 0.0
    %2107 = vmatprep.subr.mxu0 0.0
    %2108 = vmatpush1.msra.mxu0 0.0
    %2109 = vmatprep.subr.mxu0 0.0
    %2110 = vmatpush1.msra.mxu0 0.0
    %2111 = vmatprep.subr.mxu0 0.0
    %2112 = vmatpush1.msra.mxu0 0.0
    %2113 = vmatprep.subr.mxu0 0.0
    %2114 = vmatpush1.msra.mxu0 0.0
    %2115 = vmatprep.subr.mxu0 0.0
    %2116 = vmatpush1.msra.mxu0 0.0
    %2117 = vmatprep.subr.mxu0 0.0
    %2118 = vmatpush1.msra.mxu0 0.0
    %2119 = vmatprep.mubr.f32.mxu0 0.0
    %2120 = vmatmul.mubr.f32.gmra.mrb[0].mxu0 %v2044
    %v2121 = vpop.f32.mrb[0].mxu0
    %v2122 = vadd.f32 0.0, %v2121
    %v2123 = vpop.f32.mrb[0].mxu0
    %2124 = vmatprep.mubr.f32.mxu0 0.0
    %2125 = vmatmul.mubr.f32.gmra.mrb[0].mxu0 %v2047
    %v2126 = vpop.f32.mrb[0].mxu0
    %v2127 = vadd.f32 0.0, %v2126
    %v2128 = vpop.f32.mrb[0].mxu0
    %2129 = vmatprep.mubr.f32.mxu0 0.0
    %2130 = vmatmul.mubr.f32.gmra.mrb[0].mxu0 %v2050
    %v2131 = vpop.f32.mrb[0].mxu0
    %v2132 = vadd.f32 0.0, %v2131
    %v2133 = vpop.f32.mrb[0].mxu0
    %2134 = vmatprep.mubr.f32.mxu0 0.0
    %2135 = vmatmul.mubr.f32.gmra.mrb[0].mxu0 %v2053
    %v2136 = vpop.f32.mrb[0].mxu0
    %v2137 = vadd.f32 0.0, %v2136
    %v2138 = vpop.f32.mrb[0].mxu0
    %2139 = vdwg.mxu0
    %v2140 = vadd.f32 %v1769, %v2122
    %v2141 = vadd.f32 %v1770, %v2127
    %v2142 = vadd.f32 %v1771, %v2132
    %v2143 = vadd.f32 %v1772, %v2137
    %v2144 = vld [vmem:[#allocation10] sm:$0x1]
    %v2146 = vlaneseq
    %v2147 = vshrl.u32 %v2146, 7
    %v2148 = vsub.s32 0, %v2147
    %v2149 = vrot.slane %v2144, %v2148
    %v2151 = vadd.f32 %v2140, %v2149
    %v2152 = vadd.f32 %v2141, %v2149
    %v2153 = vadd.f32 %v2142, %v2149
    %v2154 = vadd.f32 %v2143, %v2149
    %v2155 = vadd.f32 %v361, %v2151
    %v2156 = vadd.f32 %v366, %v2152
    %v2157 = vadd.f32 %v371, %v2153
    %v2158 = vadd.f32 %v376, %v2154
    %v2159 = vld [vmem:[#allocation14] sm:$0x1]
    %v2160 = vld [vmem:[#allocation16] sm:$0x1]
    %v2161 = vsel %vm281, %v2155, 0.0
    %2162 = vadd.xlane.f32.xlu0 %v2161
    %v2163 = vpop.xlane.xlu0 %2162
    %v2164 = vsel %vm281, %v2156, 0.0
    %2165 = vadd.xlane.f32.xlu0 %v2164
    %v2166 = vpop.xlane.xlu0 %2165
    %v2167 = vsel %vm281, %v2157, 0.0
    %2168 = vadd.xlane.f32.xlu0 %v2167
    %v2169 = vpop.xlane.xlu0 %2168
    %v2170 = vsel %vm281, %v2158, 0.0
    %2171 = vadd.xlane.f32.xlu0 %v2170
    %v2172 = vpop.xlane.xlu0 %2171
    %v2173 = vrcp.pop 32.0
    %v2174 = vmul.f32 %v2163, %v2173
    %v2175 = vmul.f32 %v2166, %v2173
    %v2176 = vmul.f32 %v2169, %v2173
    %v2177 = vmul.f32 %v2172, %v2173
    %v2178 = vsub.f32 %v2155, %v2174
    %v2179 = vsub.f32 %v2156, %v2175
    %v2180 = vsub.f32 %v2157, %v2176
    %v2181 = vsub.f32 %v2158, %v2177
    %v2182 = vmul.f32 %v2178, %v2178
    %v2183 = vmul.f32 %v2179, %v2179
    %v2184 = vmul.f32 %v2180, %v2180
    %v2185 = vmul.f32 %v2181, %v2181
    %v2186 = vsel %vm281, %v2182, 0.0
    %2187 = vadd.xlane.f32.xlu0 %v2186
    %v2188 = vpop.xlane.xlu0 %2187
    %v2189 = vsel %vm281, %v2183, 0.0
    %2190 = vadd.xlane.f32.xlu0 %v2189
    %v2191 = vpop.xlane.xlu0 %2190
    %v2192 = vsel %vm281, %v2184, 0.0
    %2193 = vadd.xlane.f32.xlu0 %v2192
    %v2194 = vpop.xlane.xlu0 %2193
    %v2195 = vsel %vm281, %v2185, 0.0
    %2196 = vadd.xlane.f32.xlu0 %v2195
    %v2197 = vpop.xlane.xlu0 %2196
    %v2198 = vmul.f32 %v2188, %v2173
    %v2199 = vmul.f32 %v2191, %v2173
    %v2200 = vmul.f32 %v2194, %v2173
    %v2201 = vmul.f32 %v2197, %v2173
    %v2202 = vadd.f32 %v2198, 1e-05
    %v2203 = vadd.f32 %v2199, 1e-05
    %v2204 = vadd.f32 %v2200, 1e-05
    %v2205 = vadd.f32 %v2201, 1e-05
    %v2206 = vrsqrt.pop %v2202
    %v2207 = vrsqrt.pop %v2203
    %v2208 = vrsqrt.pop %v2204
    %v2209 = vrsqrt.pop %v2205
    %v2210 = vmul.f32 %v2178, %v2206
    %v2211 = vmul.f32 %v2179, %v2207
    %v2212 = vmul.f32 %v2180, %v2208
    %v2213 = vmul.f32 %v2181, %v2209
    %v2215 = vlaneseq
    %v2216 = vshrl.u32 %v2215, 7
    %v2217 = vsub.s32 0, %v2216
    %v2218 = vrot.slane %v2159, %v2217
    %v2220 = vmul.f32 %v2210, %v2218
    %v2221 = vmul.f32 %v2211, %v2218
    %v2222 = vmul.f32 %v2212, %v2218
    %v2223 = vmul.f32 %v2213, %v2218
    %v2225 = vlaneseq
    %v2226 = vshrl.u32 %v2225, 7
    %v2227 = vsub.s32 0, %v2226
    %v2228 = vrot.slane %v2160, %v2227
    %v2230 = vadd.f32 %v2220, %v2228
    %v2231 = vadd.f32 %v2221, %v2228
    %v2232 = vadd.f32 %v2222, %v2228
    %v2233 = vadd.f32 %v2223, %v2228
    %v2234 = vld [vmem:[%s13] sm:$0xff]
    %v2235 = vld [vmem:[%s13 + $0x8] sm:$0xff]
    %v2236 = vld [vmem:[%s13 + $0x10] sm:$0xff]
    %v2237 = vld [vmem:[%s13 + $0x18] sm:$0xff]
    %v2238 = vld [vmem:[#allocation11] sm:$0x1]
    %v2240 = vlaneseq
    %v2241 = vshrl.u32 %v2240, 7
    %v2242 = vsub.s32 0, %v2241
    %v2243 = vrot.slane %v2238, %v2242
    %v2246 = vsel %vm281, %v2230, 0
    %v2249 = vsel %vm281, %v2231, 0
    %v2252 = vsel %vm281, %v2232, 0
    %v2255 = vsel %vm281, %v2233, 0
    %2257 = vmatprep.subr.mxu0 0.0
    %2258 = vmatpush1.msra.mxu0 %v2234
    %2259 = vmatprep.subr.mxu0 0.0
    %2260 = vmatpush1.msra.mxu0 %v2235
    %2261 = vmatprep.subr.mxu0 0.0
    %2262 = vmatpush1.msra.mxu0 %v2236
    %2263 = vmatprep.subr.mxu0 0.0
    %2264 = vmatpush1.msra.mxu0 %v2237
    %2265 = vmatprep.subr.mxu0 0.0
    %2266 = vmatpush1.msra.mxu0 0.0
    %2267 = vmatprep.subr.mxu0 0.0
    %2268 = vmatpush1.msra.mxu0 0.0
    %2269 = vmatprep.subr.mxu0 0.0
    %2270 = vmatpush1.msra.mxu0 0.0
    %2271 = vmatprep.subr.mxu0 0.0
    %2272 = vmatpush1.msra.mxu0 0.0
    %2273 = vmatprep.subr.mxu0 0.0
    %2274 = vmatpush1.msra.mxu0 0.0
    %2275 = vmatprep.subr.mxu0 0.0
    %2276 = vmatpush1.msra.mxu0 0.0
    %2277 = vmatprep.subr.mxu0 0.0
    %2278 = vmatpush1.msra.mxu0 0.0
    %2279 = vmatprep.subr.mxu0 0.0
    %2280 = vmatpush1.msra.mxu0 0.0
    %2281 = vmatprep.subr.mxu0 0.0
    %2282 = vmatpush1.msra.mxu0 0.0
    %2283 = vmatprep.subr.mxu0 0.0
    %2284 = vmatpush1.msra.mxu0 0.0
    %2285 = vmatprep.subr.mxu0 0.0
    %2286 = vmatpush1.msra.mxu0 0.0
    %2287 = vmatprep.subr.mxu0 0.0
    %2288 = vmatpush1.msra.mxu0 0.0
    %2289 = vmatprep.subr.mxu0 0.0
    %2290 = vmatpush1.msra.mxu0 0.0
    %2291 = vmatprep.subr.mxu0 0.0
    %2292 = vmatpush1.msra.mxu0 0.0
    %2293 = vmatprep.subr.mxu0 0.0
    %2294 = vmatpush1.msra.mxu0 0.0
    %2295 = vmatprep.subr.mxu0 0.0
    %2296 = vmatpush1.msra.mxu0 0.0
    %2297 = vmatprep.subr.mxu0 0.0
    %2298 = vmatpush1.msra.mxu0 0.0
    %2299 = vmatprep.subr.mxu0 0.0
    %2300 = vmatpush1.msra.mxu0 0.0
    %2301 = vmatprep.subr.mxu0 0.0
    %2302 = vmatpush1.msra.mxu0 0.0
    %2303 = vmatprep.subr.mxu0 0.0
    %2304 = vmatpush1.msra.mxu0 0.0
    %2305 = vmatprep.subr.mxu0 0.0
    %2306 = vmatpush1.msra.mxu0 0.0
    %2307 = vmatprep.subr.mxu0 0.0
    %2308 = vmatpush1.msra.mxu0 0.0
    %2309 = vmatprep.subr.mxu0 0.0
    %2310 = vmatpush1.msra.mxu0 0.0
    %2311 = vmatprep.subr.mxu0 0.0
    %2312 = vmatpush1.msra.mxu0 0.0
    %2313 = vmatprep.subr.mxu0 0.0
    %2314 = vmatpush1.msra.mxu0 0.0
    %2315 = vmatprep.subr.mxu0 0.0
    %2316 = vmatpush1.msra.mxu0 0.0
    %2317 = vmatprep.subr.mxu0 0.0
    %2318 = vmatpush1.msra.mxu0 0.0
    %2319 = vmatprep.subr.mxu0 0.0
    %2320 = vmatpush1.msra.mxu0 0.0
    %2321 = vmatprep.mubr.f32.mxu0 0.0
    %2322 = vmatmul.mubr.f32.gmra.mrb[0].mxu0 %v2246
    %v2323 = vpop.f32.mrb[0].mxu0
    %v2324 = vadd.f32 %v2243, %v2323
    %v2325 = vpop.f32.mrb[0].mxu0
    %2326 = vmatprep.mubr.f32.mxu0 0.0
    %2327 = vmatmul.mubr.f32.gmra.mrb[0].mxu0 %v2249
    %v2328 = vpop.f32.mrb[0].mxu0
    %v2329 = vadd.f32 %v2243, %v2328
    %v2330 = vpop.f32.mrb[0].mxu0
    %2331 = vmatprep.mubr.f32.mxu0 0.0
    %2332 = vmatmul.mubr.f32.gmra.mrb[0].mxu0 %v2252
    %v2333 = vpop.f32.mrb[0].mxu0
    %v2334 = vadd.f32 %v2243, %v2333
    %v2335 = vpop.f32.mrb[0].mxu0
    %2336 = vmatprep.mubr.f32.mxu0 0.0
    %2337 = vmatmul.mubr.f32.gmra.mrb[0].mxu0 %v2255
    %v2338 = vpop.f32.mrb[0].mxu0
    %v2339 = vadd.f32 %v2243, %v2338
    %v2340 = vpop.f32.mrb[0].mxu0
    %2341 = vdwg.mxu0
    %v2342 = vmax.f32 %v2324, 0.0
    %v2343 = vmax.f32 %v2329, 0.0
    %v2344 = vmax.f32 %v2334, 0.0
    %v2345 = vmax.f32 %v2339, 0.0
    %v2346 = vld [vmem:[%s15] sm:$0xff]
    %v2347 = vld [vmem:[%s15 + $0x8] sm:$0xff]
    %v2348 = vld [vmem:[%s15 + $0x10] sm:$0xff]
    %v2349 = vld [vmem:[%s15 + $0x18] sm:$0xff]
    %v2350 = vld [vmem:[%s15 + $0x20] sm:$0xff]
    %v2351 = vld [vmem:[%s15 + $0x28] sm:$0xff]
    %v2352 = vld [vmem:[%s15 + $0x30] sm:$0xff]
    %v2353 = vld [vmem:[%s15 + $0x38] sm:$0xff]
    %v2354 = vld [vmem:[%s15 + $0x40] sm:$0xff]
    %v2355 = vld [vmem:[%s15 + $0x48] sm:$0xff]
    %v2356 = vld [vmem:[%s15 + $0x50] sm:$0xff]
    %v2357 = vld [vmem:[%s15 + $0x58] sm:$0xff]
    %v2358 = vld [vmem:[%s15 + $0x60] sm:$0xff]
    %v2359 = vld [vmem:[%s15 + $0x68] sm:$0xff]
    %v2360 = vld [vmem:[%s15 + $0x70] sm:$0xff]
    %v2361 = vld [vmem:[%s15 + $0x78] sm:$0xff]
    %v2362 = vld [vmem:[#allocation13] sm:$0x1]
    %v2364 = vlaneseq
    %v2365 = vshrl.u32 %v2364, 7
    %v2366 = vsub.s32 0, %v2365
    %v2367 = vrot.slane %v2362, %v2366
    %2369 = vmatprep.subr.mxu0 0.0
    %2370 = vmatpush1.msra.mxu0 %v2346
    %2371 = vmatprep.subr.mxu0 0.0
    %2372 = vmatpush1.msra.mxu0 %v2347
    %2373 = vmatprep.subr.mxu0 0.0
    %2374 = vmatpush1.msra.mxu0 %v2348
    %2375 = vmatprep.subr.mxu0 0.0
    %2376 = vmatpush1.msra.mxu0 %v2349
    %2377 = vmatprep.subr.mxu0 0.0
    %2378 = vmatpush1.msra.mxu0 %v2350
    %2379 = vmatprep.subr.mxu0 0.0
    %2380 = vmatpush1.msra.mxu0 %v2351
    %2381 = vmatprep.subr.mxu0 0.0
    %2382 = vmatpush1.msra.mxu0 %v2352
    %2383 = vmatprep.subr.mxu0 0.0
    %2384 = vmatpush1.msra.mxu0 %v2353
    %2385 = vmatprep.subr.mxu0 0.0
    %2386 = vmatpush1.msra.mxu0 %v2354
    %2387 = vmatprep.subr.mxu0 0.0
    %2388 = vmatpush1.msra.mxu0 %v2355
    %2389 = vmatprep.subr.mxu0 0.0
    %2390 = vmatpush1.msra.mxu0 %v2356
    %2391 = vmatprep.subr.mxu0 0.0
    %2392 = vmatpush1.msra.mxu0 %v2357
    %2393 = vmatprep.subr.mxu0 0.0
    %2394 = vmatpush1.msra.mxu0 %v2358
    %2395 = vmatprep.subr.mxu0 0.0
    %2396 = vmatpush1.msra.mxu0 %v2359
    %2397 = vmatprep.subr.mxu0 0.0
    %2398 = vmatpush1.msra.mxu0 %v2360
    %2399 = vmatprep.subr.mxu0 0.0
    %2400 = vmatpush1.msra.mxu0 %v2361
    %2401 = vmatprep.subr.mxu0 0.0
    %2402 = vmatpush1.msra.mxu0 0.0
    %2403 = vmatprep.subr.mxu0 0.0
    %2404 = vmatpush1.msra.mxu0 0.0
    %2405 = vmatprep.subr.mxu0 0.0
    %2406 = vmatpush1.msra.mxu0 0.0
    %2407 = vmatprep.subr.mxu0 0.0
    %2408 = vmatpush1.msra.mxu0 0.0
    %2409 = vmatprep.subr.mxu0 0.0
    %2410 = vmatpush1.msra.mxu0 0.0
    %2411 = vmatprep.subr.mxu0 0.0
    %2412 = vmatpush1.msra.mxu0 0.0
    %2413 = vmatprep.subr.mxu0 0.0
    %2414 = vmatpush1.msra.mxu0 0.0
    %2415 = vmatprep.subr.mxu0 0.0
    %2416 = vmatpush1.msra.mxu0 0.0
    %2417 = vmatprep.subr.mxu0 0.0
    %2418 = vmatpush1.msra.mxu0 0.0
    %2419 = vmatprep.subr.mxu0 0.0
    %2420 = vmatpush1.msra.mxu0 0.0
    %2421 = vmatprep.subr.mxu0 0.0
    %2422 = vmatpush1.msra.mxu0 0.0
    %2423 = vmatprep.subr.mxu0 0.0
    %2424 = vmatpush1.msra.mxu0 0.0
    %2425 = vmatprep.subr.mxu0 0.0
    %2426 = vmatpush1.msra.mxu0 0.0
    %2427 = vmatprep.subr.mxu0 0.0
    %2428 = vmatpush1.msra.mxu0 0.0
    %2429 = vmatprep.subr.mxu0 0.0
    %2430 = vmatpush1.msra.mxu0 0.0
    %2431 = vmatprep.subr.mxu0 0.0
    %2432 = vmatpush1.msra.mxu0 0.0
    %2433 = vmatprep.mubr.f32.mxu0 0.0
    %2434 = vmatmul.mubr.f32.gmra.mrb[0].mxu0 %v2342
    %v2435 = vpop.f32.mrb[0].mxu0
    %v2436 = vadd.f32 %v2367, %v2435
    %v2437 = vpop.f32.mrb[0].mxu0
    %2438 = vmatprep.mubr.f32.mxu0 0.0
    %2439 = vmatmul.mubr.f32.gmra.mrb[0].mxu0 %v2343
    %v2440 = vpop.f32.mrb[0].mxu0
    %v2441 = vadd.f32 %v2367, %v2440
    %v2442 = vpop.f32.mrb[0].mxu0
    %2443 = vmatprep.mubr.f32.mxu0 0.0
    %2444 = vmatmul.mubr.f32.gmra.mrb[0].mxu0 %v2344
    %v2445 = vpop.f32.mrb[0].mxu0
    %v2446 = vadd.f32 %v2367, %v2445
    %v2447 = vpop.f32.mrb[0].mxu0
    %2448 = vmatprep.mubr.f32.mxu0 0.0
    %2449 = vmatmul.mubr.f32.gmra.mrb[0].mxu0 %v2345
    %v2450 = vpop.f32.mrb[0].mxu0
    %v2451 = vadd.f32 %v2367, %v2450
    %v2452 = vpop.f32.mrb[0].mxu0
    %2453 = vdwg.mxu0
    %v2454 = vadd.f32 %v2230, %v2436
    %v2455 = vadd.f32 %v2231, %v2441
    %v2456 = vadd.f32 %v2232, %v2446
    %v2457 = vadd.f32 %v2233, %v2451
    %v2458 = vld [vmem:[#allocation17] sm:$0x1]
    %v2459 = vld [vmem:[#allocation19] sm:$0x1]
    %v2460 = vsel %vm281, %v2454, 0.0
    %2461 = vadd.xlane.f32.xlu0 %v2460
    %v2462 = vpop.xlane.xlu0 %2461
    %v2463 = vsel %vm281, %v2455, 0.0
    %2464 = vadd.xlane.f32.xlu0 %v2463
    %v2465 = vpop.xlane.xlu0 %2464
    %v2466 = vsel %vm281, %v2456, 0.0
    %2467 = vadd.xlane.f32.xlu0 %v2466
    %v2468 = vpop.xlane.xlu0 %2467
    %v2469 = vsel %vm281, %v2457, 0.0
    %2470 = vadd.xlane.f32.xlu0 %v2469
    %v2471 = vpop.xlane.xlu0 %2470
    %v2472 = vmul.f32 %v2462, %v2173
    %v2473 = vmul.f32 %v2465, %v2173
    %v2474 = vmul.f32 %v2468, %v2173
    %v2475 = vmul.f32 %v2471, %v2173
    %v2476 = vsub.f32 %v2454, %v2472
    %v2477 = vsub.f32 %v2455, %v2473
    %v2478 = vsub.f32 %v2456, %v2474
    %v2479 = vsub.f32 %v2457, %v2475
    %v2480 = vmul.f32 %v2476, %v2476
    %v2481 = vmul.f32 %v2477, %v2477
    %v2482 = vmul.f32 %v2478, %v2478
    %v2483 = vmul.f32 %v2479, %v2479
    %v2484 = vsel %vm281, %v2480, 0.0
    %2485 = vadd.xlane.f32.xlu0 %v2484
    %v2486 = vpop.xlane.xlu0 %2485
    %v2487 = vsel %vm281, %v2481, 0.0
    %2488 = vadd.xlane.f32.xlu0 %v2487
    %v2489 = vpop.xlane.xlu0 %2488
    %v2490 = vsel %vm281, %v2482, 0.0
    %2491 = vadd.xlane.f32.xlu0 %v2490
    %v2492 = vpop.xlane.xlu0 %2491
    %v2493 = vsel %vm281, %v2483, 0.0
    %2494 = vadd.xlane.f32.xlu0 %v2493
    %v2495 = vpop.xlane.xlu0 %2494
    %v2496 = vmul.f32 %v2486, %v2173
    %v2497 = vmul.f32 %v2489, %v2173
    %v2498 = vmul.f32 %v2492, %v2173
    %v2499 = vmul.f32 %v2495, %v2173
    %v2500 = vadd.f32 %v2496, 1e-05
    %v2501 = vadd.f32 %v2497, 1e-05
    %v2502 = vadd.f32 %v2498, 1e-05
    %v2503 = vadd.f32 %v2499, 1e-05
    %v2504 = vrsqrt.pop %v2500
    %v2505 = vrsqrt.pop %v2501
    %v2506 = vrsqrt.pop %v2502
    %v2507 = vrsqrt.pop %v2503
    %v2508 = vmul.f32 %v2476, %v2504
    %v2509 = vmul.f32 %v2477, %v2505
    %v2510 = vmul.f32 %v2478, %v2506
    %v2511 = vmul.f32 %v2479, %v2507
    %v2513 = vlaneseq
    %v2514 = vshrl.u32 %v2513, 7
    %v2515 = vsub.s32 0, %v2514
    %v2516 = vrot.slane %v2458, %v2515
    %v2518 = vmul.f32 %v2508, %v2516
    %v2519 = vmul.f32 %v2509, %v2516
    %v2520 = vmul.f32 %v2510, %v2516
    %v2521 = vmul.f32 %v2511, %v2516
    %v2523 = vlaneseq
    %v2524 = vshrl.u32 %v2523, 7
    %v2525 = vsub.s32 0, %v2524
    %v2526 = vrot.slane %v2459, %v2525
    %v2528 = vadd.f32 %v2518, %v2526
    %v2529 = vadd.f32 %v2519, %v2526
    %v2530 = vadd.f32 %v2520, %v2526
    %v2531 = vadd.f32 %v2521, %v2526
    %s2532 = scalar_lea.vmem %s5, 32
    %v2533 = vld [vmem:[%s2532] sm:$0xff]
    %v2534 = vld [vmem:[%s2532 + $0x8] sm:$0xff]
    %v2535 = vld [vmem:[%s2532 + $0x10] sm:$0xff]
    %v2536 = vld [vmem:[%s2532 + $0x18] sm:$0xff]
    %s2537 = scalar_lea.vmem %s6, 32
    %v2538 = vld [vmem:[%s2537] sm:$0xff]
    %v2539 = vld [vmem:[%s2537 + $0x8] sm:$0xff]
    %v2540 = vld [vmem:[%s2537 + $0x10] sm:$0xff]
    %v2541 = vld [vmem:[%s2537 + $0x18] sm:$0xff]
    %s2542 = scalar_lea.vmem %s7, 32
    %v2543 = vld [vmem:[%s2542] sm:$0xff]
    %v2544 = vld [vmem:[%s2542 + $0x8] sm:$0xff]
    %v2545 = vld [vmem:[%s2542 + $0x10] sm:$0xff]
    %v2546 = vld [vmem:[%s2542 + $0x18] sm:$0xff]
    %s2547 = scalar_lea.vmem %s11, 32
    %v2548 = vld [vmem:[%s2547] sm:$0xff]
    %v2549 = vld [vmem:[%s2547 + $0x8] sm:$0xff]
    %v2550 = vld [vmem:[%s2547 + $0x10] sm:$0xff]
    %v2551 = vld [vmem:[%s2547 + $0x18] sm:$0xff]
    %s2552 = scalar_lea.vmem %s8, 1
    %v2553 = vld [vmem:[%s2552] sm:$0x1]
    %v2555 = vlaneseq
    %v2556 = vshrl.u32 %v2555, 7
    %v2557 = vsub.s32 0, %v2556
    %v2558 = vrot.slane %v2553, %v2557
    %v2561 = vsel %vm281, %v2528, 0
    %v2564 = vsel %vm281, %v2529, 0
    %v2567 = vsel %vm281, %v2530, 0
    %v2570 = vsel %vm281, %v2531, 0
    %2572 = vmatprep.subr.mxu0 0.0
    %2573 = vmatpush1.msra.mxu0 %v2533
    %2574 = vmatprep.subr.mxu0 0.0
    %2575 = vmatpush1.msra.mxu0 %v2534
    %2576 = vmatprep.subr.mxu0 0.0
    %2577 = vmatpush1.msra.mxu0 %v2535
    %2578 = vmatprep.subr.mxu0 0.0
    %2579 = vmatpush1.msra.mxu0 %v2536
    %2580 = vmatprep.subr.mxu0 0.0
    %2581 = vmatpush1.msra.mxu0 0.0
    %2582 = vmatprep.subr.mxu0 0.0
    %2583 = vmatpush1.msra.mxu0 0.0
    %2584 = vmatprep.subr.mxu0 0.0
    %2585 = vmatpush1.msra.mxu0 0.0
    %2586 = vmatprep.subr.mxu0 0.0
    %2587 = vmatpush1.msra.mxu0 0.0
    %2588 = vmatprep.subr.mxu0 0.0
    %2589 = vmatpush1.msra.mxu0 0.0
    %2590 = vmatprep.subr.mxu0 0.0
    %2591 = vmatpush1.msra.mxu0 0.0
    %2592 = vmatprep.subr.mxu0 0.0
    %2593 = vmatpush1.msra.mxu0 0.0
    %2594 = vmatprep.subr.mxu0 0.0
    %2595 = vmatpush1.msra.mxu0 0.0
    %2596 = vmatprep.subr.mxu0 0.0
    %2597 = vmatpush1.msra.mxu0 0.0
    %2598 = vmatprep.subr.mxu0 0.0
    %2599 = vmatpush1.msra.mxu0 0.0
    %2600 = vmatprep.subr.mxu0 0.0
    %2601 = vmatpush1.msra.mxu0 0.0
    %2602 = vmatprep.subr.mxu0 0.0
    %2603 = vmatpush1.msra.mxu0 0.0
    %2604 = vmatprep.subr.mxu0 0.0
    %2605 = vmatpush1.msra.mxu0 0.0
    %2606 = vmatprep.subr.mxu0 0.0
    %2607 = vmatpush1.msra.mxu0 0.0
    %2608 = vmatprep.subr.mxu0 0.0
    %2609 = vmatpush1.msra.mxu0 0.0
    %2610 = vmatprep.subr.mxu0 0.0
    %2611 = vmatpush1.msra.mxu0 0.0
    %2612 = vmatprep.subr.mxu0 0.0
    %2613 = vmatpush1.msra.mxu0 0.0
    %2614 = vmatprep.subr.mxu0 0.0
    %2615 = vmatpush1.msra.mxu0 0.0
    %2616 = vmatprep.subr.mxu0 0.0
    %2617 = vmatpush1.msra.mxu0 0.0
    %2618 = vmatprep.subr.mxu0 0.0
    %2619 = vmatpush1.msra.mxu0 0.0
    %2620 = vmatprep.subr.mxu0 0.0
    %2621 = vmatpush1.msra.mxu0 0.0
    %2622 = vmatprep.subr.mxu0 0.0
    %2623 = vmatpush1.msra.mxu0 0.0
    %2624 = vmatprep.subr.mxu0 0.0
    %2625 = vmatpush1.msra.mxu0 0.0
    %2626 = vmatprep.subr.mxu0 0.0
    %2627 = vmatpush1.msra.mxu0 0.0
    %2628 = vmatprep.subr.mxu0 0.0
    %2629 = vmatpush1.msra.mxu0 0.0
    %2630 = vmatprep.subr.mxu0 0.0
    %2631 = vmatpush1.msra.mxu0 0.0
    %2632 = vmatprep.subr.mxu0 0.0
    %2633 = vmatpush1.msra.mxu0 0.0
    %2634 = vmatprep.subr.mxu0 0.0
    %2635 = vmatpush1.msra.mxu0 0.0
    %2636 = vmatprep.mubr.f32.mxu0 0.0
    %2637 = vmatmul.mubr.f32.gmra.mrb[0].mxu0 %v2561
    %v2638 = vpop.f32.mrb[0].mxu0
    %v2639 = vadd.f32 %v2558, %v2638
    %v2640 = vpop.f32.mrb[0].mxu0
    %2641 = vmatprep.mubr.f32.mxu0 0.0
    %2642 = vmatmul.mubr.f32.gmra.mrb[0].mxu0 %v2564
    %v2643 = vpop.f32.mrb[0].mxu0
    %v2644 = vadd.f32 %v2558, %v2643
    %v2645 = vpop.f32.mrb[0].mxu0
    %2646 = vmatprep.mubr.f32.mxu0 0.0
    %2647 = vmatmul.mubr.f32.gmra.mrb[0].mxu0 %v2567
    %v2648 = vpop.f32.mrb[0].mxu0
    %v2649 = vadd.f32 %v2558, %v2648
    %v2650 = vpop.f32.mrb[0].mxu0
    %2651 = vmatprep.mubr.f32.mxu0 0.0
    %2652 = vmatmul.mubr.f32.gmra.mrb[0].mxu0 %v2570
    %v2653 = vpop.f32.mrb[0].mxu0
    %v2654 = vadd.f32 %v2558, %v2653
    %v2655 = vpop.f32.mrb[0].mxu0
    %2656 = vdwg.mxu0
    %s2657 = scalar_lea.vmem [#allocation7], 1
    %v2658 = vld [vmem:[%s2657] sm:$0x1]
    %v2660 = vlaneseq
    %v2661 = vshrl.u32 %v2660, 7
    %v2662 = vsub.s32 0, %v2661
    %v2663 = vrot.slane %v2658, %v2662
    %2665 = vmatprep.subr.mxu0 0.0
    %2666 = vmatpush1.msra.mxu0 %v2538
    %2667 = vmatprep.subr.mxu0 0.0
    %2668 = vmatpush1.msra.mxu0 %v2539
    %2669 = vmatprep.subr.mxu0 0.0
    %2670 = vmatpush1.msra.mxu0 %v2540
    %2671 = vmatprep.subr.mxu0 0.0
    %2672 = vmatpush1.msra.mxu0 %v2541
    %2673 = vmatprep.subr.mxu0 0.0
    %2674 = vmatpush1.msra.mxu0 0.0
    %2675 = vmatprep.subr.mxu0 0.0
    %2676 = vmatpush1.msra.mxu0 0.0
    %2677 = vmatprep.subr.mxu0 0.0
    %2678 = vmatpush1.msra.mxu0 0.0
    %2679 = vmatprep.subr.mxu0 0.0
    %2680 = vmatpush1.msra.mxu0 0.0
    %2681 = vmatprep.subr.mxu0 0.0
    %2682 = vmatpush1.msra.mxu0 0.0
    %2683 = vmatprep.subr.mxu0 0.0
    %2684 = vmatpush1.msra.mxu0 0.0
    %2685 = vmatprep.subr.mxu0 0.0
    %2686 = vmatpush1.msra.mxu0 0.0
    %2687 = vmatprep.subr.mxu0 0.0
    %2688 = vmatpush1.msra.mxu0 0.0
    %2689 = vmatprep.subr.mxu0 0.0
    %2690 = vmatpush1.msra.mxu0 0.0
    %2691 = vmatprep.subr.mxu0 0.0
    %2692 = vmatpush1.msra.mxu0 0.0
    %2693 = vmatprep.subr.mxu0 0.0
    %2694 = vmatpush1.msra.mxu0 0.0
    %2695 = vmatprep.subr.mxu0 0.0
    %2696 = vmatpush1.msra.mxu0 0.0
    %2697 = vmatprep.subr.mxu0 0.0
    %2698 = vmatpush1.msra.mxu0 0.0
    %2699 = vmatprep.subr.mxu0 0.0
    %2700 = vmatpush1.msra.mxu0 0.0
    %2701 = vmatprep.subr.mxu0 0.0
    %2702 = vmatpush1.msra.mxu0 0.0
    %2703 = vmatprep.subr.mxu0 0.0
    %2704 = vmatpush1.msra.mxu0 0.0
    %2705 = vmatprep.subr.mxu0 0.0
    %2706 = vmatpush1.msra.mxu0 0.0
    %2707 = vmatprep.subr.mxu0 0.0
    %2708 = vmatpush1.msra.mxu0 0.0
    %2709 = vmatprep.subr.mxu0 0.0
    %2710 = vmatpush1.msra.mxu0 0.0
    %2711 = vmatprep.subr.mxu0 0.0
    %2712 = vmatpush1.msra.mxu0 0.0
    %2713 = vmatprep.subr.mxu0 0.0
    %2714 = vmatpush1.msra.mxu0 0.0
    %2715 = vmatprep.subr.mxu0 0.0
    %2716 = vmatpush1.msra.mxu0 0.0
    %2717 = vmatprep.subr.mxu0 0.0
    %2718 = vmatpush1.msra.mxu0 0.0
    %2719 = vmatprep.subr.mxu0 0.0
    %2720 = vmatpush1.msra.mxu0 0.0
    %2721 = vmatprep.subr.mxu0 0.0
    %2722 = vmatpush1.msra.mxu0 0.0
    %2723 = vmatprep.subr.mxu0 0.0
    %2724 = vmatpush1.msra.mxu0 0.0
    %2725 = vmatprep.subr.mxu0 0.0
    %2726 = vmatpush1.msra.mxu0 0.0
    %2727 = vmatprep.subr.mxu0 0.0
    %2728 = vmatpush1.msra.mxu0 0.0
    %2729 = vmatprep.mubr.f32.mxu0 0.0
    %2730 = vmatmul.mubr.f32.gmra.mrb[0].mxu0 %v2561
    %v2731 = vpop.f32.mrb[0].mxu0
    %v2732 = vadd.f32 %v2663, %v2731
    %v2733 = vpop.f32.mrb[0].mxu0
    %2734 = vmatprep.mubr.f32.mxu0 0.0
    %2735 = vmatmul.mubr.f32.gmra.mrb[0].mxu0 %v2564
    %v2736 = vpop.f32.mrb[0].mxu0
    %v2737 = vadd.f32 %v2663, %v2736
    %v2738 = vpop.f32.mrb[0].mxu0
    %2739 = vmatprep.mubr.f32.mxu0 0.0
    %2740 = vmatmul.mubr.f32.gmra.mrb[0].mxu0 %v2567
    %v2741 = vpop.f32.mrb[0].mxu0
    %v2742 = vadd.f32 %v2663, %v2741
    %v2743 = vpop.f32.mrb[0].mxu0
    %2744 = vmatprep.mubr.f32.mxu0 0.0
    %2745 = vmatmul.mubr.f32.gmra.mrb[0].mxu0 %v2570
    %v2746 = vpop.f32.mrb[0].mxu0
    %v2747 = vadd.f32 %v2663, %v2746
    %v2748 = vpop.f32.mrb[0].mxu0
    %2749 = vdwg.mxu0
    %s2750 = scalar_lea.vmem [#allocation8], 1
    %v2751 = vld [vmem:[%s2750] sm:$0x1]
    %v2753 = vlaneseq
    %v2754 = vshrl.u32 %v2753, 7
    %v2755 = vsub.s32 0, %v2754
    %v2756 = vrot.slane %v2751, %v2755
    %2758 = vmatprep.subr.mxu0 0.0
    %2759 = vmatpush1.msra.mxu0 %v2543
    %2760 = vmatprep.subr.mxu0 0.0
    %2761 = vmatpush1.msra.mxu0 %v2544
    %2762 = vmatprep.subr.mxu0 0.0
    %2763 = vmatpush1.msra.mxu0 %v2545
    %2764 = vmatprep.subr.mxu0 0.0
    %2765 = vmatpush1.msra.mxu0 %v2546
    %2766 = vmatprep.subr.mxu0 0.0
    %2767 = vmatpush1.msra.mxu0 0.0
    %2768 = vmatprep.subr.mxu0 0.0
    %2769 = vmatpush1.msra.mxu0 0.0
    %2770 = vmatprep.subr.mxu0 0.0
    %2771 = vmatpush1.msra.mxu0 0.0
    %2772 = vmatprep.subr.mxu0 0.0
    %2773 = vmatpush1.msra.mxu0 0.0
    %2774 = vmatprep.subr.mxu0 0.0
    %2775 = vmatpush1.msra.mxu0 0.0
    %2776 = vmatprep.subr.mxu0 0.0
    %2777 = vmatpush1.msra.mxu0 0.0
    %2778 = vmatprep.subr.mxu0 0.0
    %2779 = vmatpush1.msra.mxu0 0.0
    %2780 = vmatprep.subr.mxu0 0.0
    %2781 = vmatpush1.msra.mxu0 0.0
    %2782 = vmatprep.subr.mxu0 0.0
    %2783 = vmatpush1.msra.mxu0 0.0
    %2784 = vmatprep.subr.mxu0 0.0
    %2785 = vmatpush1.msra.mxu0 0.0
    %2786 = vmatprep.subr.mxu0 0.0
    %2787 = vmatpush1.msra.mxu0 0.0
    %2788 = vmatprep.subr.mxu0 0.0
    %2789 = vmatpush1.msra.mxu0 0.0
    %2790 = vmatprep.subr.mxu0 0.0
    %2791 = vmatpush1.msra.mxu0 0.0
    %2792 = vmatprep.subr.mxu0 0.0
    %2793 = vmatpush1.msra.mxu0 0.0
    %2794 = vmatprep.subr.mxu0 0.0
    %2795 = vmatpush1.msra.mxu0 0.0
    %2796 = vmatprep.subr.mxu0 0.0
    %2797 = vmatpush1.msra.mxu0 0.0
    %2798 = vmatprep.subr.mxu0 0.0
    %2799 = vmatpush1.msra.mxu0 0.0
    %2800 = vmatprep.subr.mxu0 0.0
    %2801 = vmatpush1.msra.mxu0 0.0
    %2802 = vmatprep.subr.mxu0 0.0
    %2803 = vmatpush1.msra.mxu0 0.0
    %2804 = vmatprep.subr.mxu0 0.0
    %2805 = vmatpush1.msra.mxu0 0.0
    %2806 = vmatprep.subr.mxu0 0.0
    %2807 = vmatpush1.msra.mxu0 0.0
    %2808 = vmatprep.subr.mxu0 0.0
    %2809 = vmatpush1.msra.mxu0 0.0
    %2810 = vmatprep.subr.mxu0 0.0
    %2811 = vmatpush1.msra.mxu0 0.0
    %2812 = vmatprep.subr.mxu0 0.0
    %2813 = vmatpush1.msra.mxu0 0.0
    %2814 = vmatprep.subr.mxu0 0.0
    %2815 = vmatpush1.msra.mxu0 0.0
    %2816 = vmatprep.subr.mxu0 0.0
    %2817 = vmatpush1.msra.mxu0 0.0
    %2818 = vmatprep.subr.mxu0 0.0
    %2819 = vmatpush1.msra.mxu0 0.0
    %2820 = vmatprep.subr.mxu0 0.0
    %2821 = vmatpush1.msra.mxu0 0.0
    %2822 = vmatprep.mubr.f32.mxu0 0.0
    %2823 = vmatmul.mubr.f32.gmra.mrb[0].mxu0 %v2561
    %v2824 = vpop.f32.mrb[0].mxu0
    %v2825 = vadd.f32 %v2756, %v2824
    %v2826 = vpop.f32.mrb[0].mxu0
    %2827 = vmatprep.mubr.f32.mxu0 0.0
    %2828 = vmatmul.mubr.f32.gmra.mrb[0].mxu0 %v2564
    %v2829 = vpop.f32.mrb[0].mxu0
    %v2830 = vadd.f32 %v2756, %v2829
    %v2831 = vpop.f32.mrb[0].mxu0
    %2832 = vmatprep.mubr.f32.mxu0 0.0
    %2833 = vmatmul.mubr.f32.gmra.mrb[0].mxu0 %v2567
    %v2834 = vpop.f32.mrb[0].mxu0
    %v2835 = vadd.f32 %v2756, %v2834
    %v2836 = vpop.f32.mrb[0].mxu0
    %2837 = vmatprep.mubr.f32.mxu0 0.0
    %2838 = vmatmul.mubr.f32.gmra.mrb[0].mxu0 %v2570
    %v2839 = vpop.f32.mrb[0].mxu0
    %v2840 = vadd.f32 %v2756, %v2839
    %v2841 = vpop.f32.mrb[0].mxu0
    %2842 = vdwg.mxu0
    %v2844 = vsel %vm683, %v2639, 0
    %v2847 = vsel %vm683, %v2644, 0
    %v2850 = vsel %vm683, %v2649, 0
    %v2853 = vsel %vm683, %v2654, 0
    %v2856 = vsel %vm683, %v2732, 0
    %v2859 = vsel %vm683, %v2737, 0
    %v2862 = vsel %vm683, %v2742, 0
    %v2865 = vsel %vm683, %v2747, 0
    %2867 = vmatprep.subr.mxu0 0.0
    %2868 = vmatpush1.xpose.msra.mxu0 %v2856
    %2869 = vmatprep.subr.mxu0 0.0
    %2870 = vmatpush1.xpose.msra.mxu0 %v2859
    %2871 = vmatprep.subr.mxu0 0.0
    %2872 = vmatpush1.xpose.msra.mxu0 %v2862
    %2873 = vmatprep.subr.mxu0 0.0
    %2874 = vmatpush1.xpose.msra.mxu0 %v2865
    %2875 = vmatprep.subr.mxu0 0.0
    %2876 = vmatpush1.xpose.msra.mxu0 0.0
    %2877 = vmatprep.subr.mxu0 0.0
    %2878 = vmatpush1.xpose.msra.mxu0 0.0
    %2879 = vmatprep.subr.mxu0 0.0
    %2880 = vmatpush1.xpose.msra.mxu0 0.0
    %2881 = vmatprep.subr.mxu0 0.0
    %2882 = vmatpush1.xpose.msra.mxu0 0.0
    %2883 = vmatprep.subr.mxu0 0.0
    %2884 = vmatpush1.xpose.msra.mxu0 0.0
    %2885 = vmatprep.subr.mxu0 0.0
    %2886 = vmatpush1.xpose.msra.mxu0 0.0
    %2887 = vmatprep.subr.mxu0 0.0
    %2888 = vmatpush1.xpose.msra.mxu0 0.0
    %2889 = vmatprep.subr.mxu0 0.0
    %2890 = vmatpush1.xpose.msra.mxu0 0.0
    %2891 = vmatprep.subr.mxu0 0.0
    %2892 = vmatpush1.xpose.msra.mxu0 0.0
    %2893 = vmatprep.subr.mxu0 0.0
    %2894 = vmatpush1.xpose.msra.mxu0 0.0
    %2895 = vmatprep.subr.mxu0 0.0
    %2896 = vmatpush1.xpose.msra.mxu0 0.0
    %2897 = vmatprep.subr.mxu0 0.0
    %2898 = vmatpush1.xpose.msra.mxu0 0.0
    %2899 = vmatprep.subr.mxu0 0.0
    %2900 = vmatpush1.xpose.msra.mxu0 0.0
    %2901 = vmatprep.subr.mxu0 0.0
    %2902 = vmatpush1.xpose.msra.mxu0 0.0
    %2903 = vmatprep.subr.mxu0 0.0
    %2904 = vmatpush1.xpose.msra.mxu0 0.0
    %2905 = vmatprep.subr.mxu0 0.0
    %2906 = vmatpush1.xpose.msra.mxu0 0.0
    %2907 = vmatprep.subr.mxu0 0.0
    %2908 = vmatpush1.xpose.msra.mxu0 0.0
    %2909 = vmatprep.subr.mxu0 0.0
    %2910 = vmatpush1.xpose.msra.mxu0 0.0
    %2911 = vmatprep.subr.mxu0 0.0
    %2912 = vmatpush1.xpose.msra.mxu0 0.0
    %2913 = vmatprep.subr.mxu0 0.0
    %2914 = vmatpush1.xpose.msra.mxu0 0.0
    %2915 = vmatprep.subr.mxu0 0.0
    %2916 = vmatpush1.xpose.msra.mxu0 0.0
    %2917 = vmatprep.subr.mxu0 0.0
    %2918 = vmatpush1.xpose.msra.mxu0 0.0
    %2919 = vmatprep.subr.mxu0 0.0
    %2920 = vmatpush1.xpose.msra.mxu0 0.0
    %2921 = vmatprep.subr.mxu0 0.0
    %2922 = vmatpush1.xpose.msra.mxu0 0.0
    %2923 = vmatprep.subr.mxu0 0.0
    %2924 = vmatpush1.xpose.msra.mxu0 0.0
    %2925 = vmatprep.subr.mxu0 0.0
    %2926 = vmatpush1.xpose.msra.mxu0 0.0
    %2927 = vmatprep.subr.mxu0 0.0
    %2928 = vmatpush1.xpose.msra.mxu0 0.0
    %2929 = vmatprep.subr.mxu0 0.0
    %2930 = vmatpush1.xpose.msra.mxu0 0.0
    %2931 = vmatprep.mubr.f32.mxu0 0.0
    %2932 = vmatmul.mubr.f32.gmra.mrb[0].mxu0 %v2844
    %v2933 = vpop.f32.mrb[0].mxu0
    %v2934 = vadd.f32 %v254, %v2933
    %v2935 = vpop.f32.mrb[0].mxu0
    %2936 = vmatprep.mubr.f32.mxu0 0.0
    %2937 = vmatmul.mubr.f32.gmra.mrb[0].mxu0 %v2847
    %v2938 = vpop.f32.mrb[0].mxu0
    %v2939 = vadd.f32 %v255, %v2938
    %v2940 = vpop.f32.mrb[0].mxu0
    %2941 = vmatprep.mubr.f32.mxu0 0.0
    %2942 = vmatmul.mubr.f32.gmra.mrb[0].mxu0 %v2850
    %v2943 = vpop.f32.mrb[0].mxu0
    %v2944 = vadd.f32 %v256, %v2943
    %v2945 = vpop.f32.mrb[0].mxu0
    %2946 = vmatprep.mubr.f32.mxu0 0.0
    %2947 = vmatmul.mubr.f32.gmra.mrb[0].mxu0 %v2853
    %v2948 = vpop.f32.mrb[0].mxu0
    %v2949 = vadd.f32 %v257, %v2948
    %v2950 = vpop.f32.mrb[0].mxu0
    %2951 = vdwg.mxu0
    %v2952 = vsel %vm281, %v2934, -inf
    %2953 = vmax.xlane.f32.xlu0 %v2952
    %v2954 = vpop.xlane.xlu0 %2953
    %v2955 = vsel %vm281, %v2939, -inf
    %2956 = vmax.xlane.f32.xlu0 %v2955
    %v2957 = vpop.xlane.xlu0 %2956
    %v2958 = vsel %vm281, %v2944, -inf
    %2959 = vmax.xlane.f32.xlu0 %v2958
    %v2960 = vpop.xlane.xlu0 %2959
    %v2961 = vsel %vm281, %v2949, -inf
    %2962 = vmax.xlane.f32.xlu0 %v2961
    %v2963 = vpop.xlane.xlu0 %2962
    %v2964 = vsub.f32 %v2934, %v2954
    %v2965 = vsub.f32 %v2939, %v2957
    %v2966 = vsub.f32 %v2944, %v2960
    %v2967 = vsub.f32 %v2949, %v2963
    %v2968 = vmul.f32 %v2964, 1.442695
    %v2969 = vpow.pop %v2968
    %v2970 = vmul.f32 %v2965, 1.442695
    %v2971 = vpow.pop %v2970
    %v2972 = vmul.f32 %v2966, 1.442695
    %v2973 = vpow.pop %v2972
    %v2974 = vmul.f32 %v2967, 1.442695
    %v2975 = vpow.pop %v2974
    %v2976 = vsel %vm281, %v2969, 0.0
    %2977 = vadd.xlane.f32.xlu0 %v2976
    %v2978 = vpop.xlane.xlu0 %2977
    %v2979 = vsel %vm281, %v2971, 0.0
    %2980 = vadd.xlane.f32.xlu0 %v2979
    %v2981 = vpop.xlane.xlu0 %2980
    %v2982 = vsel %vm281, %v2973, 0.0
    %2983 = vadd.xlane.f32.xlu0 %v2982
    %v2984 = vpop.xlane.xlu0 %2983
    %v2985 = vsel %vm281, %v2975, 0.0
    %2986 = vadd.xlane.f32.xlu0 %v2985
    %v2987 = vpop.xlane.xlu0 %2986
    %v2988 = vrcp.pop %v2978
    %v2989 = vrcp.pop %v2981
    %v2990 = vrcp.pop %v2984
    %v2991 = vrcp.pop %v2987
    %v2992 = vmul.f32 %v2969, %v2988
    %v2993 = vmul.f32 %v2971, %v2989
    %v2994 = vmul.f32 %v2973, %v2990
    %v2995 = vmul.f32 %v2975, %v2991
    %v2997 = vsel %vm281, %v2992, 0
    %v3000 = vsel %vm281, %v2993, 0
    %v3003 = vsel %vm281, %v2994, 0
    %v3006 = vsel %vm281, %v2995, 0
    %3008 = vmatprep.subr.mxu0 0.0
    %3009 = vmatpush1.msra.mxu0 %v2825
    %3010 = vmatprep.subr.mxu0 0.0
    %3011 = vmatpush1.msra.mxu0 %v2830
    %3012 = vmatprep.subr.mxu0 0.0
    %3013 = vmatpush1.msra.mxu0 %v2835
    %3014 = vmatprep.subr.mxu0 0.0
    %3015 = vmatpush1.msra.mxu0 %v2840
    %3016 = vmatprep.subr.mxu0 0.0
    %3017 = vmatpush1.msra.mxu0 0.0
    %3018 = vmatprep.subr.mxu0 0.0
    %3019 = vmatpush1.msra.mxu0 0.0
    %3020 = vmatprep.subr.mxu0 0.0
    %3021 = vmatpush1.msra.mxu0 0.0
    %3022 = vmatprep.subr.mxu0 0.0
    %3023 = vmatpush1.msra.mxu0 0.0
    %3024 = vmatprep.subr.mxu0 0.0
    %3025 = vmatpush1.msra.mxu0 0.0
    %3026 = vmatprep.subr.mxu0 0.0
    %3027 = vmatpush1.msra.mxu0 0.0
    %3028 = vmatprep.subr.mxu0 0.0
    %3029 = vmatpush1.msra.mxu0 0.0
    %3030 = vmatprep.subr.mxu0 0.0
    %3031 = vmatpush1.msra.mxu0 0.0
    %3032 = vmatprep.subr.mxu0 0.0
    %3033 = vmatpush1.msra.mxu0 0.0
    %3034 = vmatprep.subr.mxu0 0.0
    %3035 = vmatpush1.msra.mxu0 0.0
    %3036 = vmatprep.subr.mxu0 0.0
    %3037 = vmatpush1.msra.mxu0 0.0
    %3038 = vmatprep.subr.mxu0 0.0
    %3039 = vmatpush1.msra.mxu0 0.0
    %3040 = vmatprep.subr.mxu0 0.0
    %3041 = vmatpush1.msra.mxu0 0.0
    %3042 = vmatprep.subr.mxu0 0.0
    %3043 = vmatpush1.msra.mxu0 0.0
    %3044 = vmatprep.subr.mxu0 0.0
    %3045 = vmatpush1.msra.mxu0 0.0
    %3046 = vmatprep.subr.mxu0 0.0
    %3047 = vmatpush1.msra.mxu0 0.0
    %3048 = vmatprep.subr.mxu0 0.0
    %3049 = vmatpush1.msra.mxu0 0.0
    %3050 = vmatprep.subr.mxu0 0.0
    %3051 = vmatpush1.msra.mxu0 0.0
    %3052 = vmatprep.subr.mxu0 0.0
    %3053 = vmatpush1.msra.mxu0 0.0
    %3054 = vmatprep.subr.mxu0 0.0
    %3055 = vmatpush1.msra.mxu0 0.0
    %3056 = vmatprep.subr.mxu0 0.0
    %3057 = vmatpush1.msra.mxu0 0.0
    %3058 = vmatprep.subr.mxu0 0.0
    %3059 = vmatpush1.msra.mxu0 0.0
    %3060 = vmatprep.subr.mxu0 0.0
    %3061 = vmatpush1.msra.mxu0 0.0
    %3062 = vmatprep.subr.mxu0 0.0
    %3063 = vmatpush1.msra.mxu0 0.0
    %3064 = vmatprep.subr.mxu0 0.0
    %3065 = vmatpush1.msra.mxu0 0.0
    %3066 = vmatprep.subr.mxu0 0.0
    %3067 = vmatpush1.msra.mxu0 0.0
    %3068 = vmatprep.subr.mxu0 0.0
    %3069 = vmatpush1.msra.mxu0 0.0
    %3070 = vmatprep.subr.mxu0 0.0
    %3071 = vmatpush1.msra.mxu0 0.0
    %3072 = vmatprep.mubr.f32.mxu0 0.0
    %3073 = vmatmul.mubr.f32.gmra.mrb[0].mxu0 %v2997
    %v3074 = vpop.f32.mrb[0].mxu0
    %v3075 = vadd.f32 0.0, %v3074
    %v3076 = vpop.f32.mrb[0].mxu0
    %3077 = vmatprep.mubr.f32.mxu0 0.0
    %3078 = vmatmul.mubr.f32.gmra.mrb[0].mxu0 %v3000
    %v3079 = vpop.f32.mrb[0].mxu0
    %v3080 = vadd.f32 0.0, %v3079
    %v3081 = vpop.f32.mrb[0].mxu0
    %3082 = vmatprep.mubr.f32.mxu0 0.0
    %3083 = vmatmul.mubr.f32.gmra.mrb[0].mxu0 %v3003
    %v3084 = vpop.f32.mrb[0].mxu0
    %v3085 = vadd.f32 0.0, %v3084
    %v3086 = vpop.f32.mrb[0].mxu0
    %3087 = vmatprep.mubr.f32.mxu0 0.0
    %3088 = vmatmul.mubr.f32.gmra.mrb[0].mxu0 %v3006
    %v3089 = vpop.f32.mrb[0].mxu0
    %v3090 = vadd.f32 0.0, %v3089
    %v3091 = vpop.f32.mrb[0].mxu0
    %3092 = vdwg.mxu0
    %3093 = vrot.lane.b32.xlu0 %v2639, 120
    %v3094 = vpop.permute.xlu0 %3093
    %3095 = vrot.lane.b32.xlu0 %v2644, 120
    %v3096 = vpop.permute.xlu0 %3095
    %3097 = vrot.lane.b32.xlu0 %v2649, 120
    %v3098 = vpop.permute.xlu0 %3097
    %3099 = vrot.lane.b32.xlu0 %v2654, 120
    %v3100 = vpop.permute.xlu0 %3099
    %3101 = vrot.lane.b32.xlu0 %v2732, 120
    %v3102 = vpop.permute.xlu0 %3101
    %3103 = vrot.lane.b32.xlu0 %v2737, 120
    %v3104 = vpop.permute.xlu0 %3103
    %3105 = vrot.lane.b32.xlu0 %v2742, 120
    %v3106 = vpop.permute.xlu0 %3105
    %3107 = vrot.lane.b32.xlu0 %v2747, 120
    %v3108 = vpop.permute.xlu0 %3107
    %v3109 = vsel %vm683, %v3094, 0
    %v3111 = vsel %vm683, %v3096, 0
    %v3113 = vsel %vm683, %v3098, 0
    %v3115 = vsel %vm683, %v3100, 0
    %v3117 = vsel %vm683, %v3102, 0
    %v3119 = vsel %vm683, %v3104, 0
    %v3121 = vsel %vm683, %v3106, 0
    %v3123 = vsel %vm683, %v3108, 0
    %3125 = vmatprep.subr.mxu0 0.0
    %3126 = vmatpush1.xpose.msra.mxu0 %v3117
    %3127 = vmatprep.subr.mxu0 0.0
    %3128 = vmatpush1.xpose.msra.mxu0 %v3119
    %3129 = vmatprep.subr.mxu0 0.0
    %3130 = vmatpush1.xpose.msra.mxu0 %v3121
    %3131 = vmatprep.subr.mxu0 0.0
    %3132 = vmatpush1.xpose.msra.mxu0 %v3123
    %3133 = vmatprep.subr.mxu0 0.0
    %3134 = vmatpush1.xpose.msra.mxu0 0.0
    %3135 = vmatprep.subr.mxu0 0.0
    %3136 = vmatpush1.xpose.msra.mxu0 0.0
    %3137 = vmatprep.subr.mxu0 0.0
    %3138 = vmatpush1.xpose.msra.mxu0 0.0
    %3139 = vmatprep.subr.mxu0 0.0
    %3140 = vmatpush1.xpose.msra.mxu0 0.0
    %3141 = vmatprep.subr.mxu0 0.0
    %3142 = vmatpush1.xpose.msra.mxu0 0.0
    %3143 = vmatprep.subr.mxu0 0.0
    %3144 = vmatpush1.xpose.msra.mxu0 0.0
    %3145 = vmatprep.subr.mxu0 0.0
    %3146 = vmatpush1.xpose.msra.mxu0 0.0
    %3147 = vmatprep.subr.mxu0 0.0
    %3148 = vmatpush1.xpose.msra.mxu0 0.0
    %3149 = vmatprep.subr.mxu0 0.0
    %3150 = vmatpush1.xpose.msra.mxu0 0.0
    %3151 = vmatprep.subr.mxu0 0.0
    %3152 = vmatpush1.xpose.msra.mxu0 0.0
    %3153 = vmatprep.subr.mxu0 0.0
    %3154 = vmatpush1.xpose.msra.mxu0 0.0
    %3155 = vmatprep.subr.mxu0 0.0
    %3156 = vmatpush1.xpose.msra.mxu0 0.0
    %3157 = vmatprep.subr.mxu0 0.0
    %3158 = vmatpush1.xpose.msra.mxu0 0.0
    %3159 = vmatprep.subr.mxu0 0.0
    %3160 = vmatpush1.xpose.msra.mxu0 0.0
    %3161 = vmatprep.subr.mxu0 0.0
    %3162 = vmatpush1.xpose.msra.mxu0 0.0
    %3163 = vmatprep.subr.mxu0 0.0
    %3164 = vmatpush1.xpose.msra.mxu0 0.0
    %3165 = vmatprep.subr.mxu0 0.0
    %3166 = vmatpush1.xpose.msra.mxu0 0.0
    %3167 = vmatprep.subr.mxu0 0.0
    %3168 = vmatpush1.xpose.msra.mxu0 0.0
    %3169 = vmatprep.subr.mxu0 0.0
    %3170 = vmatpush1.xpose.msra.mxu0 0.0
    %3171 = vmatprep.subr.mxu0 0.0
    %3172 = vmatpush1.xpose.msra.mxu0 0.0
    %3173 = vmatprep.subr.mxu0 0.0
    %3174 = vmatpush1.xpose.msra.mxu0 0.0
    %3175 = vmatprep.subr.mxu0 0.0
    %3176 = vmatpush1.xpose.msra.mxu0 0.0
    %3177 = vmatprep.subr.mxu0 0.0
    %3178 = vmatpush1.xpose.msra.mxu0 0.0
    %3179 = vmatprep.subr.mxu0 0.0
    %3180 = vmatpush1.xpose.msra.mxu0 0.0
    %3181 = vmatprep.subr.mxu0 0.0
    %3182 = vmatpush1.xpose.msra.mxu0 0.0
    %3183 = vmatprep.subr.mxu0 0.0
    %3184 = vmatpush1.xpose.msra.mxu0 0.0
    %3185 = vmatprep.subr.mxu0 0.0
    %3186 = vmatpush1.xpose.msra.mxu0 0.0
    %3187 = vmatprep.subr.mxu0 0.0
    %3188 = vmatpush1.xpose.msra.mxu0 0.0
    %3189 = vmatprep.mubr.f32.mxu0 0.0
    %3190 = vmatmul.mubr.f32.gmra.mrb[0].mxu0 %v3109
    %v3191 = vpop.f32.mrb[0].mxu0
    %v3192 = vadd.f32 %v254, %v3191
    %v3193 = vpop.f32.mrb[0].mxu0
    %3194 = vmatprep.mubr.f32.mxu0 0.0
    %3195 = vmatmul.mubr.f32.gmra.mrb[0].mxu0 %v3111
    %v3196 = vpop.f32.mrb[0].mxu0
    %v3197 = vadd.f32 %v255, %v3196
    %v3198 = vpop.f32.mrb[0].mxu0
    %3199 = vmatprep.mubr.f32.mxu0 0.0
    %3200 = vmatmul.mubr.f32.gmra.mrb[0].mxu0 %v3113
    %v3201 = vpop.f32.mrb[0].mxu0
    %v3202 = vadd.f32 %v256, %v3201
    %v3203 = vpop.f32.mrb[0].mxu0
    %3204 = vmatprep.mubr.f32.mxu0 0.0
    %3205 = vmatmul.mubr.f32.gmra.mrb[0].mxu0 %v3115
    %v3206 = vpop.f32.mrb[0].mxu0
    %v3207 = vadd.f32 %v257, %v3206
    %v3208 = vpop.f32.mrb[0].mxu0
    %3209 = vdwg.mxu0
    %v3210 = vsel %vm281, %v3192, -inf
    %3211 = vmax.xlane.f32.xlu0 %v3210
    %v3212 = vpop.xlane.xlu0 %3211
    %v3213 = vsel %vm281, %v3197, -inf
    %3214 = vmax.xlane.f32.xlu0 %v3213
    %v3215 = vpop.xlane.xlu0 %3214
    %v3216 = vsel %vm281, %v3202, -inf
    %3217 = vmax.xlane.f32.xlu0 %v3216
    %v3218 = vpop.xlane.xlu0 %3217
    %v3219 = vsel %vm281, %v3207, -inf
    %3220 = vmax.xlane.f32.xlu0 %v3219
    %v3221 = vpop.xlane.xlu0 %3220
    %v3222 = vsub.f32 %v3192, %v3212
    %v3223 = vsub.f32 %v3197, %v3215
    %v3224 = vsub.f32 %v3202, %v3218
    %v3225 = vsub.f32 %v3207, %v3221
    %v3226 = vmul.f32 %v3222, 1.442695
    %v3227 = vpow.pop %v3226
    %v3228 = vmul.f32 %v3223, 1.442695
    %v3229 = vpow.pop %v3228
    %v3230 = vmul.f32 %v3224, 1.442695
    %v3231 = vpow.pop %v3230
    %v3232 = vmul.f32 %v3225, 1.442695
    %v3233 = vpow.pop %v3232
    %v3234 = vsel %vm281, %v3227, 0.0
    %3235 = vadd.xlane.f32.xlu0 %v3234
    %v3236 = vpop.xlane.xlu0 %3235
    %v3237 = vsel %vm281, %v3229, 0.0
    %3238 = vadd.xlane.f32.xlu0 %v3237
    %v3239 = vpop.xlane.xlu0 %3238
    %v3240 = vsel %vm281, %v3231, 0.0
    %3241 = vadd.xlane.f32.xlu0 %v3240
    %v3242 = vpop.xlane.xlu0 %3241
    %v3243 = vsel %vm281, %v3233, 0.0
    %3244 = vadd.xlane.f32.xlu0 %v3243
    %v3245 = vpop.xlane.xlu0 %3244
    %v3246 = vrcp.pop %v3236
    %v3247 = vrcp.pop %v3239
    %v3248 = vrcp.pop %v3242
    %v3249 = vrcp.pop %v3245
    %v3250 = vmul.f32 %v3227, %v3246
    %v3251 = vmul.f32 %v3229, %v3247
    %v3252 = vmul.f32 %v3231, %v3248
    %v3253 = vmul.f32 %v3233, %v3249
    %3258 = vrot.lane.b32.xlu0 %v2825, 120
    %v3259 = vpop.permute.xlu0 %3258
    %3260 = vrot.lane.b32.xlu0 %v2830, 120
    %v3261 = vpop.permute.xlu0 %3260
    %3262 = vrot.lane.b32.xlu0 %v2835, 120
    %v3263 = vpop.permute.xlu0 %3262
    %3264 = vrot.lane.b32.xlu0 %v2840, 120
    %v3265 = vpop.permute.xlu0 %3264
    %v3271 = vsel %vm281, %v3250, 0
    %v3274 = vsel %vm281, %v3251, 0
    %v3277 = vsel %vm281, %v3252, 0
    %v3280 = vsel %vm281, %v3253, 0
    %3282 = vmatprep.subr.mxu0 0.0
    %3283 = vmatpush1.msra.mxu0 %v3259
    %3284 = vmatprep.subr.mxu0 0.0
    %3285 = vmatpush1.msra.mxu0 %v3261
    %3286 = vmatprep.subr.mxu0 0.0
    %3287 = vmatpush1.msra.mxu0 %v3263
    %3288 = vmatprep.subr.mxu0 0.0
    %3289 = vmatpush1.msra.mxu0 %v3265
    %3290 = vmatprep.subr.mxu0 0.0
    %3291 = vmatpush1.msra.mxu0 0.0
    %3292 = vmatprep.subr.mxu0 0.0
    %3293 = vmatpush1.msra.mxu0 0.0
    %3294 = vmatprep.subr.mxu0 0.0
    %3295 = vmatpush1.msra.mxu0 0.0
    %3296 = vmatprep.subr.mxu0 0.0
    %3297 = vmatpush1.msra.mxu0 0.0
    %3298 = vmatprep.subr.mxu0 0.0
    %3299 = vmatpush1.msra.mxu0 0.0
    %3300 = vmatprep.subr.mxu0 0.0
    %3301 = vmatpush1.msra.mxu0 0.0
    %3302 = vmatprep.subr.mxu0 0.0
    %3303 = vmatpush1.msra.mxu0 0.0
    %3304 = vmatprep.subr.mxu0 0.0
    %3305 = vmatpush1.msra.mxu0 0.0
    %3306 = vmatprep.subr.mxu0 0.0
    %3307 = vmatpush1.msra.mxu0 0.0
    %3308 = vmatprep.subr.mxu0 0.0
    %3309 = vmatpush1.msra.mxu0 0.0
    %3310 = vmatprep.subr.mxu0 0.0
    %3311 = vmatpush1.msra.mxu0 0.0
    %3312 = vmatprep.subr.mxu0 0.0
    %3313 = vmatpush1.msra.mxu0 0.0
    %3314 = vmatprep.subr.mxu0 0.0
    %3315 = vmatpush1.msra.mxu0 0.0
    %3316 = vmatprep.subr.mxu0 0.0
    %3317 = vmatpush1.msra.mxu0 0.0
    %3318 = vmatprep.subr.mxu0 0.0
    %3319 = vmatpush1.msra.mxu0 0.0
    %3320 = vmatprep.subr.mxu0 0.0
    %3321 = vmatpush1.msra.mxu0 0.0
    %3322 = vmatprep.subr.mxu0 0.0
    %3323 = vmatpush1.msra.mxu0 0.0
    %3324 = vmatprep.subr.mxu0 0.0
    %3325 = vmatpush1.msra.mxu0 0.0
    %3326 = vmatprep.subr.mxu0 0.0
    %3327 = vmatpush1.msra.mxu0 0.0
    %3328 = vmatprep.subr.mxu0 0.0
    %3329 = vmatpush1.msra.mxu0 0.0
    %3330 = vmatprep.subr.mxu0 0.0
    %3331 = vmatpush1.msra.mxu0 0.0
    %3332 = vmatprep.subr.mxu0 0.0
    %3333 = vmatpush1.msra.mxu0 0.0
    %3334 = vmatprep.subr.mxu0 0.0
    %3335 = vmatpush1.msra.mxu0 0.0
    %3336 = vmatprep.subr.mxu0 0.0
    %3337 = vmatpush1.msra.mxu0 0.0
    %3338 = vmatprep.subr.mxu0 0.0
    %3339 = vmatpush1.msra.mxu0 0.0
    %3340 = vmatprep.subr.mxu0 0.0
    %3341 = vmatpush1.msra.mxu0 0.0
    %3342 = vmatprep.subr.mxu0 0.0
    %3343 = vmatpush1.msra.mxu0 0.0
    %3344 = vmatprep.subr.mxu0 0.0
    %3345 = vmatpush1.msra.mxu0 0.0
    %3346 = vmatprep.mubr.f32.mxu0 0.0
    %3347 = vmatmul.mubr.f32.gmra.mrb[0].mxu0 %v3271
    %v3348 = vpop.f32.mrb[0].mxu0
    %v3349 = vadd.f32 0.0, %v3348
    %v3350 = vpop.f32.mrb[0].mxu0
    %3351 = vmatprep.mubr.f32.mxu0 0.0
    %3352 = vmatmul.mubr.f32.gmra.mrb[0].mxu0 %v3274
    %v3353 = vpop.f32.mrb[0].mxu0
    %v3354 = vadd.f32 0.0, %v3353
    %v3355 = vpop.f32.mrb[0].mxu0
    %3356 = vmatprep.mubr.f32.mxu0 0.0
    %3357 = vmatmul.mubr.f32.gmra.mrb[0].mxu0 %v3277
    %v3358 = vpop.f32.mrb[0].mxu0
    %v3359 = vadd.f32 0.0, %v3358
    %v3360 = vpop.f32.mrb[0].mxu0
    %3361 = vmatprep.mubr.f32.mxu0 0.0
    %3362 = vmatmul.mubr.f32.gmra.mrb[0].mxu0 %v3280
    %v3363 = vpop.f32.mrb[0].mxu0
    %v3364 = vadd.f32 0.0, %v3363
    %v3365 = vpop.f32.mrb[0].mxu0
    %3366 = vdwg.mxu0
    %v3368 = vsel %vm683, %v3349, 0
    %v3371 = vsel %vm683, %v3354, 0
    %v3374 = vsel %vm683, %v3359, 0
    %v3377 = vsel %vm683, %v3364, 0
    %3379 = vmatprep.subr.mxu0 0.0
    %3380 = vmatpush1.msra.mxu0 %v2549
    %3381 = vmatprep.subr.mxu0 0.0
    %3382 = vmatpush1.msra.mxu0 0.0
    %3383 = vmatprep.subr.mxu0 0.0
    %3384 = vmatpush1.msra.mxu0 0.0
    %3385 = vmatprep.subr.mxu0 0.0
    %3386 = vmatpush1.msra.mxu0 0.0
    %3387 = vmatprep.subr.mxu0 0.0
    %3388 = vmatpush1.msra.mxu0 0.0
    %3389 = vmatprep.subr.mxu0 0.0
    %3390 = vmatpush1.msra.mxu0 0.0
    %3391 = vmatprep.subr.mxu0 0.0
    %3392 = vmatpush1.msra.mxu0 0.0
    %3393 = vmatprep.subr.mxu0 0.0
    %3394 = vmatpush1.msra.mxu0 0.0
    %3395 = vmatprep.subr.mxu0 0.0
    %3396 = vmatpush1.msra.mxu0 0.0
    %3397 = vmatprep.subr.mxu0 0.0
    %3398 = vmatpush1.msra.mxu0 0.0
    %3399 = vmatprep.subr.mxu0 0.0
    %3400 = vmatpush1.msra.mxu0 0.0
    %3401 = vmatprep.subr.mxu0 0.0
    %3402 = vmatpush1.msra.mxu0 0.0
    %3403 = vmatprep.subr.mxu0 0.0
    %3404 = vmatpush1.msra.mxu0 0.0
    %3405 = vmatprep.subr.mxu0 0.0
    %3406 = vmatpush1.msra.mxu0 0.0
    %3407 = vmatprep.subr.mxu0 0.0
    %3408 = vmatpush1.msra.mxu0 0.0
    %3409 = vmatprep.subr.mxu0 0.0
    %3410 = vmatpush1.msra.mxu0 0.0
    %3411 = vmatprep.subr.mxu0 0.0
    %3412 = vmatpush1.msra.mxu0 0.0
    %3413 = vmatprep.subr.mxu0 0.0
    %3414 = vmatpush1.msra.mxu0 0.0
    %3415 = vmatprep.subr.mxu0 0.0
    %3416 = vmatpush1.msra.mxu0 0.0
    %3417 = vmatprep.subr.mxu0 0.0
    %3418 = vmatpush1.msra.mxu0 0.0
    %3419 = vmatprep.subr.mxu0 0.0
    %3420 = vmatpush1.msra.mxu0 0.0
    %3421 = vmatprep.subr.mxu0 0.0
    %3422 = vmatpush1.msra.mxu0 0.0
    %3423 = vmatprep.subr.mxu0 0.0
    %3424 = vmatpush1.msra.mxu0 0.0
    %3425 = vmatprep.subr.mxu0 0.0
    %3426 = vmatpush1.msra.mxu0 0.0
    %3427 = vmatprep.subr.mxu0 0.0
    %3428 = vmatpush1.msra.mxu0 0.0
    %3429 = vmatprep.subr.mxu0 0.0
    %3430 = vmatpush1.msra.mxu0 0.0
    %3431 = vmatprep.subr.mxu0 0.0
    %3432 = vmatpush1.msra.mxu0 0.0
    %3433 = vmatprep.subr.mxu0 0.0
    %3434 = vmatpush1.msra.mxu0 0.0
    %3435 = vmatprep.subr.mxu0 0.0
    %3436 = vmatpush1.msra.mxu0 0.0
    %3437 = vmatprep.subr.mxu0 0.0
    %3438 = vmatpush1.msra.mxu0 0.0
    %3439 = vmatprep.subr.mxu0 0.0
    %3440 = vmatpush1.msra.mxu0 0.0
    %3441 = vmatprep.subr.mxu0 0.0
    %3442 = vmatpush1.msra.mxu0 0.0
    %3443 = vmatprep.mubr.f32.mxu0 0.0
    %3444 = vmatmul.mubr.f32.gmra.mrb[0].mxu0 %v3368
    %v3445 = vpop.f32.mrb[0].mxu0
    %v3446 = vadd.f32 0.0, %v3445
    %v3447 = vpop.f32.mrb[0].mxu0
    %3448 = vmatprep.mubr.f32.mxu0 0.0
    %3449 = vmatmul.mubr.f32.gmra.mrb[0].mxu0 %v3371
    %v3450 = vpop.f32.mrb[0].mxu0
    %v3451 = vadd.f32 0.0, %v3450
    %v3452 = vpop.f32.mrb[0].mxu0
    %3453 = vmatprep.mubr.f32.mxu0 0.0
    %3454 = vmatmul.mubr.f32.gmra.mrb[0].mxu0 %v3374
    %v3455 = vpop.f32.mrb[0].mxu0
    %v3456 = vadd.f32 0.0, %v3455
    %v3457 = vpop.f32.mrb[0].mxu0
    %3458 = vmatprep.mubr.f32.mxu0 0.0
    %3459 = vmatmul.mubr.f32.gmra.mrb[0].mxu0 %v3377
    %v3460 = vpop.f32.mrb[0].mxu0
    %v3461 = vadd.f32 0.0, %v3460
    %v3462 = vpop.f32.mrb[0].mxu0
    %3463 = vdwg.mxu0
    %v3465 = vsel %vm683, %v3075, 0
    %v3468 = vsel %vm683, %v3080, 0
    %v3471 = vsel %vm683, %v3085, 0
    %v3474 = vsel %vm683, %v3090, 0
    %3476 = vmatprep.subr.mxu0 0.0
    %3477 = vmatpush1.msra.mxu0 %v2548
    %3478 = vmatprep.subr.mxu0 0.0
    %3479 = vmatpush1.msra.mxu0 0.0
    %3480 = vmatprep.subr.mxu0 0.0
    %3481 = vmatpush1.msra.mxu0 0.0
    %3482 = vmatprep.subr.mxu0 0.0
    %3483 = vmatpush1.msra.mxu0 0.0
    %3484 = vmatprep.subr.mxu0 0.0
    %3485 = vmatpush1.msra.mxu0 0.0
    %3486 = vmatprep.subr.mxu0 0.0
    %3487 = vmatpush1.msra.mxu0 0.0
    %3488 = vmatprep.subr.mxu0 0.0
    %3489 = vmatpush1.msra.mxu0 0.0
    %3490 = vmatprep.subr.mxu0 0.0
    %3491 = vmatpush1.msra.mxu0 0.0
    %3492 = vmatprep.subr.mxu0 0.0
    %3493 = vmatpush1.msra.mxu0 0.0
    %3494 = vmatprep.subr.mxu0 0.0
    %3495 = vmatpush1.msra.mxu0 0.0
    %3496 = vmatprep.subr.mxu0 0.0
    %3497 = vmatpush1.msra.mxu0 0.0
    %3498 = vmatprep.subr.mxu0 0.0
    %3499 = vmatpush1.msra.mxu0 0.0
    %3500 = vmatprep.subr.mxu0 0.0
    %3501 = vmatpush1.msra.mxu0 0.0
    %3502 = vmatprep.subr.mxu0 0.0
    %3503 = vmatpush1.msra.mxu0 0.0
    %3504 = vmatprep.subr.mxu0 0.0
    %3505 = vmatpush1.msra.mxu0 0.0
    %3506 = vmatprep.subr.mxu0 0.0
    %3507 = vmatpush1.msra.mxu0 0.0
    %3508 = vmatprep.subr.mxu0 0.0
    %3509 = vmatpush1.msra.mxu0 0.0
    %3510 = vmatprep.subr.mxu0 0.0
    %3511 = vmatpush1.msra.mxu0 0.0
    %3512 = vmatprep.subr.mxu0 0.0
    %3513 = vmatpush1.msra.mxu0 0.0
    %3514 = vmatprep.subr.mxu0 0.0
    %3515 = vmatpush1.msra.mxu0 0.0
    %3516 = vmatprep.subr.mxu0 0.0
    %3517 = vmatpush1.msra.mxu0 0.0
    %3518 = vmatprep.subr.mxu0 0.0
    %3519 = vmatpush1.msra.mxu0 0.0
    %3520 = vmatprep.subr.mxu0 0.0
    %3521 = vmatpush1.msra.mxu0 0.0
    %3522 = vmatprep.subr.mxu0 0.0
    %3523 = vmatpush1.msra.mxu0 0.0
    %3524 = vmatprep.subr.mxu0 0.0
    %3525 = vmatpush1.msra.mxu0 0.0
    %3526 = vmatprep.subr.mxu0 0.0
    %3527 = vmatpush1.msra.mxu0 0.0
    %3528 = vmatprep.subr.mxu0 0.0
    %3529 = vmatpush1.msra.mxu0 0.0
    %3530 = vmatprep.subr.mxu0 0.0
    %3531 = vmatpush1.msra.mxu0 0.0
    %3532 = vmatprep.subr.mxu0 0.0
    %3533 = vmatpush1.msra.mxu0 0.0
    %3534 = vmatprep.subr.mxu0 0.0
    %3535 = vmatpush1.msra.mxu0 0.0
    %3536 = vmatprep.subr.mxu0 0.0
    %3537 = vmatpush1.msra.mxu0 0.0
    %3538 = vmatprep.subr.mxu0 0.0
    %3539 = vmatpush1.msra.mxu0 0.0
    %3540 = vmatprep.mubr.f32.mxu0 0.0
    %3541 = vmatmul.mubr.f32.gmra.mrb[0].mxu0 %v3465
    %v3542 = vpop.f32.mrb[0].mxu0
    %v3543 = vadd.f32 %v3446, %v3542
    %v3544 = vpop.f32.mrb[0].mxu0
    %3545 = vmatprep.mubr.f32.mxu0 0.0
    %3546 = vmatmul.mubr.f32.gmra.mrb[0].mxu0 %v3468
    %v3547 = vpop.f32.mrb[0].mxu0
    %v3548 = vadd.f32 %v3451, %v3547
    %v3549 = vpop.f32.mrb[0].mxu0
    %3550 = vmatprep.mubr.f32.mxu0 0.0
    %3551 = vmatmul.mubr.f32.gmra.mrb[0].mxu0 %v3471
    %v3552 = vpop.f32.mrb[0].mxu0
    %v3553 = vadd.f32 %v3456, %v3552
    %v3554 = vpop.f32.mrb[0].mxu0
    %3555 = vmatprep.mubr.f32.mxu0 0.0
    %3556 = vmatmul.mubr.f32.gmra.mrb[0].mxu0 %v3474
    %v3557 = vpop.f32.mrb[0].mxu0
    %v3558 = vadd.f32 %v3461, %v3557
    %v3559 = vpop.f32.mrb[0].mxu0
    %3560 = vdwg.mxu0
    %3561 = vrot.lane.b32.xlu0 %v2639, 112
    %v3562 = vpop.permute.xlu0 %3561
    %3563 = vrot.lane.b32.xlu0 %v2644, 112
    %v3564 = vpop.permute.xlu0 %3563
    %3565 = vrot.lane.b32.xlu0 %v2649, 112
    %v3566 = vpop.permute.xlu0 %3565
    %3567 = vrot.lane.b32.xlu0 %v2654, 112
    %v3568 = vpop.permute.xlu0 %3567
    %3569 = vrot.lane.b32.xlu0 %v2732, 112
    %v3570 = vpop.permute.xlu0 %3569
    %3571 = vrot.lane.b32.xlu0 %v2737, 112
    %v3572 = vpop.permute.xlu0 %3571
    %3573 = vrot.lane.b32.xlu0 %v2742, 112
    %v3574 = vpop.permute.xlu0 %3573
    %3575 = vrot.lane.b32.xlu0 %v2747, 112
    %v3576 = vpop.permute.xlu0 %3575
    %v3577 = vsel %vm683, %v3562, 0
    %v3579 = vsel %vm683, %v3564, 0
    %v3581 = vsel %vm683, %v3566, 0
    %v3583 = vsel %vm683, %v3568, 0
    %v3585 = vsel %vm683, %v3570, 0
    %v3587 = vsel %vm683, %v3572, 0
    %v3589 = vsel %vm683, %v3574, 0
    %v3591 = vsel %vm683, %v3576, 0
    %3593 = vmatprep.subr.mxu0 0.0
    %3594 = vmatpush1.xpose.msra.mxu0 %v3585
    %3595 = vmatprep.subr.mxu0 0.0
    %3596 = vmatpush1.xpose.msra.mxu0 %v3587
    %3597 = vmatprep.subr.mxu0 0.0
    %3598 = vmatpush1.xpose.msra.mxu0 %v3589
    %3599 = vmatprep.subr.mxu0 0.0
    %3600 = vmatpush1.xpose.msra.mxu0 %v3591
    %3601 = vmatprep.subr.mxu0 0.0
    %3602 = vmatpush1.xpose.msra.mxu0 0.0
    %3603 = vmatprep.subr.mxu0 0.0
    %3604 = vmatpush1.xpose.msra.mxu0 0.0
    %3605 = vmatprep.subr.mxu0 0.0
    %3606 = vmatpush1.xpose.msra.mxu0 0.0
    %3607 = vmatprep.subr.mxu0 0.0
    %3608 = vmatpush1.xpose.msra.mxu0 0.0
    %3609 = vmatprep.subr.mxu0 0.0
    %3610 = vmatpush1.xpose.msra.mxu0 0.0
    %3611 = vmatprep.subr.mxu0 0.0
    %3612 = vmatpush1.xpose.msra.mxu0 0.0
    %3613 = vmatprep.subr.mxu0 0.0
    %3614 = vmatpush1.xpose.msra.mxu0 0.0
    %3615 = vmatprep.subr.mxu0 0.0
    %3616 = vmatpush1.xpose.msra.mxu0 0.0
    %3617 = vmatprep.subr.mxu0 0.0
    %3618 = vmatpush1.xpose.msra.mxu0 0.0
    %3619 = vmatprep.subr.mxu0 0.0
    %3620 = vmatpush1.xpose.msra.mxu0 0.0
    %3621 = vmatprep.subr.mxu0 0.0
    %3622 = vmatpush1.xpose.msra.mxu0 0.0
    %3623 = vmatprep.subr.mxu0 0.0
    %3624 = vmatpush1.xpose.msra.mxu0 0.0
    %3625 = vmatprep.subr.mxu0 0.0
    %3626 = vmatpush1.xpose.msra.mxu0 0.0
    %3627 = vmatprep.subr.mxu0 0.0
    %3628 = vmatpush1.xpose.msra.mxu0 0.0
    %3629 = vmatprep.subr.mxu0 0.0
    %3630 = vmatpush1.xpose.msra.mxu0 0.0
    %3631 = vmatprep.subr.mxu0 0.0
    %3632 = vmatpush1.xpose.msra.mxu0 0.0
    %3633 = vmatprep.subr.mxu0 0.0
    %3634 = vmatpush1.xpose.msra.mxu0 0.0
    %3635 = vmatprep.subr.mxu0 0.0
    %3636 = vmatpush1.xpose.msra.mxu0 0.0
    %3637 = vmatprep.subr.mxu0 0.0
    %3638 = vmatpush1.xpose.msra.mxu0 0.0
    %3639 = vmatprep.subr.mxu0 0.0
    %3640 = vmatpush1.xpose.msra.mxu0 0.0
    %3641 = vmatprep.subr.mxu0 0.0
    %3642 = vmatpush1.xpose.msra.mxu0 0.0
    %3643 = vmatprep.subr.mxu0 0.0
    %3644 = vmatpush1.xpose.msra.mxu0 0.0
    %3645 = vmatprep.subr.mxu0 0.0
    %3646 = vmatpush1.xpose.msra.mxu0 0.0
    %3647 = vmatprep.subr.mxu0 0.0
    %3648 = vmatpush1.xpose.msra.mxu0 0.0
    %3649 = vmatprep.subr.mxu0 0.0
    %3650 = vmatpush1.xpose.msra.mxu0 0.0
    %3651 = vmatprep.subr.mxu0 0.0
    %3652 = vmatpush1.xpose.msra.mxu0 0.0
    %3653 = vmatprep.subr.mxu0 0.0
    %3654 = vmatpush1.xpose.msra.mxu0 0.0
    %3655 = vmatprep.subr.mxu0 0.0
    %3656 = vmatpush1.xpose.msra.mxu0 0.0
    %3657 = vmatprep.mubr.f32.mxu0 0.0
    %3658 = vmatmul.mubr.f32.gmra.mrb[0].mxu0 %v3577
    %v3659 = vpop.f32.mrb[0].mxu0
    %v3660 = vadd.f32 %v254, %v3659
    %v3661 = vpop.f32.mrb[0].mxu0
    %3662 = vmatprep.mubr.f32.mxu0 0.0
    %3663 = vmatmul.mubr.f32.gmra.mrb[0].mxu0 %v3579
    %v3664 = vpop.f32.mrb[0].mxu0
    %v3665 = vadd.f32 %v255, %v3664
    %v3666 = vpop.f32.mrb[0].mxu0
    %3667 = vmatprep.mubr.f32.mxu0 0.0
    %3668 = vmatmul.mubr.f32.gmra.mrb[0].mxu0 %v3581
    %v3669 = vpop.f32.mrb[0].mxu0
    %v3670 = vadd.f32 %v256, %v3669
    %v3671 = vpop.f32.mrb[0].mxu0
    %3672 = vmatprep.mubr.f32.mxu0 0.0
    %3673 = vmatmul.mubr.f32.gmra.mrb[0].mxu0 %v3583
    %v3674 = vpop.f32.mrb[0].mxu0
    %v3675 = vadd.f32 %v257, %v3674
    %v3676 = vpop.f32.mrb[0].mxu0
    %3677 = vdwg.mxu0
    %v3678 = vsel %vm281, %v3660, -inf
    %3679 = vmax.xlane.f32.xlu0 %v3678
    %v3680 = vpop.xlane.xlu0 %3679
    %v3681 = vsel %vm281, %v3665, -inf
    %3682 = vmax.xlane.f32.xlu0 %v3681
    %v3683 = vpop.xlane.xlu0 %3682
    %v3684 = vsel %vm281, %v3670, -inf
    %3685 = vmax.xlane.f32.xlu0 %v3684
    %v3686 = vpop.xlane.xlu0 %3685
    %v3687 = vsel %vm281, %v3675, -inf
    %3688 = vmax.xlane.f32.xlu0 %v3687
    %v3689 = vpop.xlane.xlu0 %3688
    %v3690 = vsub.f32 %v3660, %v3680
    %v3691 = vsub.f32 %v3665, %v3683
    %v3692 = vsub.f32 %v3670, %v3686
    %v3693 = vsub.f32 %v3675, %v3689
    %v3694 = vmul.f32 %v3690, 1.442695
    %v3695 = vpow.pop %v3694
    %v3696 = vmul.f32 %v3691, 1.442695
    %v3697 = vpow.pop %v3696
    %v3698 = vmul.f32 %v3692, 1.442695
    %v3699 = vpow.pop %v3698
    %v3700 = vmul.f32 %v3693, 1.442695
    %v3701 = vpow.pop %v3700
    %v3702 = vsel %vm281, %v3695, 0.0
    %3703 = vadd.xlane.f32.xlu0 %v3702
    %v3704 = vpop.xlane.xlu0 %3703
    %v3705 = vsel %vm281, %v3697, 0.0
    %3706 = vadd.xlane.f32.xlu0 %v3705
    %v3707 = vpop.xlane.xlu0 %3706
    %v3708 = vsel %vm281, %v3699, 0.0
    %3709 = vadd.xlane.f32.xlu0 %v3708
    %v3710 = vpop.xlane.xlu0 %3709
    %v3711 = vsel %vm281, %v3701, 0.0
    %3712 = vadd.xlane.f32.xlu0 %v3711
    %v3713 = vpop.xlane.xlu0 %3712
    %v3714 = vrcp.pop %v3704
    %v3715 = vrcp.pop %v3707
    %v3716 = vrcp.pop %v3710
    %v3717 = vrcp.pop %v3713
    %v3718 = vmul.f32 %v3695, %v3714
    %v3719 = vmul.f32 %v3697, %v3715
    %v3720 = vmul.f32 %v3699, %v3716
    %v3721 = vmul.f32 %v3701, %v3717
    %3722 = vrot.lane.b32.xlu0 %v2825, 112
    %v3723 = vpop.permute.xlu0 %3722
    %3724 = vrot.lane.b32.xlu0 %v2830, 112
    %v3725 = vpop.permute.xlu0 %3724
    %3726 = vrot.lane.b32.xlu0 %v2835, 112
    %v3727 = vpop.permute.xlu0 %3726
    %3728 = vrot.lane.b32.xlu0 %v2840, 112
    %v3729 = vpop.permute.xlu0 %3728
    %v3735 = vsel %vm281, %v3718, 0
    %v3738 = vsel %vm281, %v3719, 0
    %v3741 = vsel %vm281, %v3720, 0
    %v3744 = vsel %vm281, %v3721, 0
    %3746 = vmatprep.subr.mxu0 0.0
    %3747 = vmatpush1.msra.mxu0 %v3723
    %3748 = vmatprep.subr.mxu0 0.0
    %3749 = vmatpush1.msra.mxu0 %v3725
    %3750 = vmatprep.subr.mxu0 0.0
    %3751 = vmatpush1.msra.mxu0 %v3727
    %3752 = vmatprep.subr.mxu0 0.0
    %3753 = vmatpush1.msra.mxu0 %v3729
    %3754 = vmatprep.subr.mxu0 0.0
    %3755 = vmatpush1.msra.mxu0 0.0
    %3756 = vmatprep.subr.mxu0 0.0
    %3757 = vmatpush1.msra.mxu0 0.0
    %3758 = vmatprep.subr.mxu0 0.0
    %3759 = vmatpush1.msra.mxu0 0.0
    %3760 = vmatprep.subr.mxu0 0.0
    %3761 = vmatpush1.msra.mxu0 0.0
    %3762 = vmatprep.subr.mxu0 0.0
    %3763 = vmatpush1.msra.mxu0 0.0
    %3764 = vmatprep.subr.mxu0 0.0
    %3765 = vmatpush1.msra.mxu0 0.0
    %3766 = vmatprep.subr.mxu0 0.0
    %3767 = vmatpush1.msra.mxu0 0.0
    %3768 = vmatprep.subr.mxu0 0.0
    %3769 = vmatpush1.msra.mxu0 0.0
    %3770 = vmatprep.subr.mxu0 0.0
    %3771 = vmatpush1.msra.mxu0 0.0
    %3772 = vmatprep.subr.mxu0 0.0
    %3773 = vmatpush1.msra.mxu0 0.0
    %3774 = vmatprep.subr.mxu0 0.0
    %3775 = vmatpush1.msra.mxu0 0.0
    %3776 = vmatprep.subr.mxu0 0.0
    %3777 = vmatpush1.msra.mxu0 0.0
    %3778 = vmatprep.subr.mxu0 0.0
    %3779 = vmatpush1.msra.mxu0 0.0
    %3780 = vmatprep.subr.mxu0 0.0
    %3781 = vmatpush1.msra.mxu0 0.0
    %3782 = vmatprep.subr.mxu0 0.0
    %3783 = vmatpush1.msra.mxu0 0.0
    %3784 = vmatprep.subr.mxu0 0.0
    %3785 = vmatpush1.msra.mxu0 0.0
    %3786 = vmatprep.subr.mxu0 0.0
    %3787 = vmatpush1.msra.mxu0 0.0
    %3788 = vmatprep.subr.mxu0 0.0
    %3789 = vmatpush1.msra.mxu0 0.0
    %3790 = vmatprep.subr.mxu0 0.0
    %3791 = vmatpush1.msra.mxu0 0.0
    %3792 = vmatprep.subr.mxu0 0.0
    %3793 = vmatpush1.msra.mxu0 0.0
    %3794 = vmatprep.subr.mxu0 0.0
    %3795 = vmatpush1.msra.mxu0 0.0
    %3796 = vmatprep.subr.mxu0 0.0
    %3797 = vmatpush1.msra.mxu0 0.0
    %3798 = vmatprep.subr.mxu0 0.0
    %3799 = vmatpush1.msra.mxu0 0.0
    %3800 = vmatprep.subr.mxu0 0.0
    %3801 = vmatpush1.msra.mxu0 0.0
    %3802 = vmatprep.subr.mxu0 0.0
    %3803 = vmatpush1.msra.mxu0 0.0
    %3804 = vmatprep.subr.mxu0 0.0
    %3805 = vmatpush1.msra.mxu0 0.0
    %3806 = vmatprep.subr.mxu0 0.0
    %3807 = vmatpush1.msra.mxu0 0.0
    %3808 = vmatprep.subr.mxu0 0.0
    %3809 = vmatpush1.msra.mxu0 0.0
    %3810 = vmatprep.mubr.f32.mxu0 0.0
    %3811 = vmatmul.mubr.f32.gmra.mrb[0].mxu0 %v3735
    %v3812 = vpop.f32.mrb[0].mxu0
    %v3813 = vadd.f32 0.0, %v3812
    %v3814 = vpop.f32.mrb[0].mxu0
    %3815 = vmatprep.mubr.f32.mxu0 0.0
    %3816 = vmatmul.mubr.f32.gmra.mrb[0].mxu0 %v3738
    %v3817 = vpop.f32.mrb[0].mxu0
    %v3818 = vadd.f32 0.0, %v3817
    %v3819 = vpop.f32.mrb[0].mxu0
    %3820 = vmatprep.mubr.f32.mxu0 0.0
    %3821 = vmatmul.mubr.f32.gmra.mrb[0].mxu0 %v3741
    %v3822 = vpop.f32.mrb[0].mxu0
    %v3823 = vadd.f32 0.0, %v3822
    %v3824 = vpop.f32.mrb[0].mxu0
    %3825 = vmatprep.mubr.f32.mxu0 0.0
    %3826 = vmatmul.mubr.f32.gmra.mrb[0].mxu0 %v3744
    %v3827 = vpop.f32.mrb[0].mxu0
    %v3828 = vadd.f32 0.0, %v3827
    %v3829 = vpop.f32.mrb[0].mxu0
    %3830 = vdwg.mxu0
    %v3832 = vsel %vm683, %v3813, 0
    %v3835 = vsel %vm683, %v3818, 0
    %v3838 = vsel %vm683, %v3823, 0
    %v3841 = vsel %vm683, %v3828, 0
    %3843 = vmatprep.subr.mxu0 0.0
    %3844 = vmatpush1.msra.mxu0 %v2550
    %3845 = vmatprep.subr.mxu0 0.0
    %3846 = vmatpush1.msra.mxu0 0.0
    %3847 = vmatprep.subr.mxu0 0.0
    %3848 = vmatpush1.msra.mxu0 0.0
    %3849 = vmatprep.subr.mxu0 0.0
    %3850 = vmatpush1.msra.mxu0 0.0
    %3851 = vmatprep.subr.mxu0 0.0
    %3852 = vmatpush1.msra.mxu0 0.0
    %3853 = vmatprep.subr.mxu0 0.0
    %3854 = vmatpush1.msra.mxu0 0.0
    %3855 = vmatprep.subr.mxu0 0.0
    %3856 = vmatpush1.msra.mxu0 0.0
    %3857 = vmatprep.subr.mxu0 0.0
    %3858 = vmatpush1.msra.mxu0 0.0
    %3859 = vmatprep.subr.mxu0 0.0
    %3860 = vmatpush1.msra.mxu0 0.0
    %3861 = vmatprep.subr.mxu0 0.0
    %3862 = vmatpush1.msra.mxu0 0.0
    %3863 = vmatprep.subr.mxu0 0.0
    %3864 = vmatpush1.msra.mxu0 0.0
    %3865 = vmatprep.subr.mxu0 0.0
    %3866 = vmatpush1.msra.mxu0 0.0
    %3867 = vmatprep.subr.mxu0 0.0
    %3868 = vmatpush1.msra.mxu0 0.0
    %3869 = vmatprep.subr.mxu0 0.0
    %3870 = vmatpush1.msra.mxu0 0.0
    %3871 = vmatprep.subr.mxu0 0.0
    %3872 = vmatpush1.msra.mxu0 0.0
    %3873 = vmatprep.subr.mxu0 0.0
    %3874 = vmatpush1.msra.mxu0 0.0
    %3875 = vmatprep.subr.mxu0 0.0
    %3876 = vmatpush1.msra.mxu0 0.0
    %3877 = vmatprep.subr.mxu0 0.0
    %3878 = vmatpush1.msra.mxu0 0.0
    %3879 = vmatprep.subr.mxu0 0.0
    %3880 = vmatpush1.msra.mxu0 0.0
    %3881 = vmatprep.subr.mxu0 0.0
    %3882 = vmatpush1.msra.mxu0 0.0
    %3883 = vmatprep.subr.mxu0 0.0
    %3884 = vmatpush1.msra.mxu0 0.0
    %3885 = vmatprep.subr.mxu0 0.0
    %3886 = vmatpush1.msra.mxu0 0.0
    %3887 = vmatprep.subr.mxu0 0.0
    %3888 = vmatpush1.msra.mxu0 0.0
    %3889 = vmatprep.subr.mxu0 0.0
    %3890 = vmatpush1.msra.mxu0 0.0
    %3891 = vmatprep.subr.mxu0 0.0
    %3892 = vmatpush1.msra.mxu0 0.0
    %3893 = vmatprep.subr.mxu0 0.0
    %3894 = vmatpush1.msra.mxu0 0.0
    %3895 = vmatprep.subr.mxu0 0.0
    %3896 = vmatpush1.msra.mxu0 0.0
    %3897 = vmatprep.subr.mxu0 0.0
    %3898 = vmatpush1.msra.mxu0 0.0
    %3899 = vmatprep.subr.mxu0 0.0
    %3900 = vmatpush1.msra.mxu0 0.0
    %3901 = vmatprep.subr.mxu0 0.0
    %3902 = vmatpush1.msra.mxu0 0.0
    %3903 = vmatprep.subr.mxu0 0.0
    %3904 = vmatpush1.msra.mxu0 0.0
    %3905 = vmatprep.subr.mxu0 0.0
    %3906 = vmatpush1.msra.mxu0 0.0
    %3907 = vmatprep.mubr.f32.mxu0 0.0
    %3908 = vmatmul.mubr.f32.gmra.mrb[0].mxu0 %v3832
    %v3909 = vpop.f32.mrb[0].mxu0
    %v3910 = vadd.f32 0.0, %v3909
    %v3911 = vpop.f32.mrb[0].mxu0
    %3912 = vmatprep.mubr.f32.mxu0 0.0
    %3913 = vmatmul.mubr.f32.gmra.mrb[0].mxu0 %v3835
    %v3914 = vpop.f32.mrb[0].mxu0
    %v3915 = vadd.f32 0.0, %v3914
    %v3916 = vpop.f32.mrb[0].mxu0
    %3917 = vmatprep.mubr.f32.mxu0 0.0
    %3918 = vmatmul.mubr.f32.gmra.mrb[0].mxu0 %v3838
    %v3919 = vpop.f32.mrb[0].mxu0
    %v3920 = vadd.f32 0.0, %v3919
    %v3921 = vpop.f32.mrb[0].mxu0
    %3922 = vmatprep.mubr.f32.mxu0 0.0
    %3923 = vmatmul.mubr.f32.gmra.mrb[0].mxu0 %v3841
    %v3924 = vpop.f32.mrb[0].mxu0
    %v3925 = vadd.f32 0.0, %v3924
    %v3926 = vpop.f32.mrb[0].mxu0
    %3927 = vdwg.mxu0
    %v3928 = vadd.f32 %v3543, %v3910
    %v3929 = vadd.f32 %v3548, %v3915
    %v3930 = vadd.f32 %v3553, %v3920
    %v3931 = vadd.f32 %v3558, %v3925
    %3932 = vrot.lane.b32.xlu0 %v2639, 104
    %v3933 = vpop.permute.xlu0 %3932
    %3934 = vrot.lane.b32.xlu0 %v2644, 104
    %v3935 = vpop.permute.xlu0 %3934
    %3936 = vrot.lane.b32.xlu0 %v2649, 104
    %v3937 = vpop.permute.xlu0 %3936
    %3938 = vrot.lane.b32.xlu0 %v2654, 104
    %v3939 = vpop.permute.xlu0 %3938
    %3940 = vrot.lane.b32.xlu0 %v2732, 104
    %v3941 = vpop.permute.xlu0 %3940
    %3942 = vrot.lane.b32.xlu0 %v2737, 104
    %v3943 = vpop.permute.xlu0 %3942
    %3944 = vrot.lane.b32.xlu0 %v2742, 104
    %v3945 = vpop.permute.xlu0 %3944
    %3946 = vrot.lane.b32.xlu0 %v2747, 104
    %v3947 = vpop.permute.xlu0 %3946
    %v3948 = vsel %vm683, %v3933, 0
    %v3950 = vsel %vm683, %v3935, 0
    %v3952 = vsel %vm683, %v3937, 0
    %v3954 = vsel %vm683, %v3939, 0
    %v3956 = vsel %vm683, %v3941, 0
    %v3958 = vsel %vm683, %v3943, 0
    %v3960 = vsel %vm683, %v3945, 0
    %v3962 = vsel %vm683, %v3947, 0
    %3964 = vmatprep.subr.mxu0 0.0
    %3965 = vmatpush1.xpose.msra.mxu0 %v3956
    %3966 = vmatprep.subr.mxu0 0.0
    %3967 = vmatpush1.xpose.msra.mxu0 %v3958
    %3968 = vmatprep.subr.mxu0 0.0
    %3969 = vmatpush1.xpose.msra.mxu0 %v3960
    %3970 = vmatprep.subr.mxu0 0.0
    %3971 = vmatpush1.xpose.msra.mxu0 %v3962
    %3972 = vmatprep.subr.mxu0 0.0
    %3973 = vmatpush1.xpose.msra.mxu0 0.0
    %3974 = vmatprep.subr.mxu0 0.0
    %3975 = vmatpush1.xpose.msra.mxu0 0.0
    %3976 = vmatprep.subr.mxu0 0.0
    %3977 = vmatpush1.xpose.msra.mxu0 0.0
    %3978 = vmatprep.subr.mxu0 0.0
    %3979 = vmatpush1.xpose.msra.mxu0 0.0
    %3980 = vmatprep.subr.mxu0 0.0
    %3981 = vmatpush1.xpose.msra.mxu0 0.0
    %3982 = vmatprep.subr.mxu0 0.0
    %3983 = vmatpush1.xpose.msra.mxu0 0.0
    %3984 = vmatprep.subr.mxu0 0.0
    %3985 = vmatpush1.xpose.msra.mxu0 0.0
    %3986 = vmatprep.subr.mxu0 0.0
    %3987 = vmatpush1.xpose.msra.mxu0 0.0
    %3988 = vmatprep.subr.mxu0 0.0
    %3989 = vmatpush1.xpose.msra.mxu0 0.0
    %3990 = vmatprep.subr.mxu0 0.0
    %3991 = vmatpush1.xpose.msra.mxu0 0.0
    %3992 = vmatprep.subr.mxu0 0.0
    %3993 = vmatpush1.xpose.msra.mxu0 0.0
    %3994 = vmatprep.subr.mxu0 0.0
    %3995 = vmatpush1.xpose.msra.mxu0 0.0
    %3996 = vmatprep.subr.mxu0 0.0
    %3997 = vmatpush1.xpose.msra.mxu0 0.0
    %3998 = vmatprep.subr.mxu0 0.0
    %3999 = vmatpush1.xpose.msra.mxu0 0.0
    %4000 = vmatprep.subr.mxu0 0.0
    %4001 = vmatpush1.xpose.msra.mxu0 0.0
    %4002 = vmatprep.subr.mxu0 0.0
    %4003 = vmatpush1.xpose.msra.mxu0 0.0
    %4004 = vmatprep.subr.mxu0 0.0
    %4005 = vmatpush1.xpose.msra.mxu0 0.0
    %4006 = vmatprep.subr.mxu0 0.0
    %4007 = vmatpush1.xpose.msra.mxu0 0.0
    %4008 = vmatprep.subr.mxu0 0.0
    %4009 = vmatpush1.xpose.msra.mxu0 0.0
    %4010 = vmatprep.subr.mxu0 0.0
    %4011 = vmatpush1.xpose.msra.mxu0 0.0
    %4012 = vmatprep.subr.mxu0 0.0
    %4013 = vmatpush1.xpose.msra.mxu0 0.0
    %4014 = vmatprep.subr.mxu0 0.0
    %4015 = vmatpush1.xpose.msra.mxu0 0.0
    %4016 = vmatprep.subr.mxu0 0.0
    %4017 = vmatpush1.xpose.msra.mxu0 0.0
    %4018 = vmatprep.subr.mxu0 0.0
    %4019 = vmatpush1.xpose.msra.mxu0 0.0
    %4020 = vmatprep.subr.mxu0 0.0
    %4021 = vmatpush1.xpose.msra.mxu0 0.0
    %4022 = vmatprep.subr.mxu0 0.0
    %4023 = vmatpush1.xpose.msra.mxu0 0.0
    %4024 = vmatprep.subr.mxu0 0.0
    %4025 = vmatpush1.xpose.msra.mxu0 0.0
    %4026 = vmatprep.subr.mxu0 0.0
    %4027 = vmatpush1.xpose.msra.mxu0 0.0
    %4028 = vmatprep.mubr.f32.mxu0 0.0
    %4029 = vmatmul.mubr.f32.gmra.mrb[0].mxu0 %v3948
    %v4030 = vpop.f32.mrb[0].mxu0
    %v4031 = vadd.f32 %v254, %v4030
    %v4032 = vpop.f32.mrb[0].mxu0
    %4033 = vmatprep.mubr.f32.mxu0 0.0
    %4034 = vmatmul.mubr.f32.gmra.mrb[0].mxu0 %v3950
    %v4035 = vpop.f32.mrb[0].mxu0
    %v4036 = vadd.f32 %v255, %v4035
    %v4037 = vpop.f32.mrb[0].mxu0
    %4038 = vmatprep.mubr.f32.mxu0 0.0
    %4039 = vmatmul.mubr.f32.gmra.mrb[0].mxu0 %v3952
    %v4040 = vpop.f32.mrb[0].mxu0
    %v4041 = vadd.f32 %v256, %v4040
    %v4042 = vpop.f32.mrb[0].mxu0
    %4043 = vmatprep.mubr.f32.mxu0 0.0
    %4044 = vmatmul.mubr.f32.gmra.mrb[0].mxu0 %v3954
    %v4045 = vpop.f32.mrb[0].mxu0
    %v4046 = vadd.f32 %v257, %v4045
    %v4047 = vpop.f32.mrb[0].mxu0
    %4048 = vdwg.mxu0
    %v4049 = vsel %vm281, %v4031, -inf
    %4050 = vmax.xlane.f32.xlu0 %v4049
    %v4051 = vpop.xlane.xlu0 %4050
    %v4052 = vsel %vm281, %v4036, -inf
    %4053 = vmax.xlane.f32.xlu0 %v4052
    %v4054 = vpop.xlane.xlu0 %4053
    %v4055 = vsel %vm281, %v4041, -inf
    %4056 = vmax.xlane.f32.xlu0 %v4055
    %v4057 = vpop.xlane.xlu0 %4056
    %v4058 = vsel %vm281, %v4046, -inf
    %4059 = vmax.xlane.f32.xlu0 %v4058
    %v4060 = vpop.xlane.xlu0 %4059
    %v4061 = vsub.f32 %v4031, %v4051
    %v4062 = vsub.f32 %v4036, %v4054
    %v4063 = vsub.f32 %v4041, %v4057
    %v4064 = vsub.f32 %v4046, %v4060
    %v4065 = vmul.f32 %v4061, 1.442695
    %v4066 = vpow.pop %v4065
    %v4067 = vmul.f32 %v4062, 1.442695
    %v4068 = vpow.pop %v4067
    %v4069 = vmul.f32 %v4063, 1.442695
    %v4070 = vpow.pop %v4069
    %v4071 = vmul.f32 %v4064, 1.442695
    %v4072 = vpow.pop %v4071
    %v4073 = vsel %vm281, %v4066, 0.0
    %4074 = vadd.xlane.f32.xlu0 %v4073
    %v4075 = vpop.xlane.xlu0 %4074
    %v4076 = vsel %vm281, %v4068, 0.0
    %4077 = vadd.xlane.f32.xlu0 %v4076
    %v4078 = vpop.xlane.xlu0 %4077
    %v4079 = vsel %vm281, %v4070, 0.0
    %4080 = vadd.xlane.f32.xlu0 %v4079
    %v4081 = vpop.xlane.xlu0 %4080
    %v4082 = vsel %vm281, %v4072, 0.0
    %4083 = vadd.xlane.f32.xlu0 %v4082
    %v4084 = vpop.xlane.xlu0 %4083
    %v4085 = vrcp.pop %v4075
    %v4086 = vrcp.pop %v4078
    %v4087 = vrcp.pop %v4081
    %v4088 = vrcp.pop %v4084
    %v4089 = vmul.f32 %v4066, %v4085
    %v4090 = vmul.f32 %v4068, %v4086
    %v4091 = vmul.f32 %v4070, %v4087
    %v4092 = vmul.f32 %v4072, %v4088
    %4093 = vrot.lane.b32.xlu0 %v2825, 104
    %v4094 = vpop.permute.xlu0 %4093
    %4095 = vrot.lane.b32.xlu0 %v2830, 104
    %v4096 = vpop.permute.xlu0 %4095
    %4097 = vrot.lane.b32.xlu0 %v2835, 104
    %v4098 = vpop.permute.xlu0 %4097
    %4099 = vrot.lane.b32.xlu0 %v2840, 104
    %v4100 = vpop.permute.xlu0 %4099
    %v4106 = vsel %vm281, %v4089, 0
    %v4109 = vsel %vm281, %v4090, 0
    %v4112 = vsel %vm281, %v4091, 0
    %v4115 = vsel %vm281, %v4092, 0
    %4117 = vmatprep.subr.mxu0 0.0
    %4118 = vmatpush1.msra.mxu0 %v4094
    %4119 = vmatprep.subr.mxu0 0.0
    %4120 = vmatpush1.msra.mxu0 %v4096
    %4121 = vmatprep.subr.mxu0 0.0
    %4122 = vmatpush1.msra.mxu0 %v4098
    %4123 = vmatprep.subr.mxu0 0.0
    %4124 = vmatpush1.msra.mxu0 %v4100
    %4125 = vmatprep.subr.mxu0 0.0
    %4126 = vmatpush1.msra.mxu0 0.0
    %4127 = vmatprep.subr.mxu0 0.0
    %4128 = vmatpush1.msra.mxu0 0.0
    %4129 = vmatprep.subr.mxu0 0.0
    %4130 = vmatpush1.msra.mxu0 0.0
    %4131 = vmatprep.subr.mxu0 0.0
    %4132 = vmatpush1.msra.mxu0 0.0
    %4133 = vmatprep.subr.mxu0 0.0
    %4134 = vmatpush1.msra.mxu0 0.0
    %4135 = vmatprep.subr.mxu0 0.0
    %4136 = vmatpush1.msra.mxu0 0.0
    %4137 = vmatprep.subr.mxu0 0.0
    %4138 = vmatpush1.msra.mxu0 0.0
    %4139 = vmatprep.subr.mxu0 0.0
    %4140 = vmatpush1.msra.mxu0 0.0
    %4141 = vmatprep.subr.mxu0 0.0
    %4142 = vmatpush1.msra.mxu0 0.0
    %4143 = vmatprep.subr.mxu0 0.0
    %4144 = vmatpush1.msra.mxu0 0.0
    %4145 = vmatprep.subr.mxu0 0.0
    %4146 = vmatpush1.msra.mxu0 0.0
    %4147 = vmatprep.subr.mxu0 0.0
    %4148 = vmatpush1.msra.mxu0 0.0
    %4149 = vmatprep.subr.mxu0 0.0
    %4150 = vmatpush1.msra.mxu0 0.0
    %4151 = vmatprep.subr.mxu0 0.0
    %4152 = vmatpush1.msra.mxu0 0.0
    %4153 = vmatprep.subr.mxu0 0.0
    %4154 = vmatpush1.msra.mxu0 0.0
    %4155 = vmatprep.subr.mxu0 0.0
    %4156 = vmatpush1.msra.mxu0 0.0
    %4157 = vmatprep.subr.mxu0 0.0
    %4158 = vmatpush1.msra.mxu0 0.0
    %4159 = vmatprep.subr.mxu0 0.0
    %4160 = vmatpush1.msra.mxu0 0.0
    %4161 = vmatprep.subr.mxu0 0.0
    %4162 = vmatpush1.msra.mxu0 0.0
    %4163 = vmatprep.subr.mxu0 0.0
    %4164 = vmatpush1.msra.mxu0 0.0
    %4165 = vmatprep.subr.mxu0 0.0
    %4166 = vmatpush1.msra.mxu0 0.0
    %4167 = vmatprep.subr.mxu0 0.0
    %4168 = vmatpush1.msra.mxu0 0.0
    %4169 = vmatprep.subr.mxu0 0.0
    %4170 = vmatpush1.msra.mxu0 0.0
    %4171 = vmatprep.subr.mxu0 0.0
    %4172 = vmatpush1.msra.mxu0 0.0
    %4173 = vmatprep.subr.mxu0 0.0
    %4174 = vmatpush1.msra.mxu0 0.0
    %4175 = vmatprep.subr.mxu0 0.0
    %4176 = vmatpush1.msra.mxu0 0.0
    %4177 = vmatprep.subr.mxu0 0.0
    %4178 = vmatpush1.msra.mxu0 0.0
    %4179 = vmatprep.subr.mxu0 0.0
    %4180 = vmatpush1.msra.mxu0 0.0
    %4181 = vmatprep.mubr.f32.mxu0 0.0
    %4182 = vmatmul.mubr.f32.gmra.mrb[0].mxu0 %v4106
    %v4183 = vpop.f32.mrb[0].mxu0
    %v4184 = vadd.f32 0.0, %v4183
    %v4185 = vpop.f32.mrb[0].mxu0
    %4186 = vmatprep.mubr.f32.mxu0 0.0
    %4187 = vmatmul.mubr.f32.gmra.mrb[0].mxu0 %v4109
    %v4188 = vpop.f32.mrb[0].mxu0
    %v4189 = vadd.f32 0.0, %v4188
    %v4190 = vpop.f32.mrb[0].mxu0
    %4191 = vmatprep.mubr.f32.mxu0 0.0
    %4192 = vmatmul.mubr.f32.gmra.mrb[0].mxu0 %v4112
    %v4193 = vpop.f32.mrb[0].mxu0
    %v4194 = vadd.f32 0.0, %v4193
    %v4195 = vpop.f32.mrb[0].mxu0
    %4196 = vmatprep.mubr.f32.mxu0 0.0
    %4197 = vmatmul.mubr.f32.gmra.mrb[0].mxu0 %v4115
    %v4198 = vpop.f32.mrb[0].mxu0
    %v4199 = vadd.f32 0.0, %v4198
    %v4200 = vpop.f32.mrb[0].mxu0
    %4201 = vdwg.mxu0
    %v4203 = vsel %vm683, %v4184, 0
    %v4206 = vsel %vm683, %v4189, 0
    %v4209 = vsel %vm683, %v4194, 0
    %v4212 = vsel %vm683, %v4199, 0
    %4214 = vmatprep.subr.mxu0 0.0
    %4215 = vmatpush1.msra.mxu0 %v2551
    %4216 = vmatprep.subr.mxu0 0.0
    %4217 = vmatpush1.msra.mxu0 0.0
    %4218 = vmatprep.subr.mxu0 0.0
    %4219 = vmatpush1.msra.mxu0 0.0
    %4220 = vmatprep.subr.mxu0 0.0
    %4221 = vmatpush1.msra.mxu0 0.0
    %4222 = vmatprep.subr.mxu0 0.0
    %4223 = vmatpush1.msra.mxu0 0.0
    %4224 = vmatprep.subr.mxu0 0.0
    %4225 = vmatpush1.msra.mxu0 0.0
    %4226 = vmatprep.subr.mxu0 0.0
    %4227 = vmatpush1.msra.mxu0 0.0
    %4228 = vmatprep.subr.mxu0 0.0
    %4229 = vmatpush1.msra.mxu0 0.0
    %4230 = vmatprep.subr.mxu0 0.0
    %4231 = vmatpush1.msra.mxu0 0.0
    %4232 = vmatprep.subr.mxu0 0.0
    %4233 = vmatpush1.msra.mxu0 0.0
    %4234 = vmatprep.subr.mxu0 0.0
    %4235 = vmatpush1.msra.mxu0 0.0
    %4236 = vmatprep.subr.mxu0 0.0
    %4237 = vmatpush1.msra.mxu0 0.0
    %4238 = vmatprep.subr.mxu0 0.0
    %4239 = vmatpush1.msra.mxu0 0.0
    %4240 = vmatprep.subr.mxu0 0.0
    %4241 = vmatpush1.msra.mxu0 0.0
    %4242 = vmatprep.subr.mxu0 0.0
    %4243 = vmatpush1.msra.mxu0 0.0
    %4244 = vmatprep.subr.mxu0 0.0
    %4245 = vmatpush1.msra.mxu0 0.0
    %4246 = vmatprep.subr.mxu0 0.0
    %4247 = vmatpush1.msra.mxu0 0.0
    %4248 = vmatprep.subr.mxu0 0.0
    %4249 = vmatpush1.msra.mxu0 0.0
    %4250 = vmatprep.subr.mxu0 0.0
    %4251 = vmatpush1.msra.mxu0 0.0
    %4252 = vmatprep.subr.mxu0 0.0
    %4253 = vmatpush1.msra.mxu0 0.0
    %4254 = vmatprep.subr.mxu0 0.0
    %4255 = vmatpush1.msra.mxu0 0.0
    %4256 = vmatprep.subr.mxu0 0.0
    %4257 = vmatpush1.msra.mxu0 0.0
    %4258 = vmatprep.subr.mxu0 0.0
    %4259 = vmatpush1.msra.mxu0 0.0
    %4260 = vmatprep.subr.mxu0 0.0
    %4261 = vmatpush1.msra.mxu0 0.0
    %4262 = vmatprep.subr.mxu0 0.0
    %4263 = vmatpush1.msra.mxu0 0.0
    %4264 = vmatprep.subr.mxu0 0.0
    %4265 = vmatpush1.msra.mxu0 0.0
    %4266 = vmatprep.subr.mxu0 0.0
    %4267 = vmatpush1.msra.mxu0 0.0
    %4268 = vmatprep.subr.mxu0 0.0
    %4269 = vmatpush1.msra.mxu0 0.0
    %4270 = vmatprep.subr.mxu0 0.0
    %4271 = vmatpush1.msra.mxu0 0.0
    %4272 = vmatprep.subr.mxu0 0.0
    %4273 = vmatpush1.msra.mxu0 0.0
    %4274 = vmatprep.subr.mxu0 0.0
    %4275 = vmatpush1.msra.mxu0 0.0
    %4276 = vmatprep.subr.mxu0 0.0
    %4277 = vmatpush1.msra.mxu0 0.0
    %4278 = vmatprep.mubr.f32.mxu0 0.0
    %4279 = vmatmul.mubr.f32.gmra.mrb[0].mxu0 %v4203
    %v4280 = vpop.f32.mrb[0].mxu0
    %v4281 = vadd.f32 0.0, %v4280
    %v4282 = vpop.f32.mrb[0].mxu0
    %4283 = vmatprep.mubr.f32.mxu0 0.0
    %4284 = vmatmul.mubr.f32.gmra.mrb[0].mxu0 %v4206
    %v4285 = vpop.f32.mrb[0].mxu0
    %v4286 = vadd.f32 0.0, %v4285
    %v4287 = vpop.f32.mrb[0].mxu0
    %4288 = vmatprep.mubr.f32.mxu0 0.0
    %4289 = vmatmul.mubr.f32.gmra.mrb[0].mxu0 %v4209
    %v4290 = vpop.f32.mrb[0].mxu0
    %v4291 = vadd.f32 0.0, %v4290
    %v4292 = vpop.f32.mrb[0].mxu0
    %4293 = vmatprep.mubr.f32.mxu0 0.0
    %4294 = vmatmul.mubr.f32.gmra.mrb[0].mxu0 %v4212
    %v4295 = vpop.f32.mrb[0].mxu0
    %v4296 = vadd.f32 0.0, %v4295
    %v4297 = vpop.f32.mrb[0].mxu0
    %4298 = vdwg.mxu0
    %v4299 = vadd.f32 %v3928, %v4281
    %v4300 = vadd.f32 %v3929, %v4286
    %v4301 = vadd.f32 %v3930, %v4291
    %v4302 = vadd.f32 %v3931, %v4296
    %s4303 = scalar_lea.vmem [#allocation10], 1
    %v4304 = vld [vmem:[%s4303] sm:$0x1]
    %v4306 = vlaneseq
    %v4307 = vshrl.u32 %v4306, 7
    %v4308 = vsub.s32 0, %v4307
    %v4309 = vrot.slane %v4304, %v4308
    %v4311 = vadd.f32 %v4299, %v4309
    %v4312 = vadd.f32 %v4300, %v4309
    %v4313 = vadd.f32 %v4301, %v4309
    %v4314 = vadd.f32 %v4302, %v4309
    %v4315 = vadd.f32 %v2528, %v4311
    %v4316 = vadd.f32 %v2529, %v4312
    %v4317 = vadd.f32 %v2530, %v4313
    %v4318 = vadd.f32 %v2531, %v4314
    %s4319 = scalar_lea.vmem [#allocation14], 1
    %v4320 = vld [vmem:[%s4319] sm:$0x1]
    %s4321 = scalar_lea.vmem [#allocation16], 1
    %v4322 = vld [vmem:[%s4321] sm:$0x1]
    %v4323 = vsel %vm281, %v4315, 0.0
    %4324 = vadd.xlane.f32.xlu0 %v4323
    %v4325 = vpop.xlane.xlu0 %4324
    %v4326 = vsel %vm281, %v4316, 0.0
    %4327 = vadd.xlane.f32.xlu0 %v4326
    %v4328 = vpop.xlane.xlu0 %4327
    %v4329 = vsel %vm281, %v4317, 0.0
    %4330 = vadd.xlane.f32.xlu0 %v4329
    %v4331 = vpop.xlane.xlu0 %4330
    %v4332 = vsel %vm281, %v4318, 0.0
    %4333 = vadd.xlane.f32.xlu0 %v4332
    %v4334 = vpop.xlane.xlu0 %4333
    %v4335 = vmul.f32 %v4325, %v2173
    %v4336 = vmul.f32 %v4328, %v2173
    %v4337 = vmul.f32 %v4331, %v2173
    %v4338 = vmul.f32 %v4334, %v2173
    %v4339 = vsub.f32 %v4315, %v4335
    %v4340 = vsub.f32 %v4316, %v4336
    %v4341 = vsub.f32 %v4317, %v4337
    %v4342 = vsub.f32 %v4318, %v4338
    %v4343 = vmul.f32 %v4339, %v4339
    %v4344 = vmul.f32 %v4340, %v4340
    %v4345 = vmul.f32 %v4341, %v4341
    %v4346 = vmul.f32 %v4342, %v4342
    %v4347 = vsel %vm281, %v4343, 0.0
    %4348 = vadd.xlane.f32.xlu0 %v4347
    %v4349 = vpop.xlane.xlu0 %4348
    %v4350 = vsel %vm281, %v4344, 0.0
    %4351 = vadd.xlane.f32.xlu0 %v4350
    %v4352 = vpop.xlane.xlu0 %4351
    %v4353 = vsel %vm281, %v4345, 0.0
    %4354 = vadd.xlane.f32.xlu0 %v4353
    %v4355 = vpop.xlane.xlu0 %4354
    %v4356 = vsel %vm281, %v4346, 0.0
    %4357 = vadd.xlane.f32.xlu0 %v4356
    %v4358 = vpop.xlane.xlu0 %4357
    %v4359 = vmul.f32 %v4349, %v2173
    %v4360 = vmul.f32 %v4352, %v2173
    %v4361 = vmul.f32 %v4355, %v2173
    %v4362 = vmul.f32 %v4358, %v2173
    %v4363 = vadd.f32 %v4359, 1e-05
    %v4364 = vadd.f32 %v4360, 1e-05
    %v4365 = vadd.f32 %v4361, 1e-05
    %v4366 = vadd.f32 %v4362, 1e-05
    %v4367 = vrsqrt.pop %v4363
    %v4368 = vrsqrt.pop %v4364
    %v4369 = vrsqrt.pop %v4365
    %v4370 = vrsqrt.pop %v4366
    %v4371 = vmul.f32 %v4339, %v4367
    %v4372 = vmul.f32 %v4340, %v4368
    %v4373 = vmul.f32 %v4341, %v4369
    %v4374 = vmul.f32 %v4342, %v4370
    %v4376 = vlaneseq
    %v4377 = vshrl.u32 %v4376, 7
    %v4378 = vsub.s32 0, %v4377
    %v4379 = vrot.slane %v4320, %v4378
    %v4381 = vmul.f32 %v4371, %v4379
    %v4382 = vmul.f32 %v4372, %v4379
    %v4383 = vmul.f32 %v4373, %v4379
    %v4384 = vmul.f32 %v4374, %v4379
    %v4386 = vlaneseq
    %v4387 = vshrl.u32 %v4386, 7
    %v4388 = vsub.s32 0, %v4387
    %v4389 = vrot.slane %v4322, %v4388
    %v4391 = vadd.f32 %v4381, %v4389
    %v4392 = vadd.f32 %v4382, %v4389
    %v4393 = vadd.f32 %v4383, %v4389
    %v4394 = vadd.f32 %v4384, %v4389
    %s4395 = scalar_lea.vmem %s13, 32
    %v4396 = vld [vmem:[%s4395] sm:$0xff]
    %v4397 = vld [vmem:[%s4395 + $0x8] sm:$0xff]
    %v4398 = vld [vmem:[%s4395 + $0x10] sm:$0xff]
    %v4399 = vld [vmem:[%s4395 + $0x18] sm:$0xff]
    %s4400 = scalar_lea.vmem [#allocation11], 1
    %v4401 = vld [vmem:[%s4400] sm:$0x1]
    %v4403 = vlaneseq
    %v4404 = vshrl.u32 %v4403, 7
    %v4405 = vsub.s32 0, %v4404
    %v4406 = vrot.slane %v4401, %v4405
    %v4409 = vsel %vm281, %v4391, 0
    %v4412 = vsel %vm281, %v4392, 0
    %v4415 = vsel %vm281, %v4393, 0
    %v4418 = vsel %vm281, %v4394, 0
    %4420 = vmatprep.subr.mxu0 0.0
    %4421 = vmatpush1.msra.mxu0 %v4396
    %4422 = vmatprep.subr.mxu0 0.0
    %4423 = vmatpush1.msra.mxu0 %v4397
    %4424 = vmatprep.subr.mxu0 0.0
    %4425 = vmatpush1.msra.mxu0 %v4398
    %4426 = vmatprep.subr.mxu0 0.0
    %4427 = vmatpush1.msra.mxu0 %v4399
    %4428 = vmatprep.subr.mxu0 0.0
    %4429 = vmatpush1.msra.mxu0 0.0
    %4430 = vmatprep.subr.mxu0 0.0
    %4431 = vmatpush1.msra.mxu0 0.0
    %4432 = vmatprep.subr.mxu0 0.0
    %4433 = vmatpush1.msra.mxu0 0.0
    %4434 = vmatprep.subr.mxu0 0.0
    %4435 = vmatpush1.msra.mxu0 0.0
    %4436 = vmatprep.subr.mxu0 0.0
    %4437 = vmatpush1.msra.mxu0 0.0
    %4438 = vmatprep.subr.mxu0 0.0
    %4439 = vmatpush1.msra.mxu0 0.0
    %4440 = vmatprep.subr.mxu0 0.0
    %4441 = vmatpush1.msra.mxu0 0.0
    %4442 = vmatprep.subr.mxu0 0.0
    %4443 = vmatpush1.msra.mxu0 0.0
    %4444 = vmatprep.subr.mxu0 0.0
    %4445 = vmatpush1.msra.mxu0 0.0
    %4446 = vmatprep.subr.mxu0 0.0
    %4447 = vmatpush1.msra.mxu0 0.0
    %4448 = vmatprep.subr.mxu0 0.0
    %4449 = vmatpush1.msra.mxu0 0.0
    %4450 = vmatprep.subr.mxu0 0.0
    %4451 = vmatpush1.msra.mxu0 0.0
    %4452 = vmatprep.subr.mxu0 0.0
    %4453 = vmatpush1.msra.mxu0 0.0
    %4454 = vmatprep.subr.mxu0 0.0
    %4455 = vmatpush1.msra.mxu0 0.0
    %4456 = vmatprep.subr.mxu0 0.0
    %4457 = vmatpush1.msra.mxu0 0.0
    %4458 = vmatprep.subr.mxu0 0.0
    %4459 = vmatpush1.msra.mxu0 0.0
    %4460 = vmatprep.subr.mxu0 0.0
    %4461 = vmatpush1.msra.mxu0 0.0
    %4462 = vmatprep.subr.mxu0 0.0
    %4463 = vmatpush1.msra.mxu0 0.0
    %4464 = vmatprep.subr.mxu0 0.0
    %4465 = vmatpush1.msra.mxu0 0.0
    %4466 = vmatprep.subr.mxu0 0.0
    %4467 = vmatpush1.msra.mxu0 0.0
    %4468 = vmatprep.subr.mxu0 0.0
    %4469 = vmatpush1.msra.mxu0 0.0
    %4470 = vmatprep.subr.mxu0 0.0
    %4471 = vmatpush1.msra.mxu0 0.0
    %4472 = vmatprep.subr.mxu0 0.0
    %4473 = vmatpush1.msra.mxu0 0.0
    %4474 = vmatprep.subr.mxu0 0.0
    %4475 = vmatpush1.msra.mxu0 0.0
    %4476 = vmatprep.subr.mxu0 0.0
    %4477 = vmatpush1.msra.mxu0 0.0
    %4478 = vmatprep.subr.mxu0 0.0
    %4479 = vmatpush1.msra.mxu0 0.0
    %4480 = vmatprep.subr.mxu0 0.0
    %4481 = vmatpush1.msra.mxu0 0.0
    %4482 = vmatprep.subr.mxu0 0.0
    %4483 = vmatpush1.msra.mxu0 0.0
    %4484 = vmatprep.mubr.f32.mxu0 0.0
    %4485 = vmatmul.mubr.f32.gmra.mrb[0].mxu0 %v4409
    %v4486 = vpop.f32.mrb[0].mxu0
    %v4487 = vadd.f32 %v4406, %v4486
    %v4488 = vpop.f32.mrb[0].mxu0
    %4489 = vmatprep.mubr.f32.mxu0 0.0
    %4490 = vmatmul.mubr.f32.gmra.mrb[0].mxu0 %v4412
    %v4491 = vpop.f32.mrb[0].mxu0
    %v4492 = vadd.f32 %v4406, %v4491
    %v4493 = vpop.f32.mrb[0].mxu0
    %4494 = vmatprep.mubr.f32.mxu0 0.0
    %4495 = vmatmul.mubr.f32.gmra.mrb[0].mxu0 %v4415
    %v4496 = vpop.f32.mrb[0].mxu0
    %v4497 = vadd.f32 %v4406, %v4496
    %v4498 = vpop.f32.mrb[0].mxu0
    %4499 = vmatprep.mubr.f32.mxu0 0.0
    %4500 = vmatmul.mubr.f32.gmra.mrb[0].mxu0 %v4418
    %v4501 = vpop.f32.mrb[0].mxu0
    %v4502 = vadd.f32 %v4406, %v4501
    %v4503 = vpop.f32.mrb[0].mxu0
    %4504 = vdwg.mxu0
    %v4505 = vmax.f32 %v4487, 0.0
    %v4506 = vmax.f32 %v4492, 0.0
    %v4507 = vmax.f32 %v4497, 0.0
    %v4508 = vmax.f32 %v4502, 0.0
    %s4509 = scalar_lea.vmem %s15, 128
    %v4510 = vld [vmem:[%s4509] sm:$0xff]
    %v4511 = vld [vmem:[%s4509 + $0x8] sm:$0xff]
    %v4512 = vld [vmem:[%s4509 + $0x10] sm:$0xff]
    %v4513 = vld [vmem:[%s4509 + $0x18] sm:$0xff]
    %v4514 = vld [vmem:[%s4509 + $0x20] sm:$0xff]
    %v4515 = vld [vmem:[%s4509 + $0x28] sm:$0xff]
    %v4516 = vld [vmem:[%s4509 + $0x30] sm:$0xff]
    %v4517 = vld [vmem:[%s4509 + $0x38] sm:$0xff]
    %v4518 = vld [vmem:[%s4509 + $0x40] sm:$0xff]
    %v4519 = vld [vmem:[%s4509 + $0x48] sm:$0xff]
    %v4520 = vld [vmem:[%s4509 + $0x50] sm:$0xff]
    %v4521 = vld [vmem:[%s4509 + $0x58] sm:$0xff]
    %v4522 = vld [vmem:[%s4509 + $0x60] sm:$0xff]
    %v4523 = vld [vmem:[%s4509 + $0x68] sm:$0xff]
    %v4524 = vld [vmem:[%s4509 + $0x70] sm:$0xff]
    %v4525 = vld [vmem:[%s4509 + $0x78] sm:$0xff]
    %s4526 = scalar_lea.vmem [#allocation13], 1
    %v4527 = vld [vmem:[%s4526] sm:$0x1]
    %v4529 = vlaneseq
    %v4530 = vshrl.u32 %v4529, 7
    %v4531 = vsub.s32 0, %v4530
    %v4532 = vrot.slane %v4527, %v4531
    %4534 = vmatprep.subr.mxu0 0.0
    %4535 = vmatpush1.msra.mxu0 %v4510
    %4536 = vmatprep.subr.mxu0 0.0
    %4537 = vmatpush1.msra.mxu0 %v4511
    %4538 = vmatprep.subr.mxu0 0.0
    %4539 = vmatpush1.msra.mxu0 %v4512
    %4540 = vmatprep.subr.mxu0 0.0
    %4541 = vmatpush1.msra.mxu0 %v4513
    %4542 = vmatprep.subr.mxu0 0.0
    %4543 = vmatpush1.msra.mxu0 %v4514
    %4544 = vmatprep.subr.mxu0 0.0
    %4545 = vmatpush1.msra.mxu0 %v4515
    %4546 = vmatprep.subr.mxu0 0.0
    %4547 = vmatpush1.msra.mxu0 %v4516
    %4548 = vmatprep.subr.mxu0 0.0
    %4549 = vmatpush1.msra.mxu0 %v4517
    %4550 = vmatprep.subr.mxu0 0.0
    %4551 = vmatpush1.msra.mxu0 %v4518
    %4552 = vmatprep.subr.mxu0 0.0
    %4553 = vmatpush1.msra.mxu0 %v4519
    %4554 = vmatprep.subr.mxu0 0.0
    %4555 = vmatpush1.msra.mxu0 %v4520
    %4556 = vmatprep.subr.mxu0 0.0
    %4557 = vmatpush1.msra.mxu0 %v4521
    %4558 = vmatprep.subr.mxu0 0.0
    %4559 = vmatpush1.msra.mxu0 %v4522
    %4560 = vmatprep.subr.mxu0 0.0
    %4561 = vmatpush1.msra.mxu0 %v4523
    %4562 = vmatprep.subr.mxu0 0.0
    %4563 = vmatpush1.msra.mxu0 %v4524
    %4564 = vmatprep.subr.mxu0 0.0
    %4565 = vmatpush1.msra.mxu0 %v4525
    %4566 = vmatprep.subr.mxu0 0.0
    %4567 = vmatpush1.msra.mxu0 0.0
    %4568 = vmatprep.subr.mxu0 0.0
    %4569 = vmatpush1.msra.mxu0 0.0
    %4570 = vmatprep.subr.mxu0 0.0
    %4571 = vmatpush1.msra.mxu0 0.0
    %4572 = vmatprep.subr.mxu0 0.0
    %4573 = vmatpush1.msra.mxu0 0.0
    %4574 = vmatprep.subr.mxu0 0.0
    %4575 = vmatpush1.msra.mxu0 0.0
    %4576 = vmatprep.subr.mxu0 0.0
    %4577 = vmatpush1.msra.mxu0 0.0
    %4578 = vmatprep.subr.mxu0 0.0
    %4579 = vmatpush1.msra.mxu0 0.0
    %4580 = vmatprep.subr.mxu0 0.0
    %4581 = vmatpush1.msra.mxu0 0.0
    %4582 = vmatprep.subr.mxu0 0.0
    %4583 = vmatpush1.msra.mxu0 0.0
    %4584 = vmatprep.subr.mxu0 0.0
    %4585 = vmatpush1.msra.mxu0 0.0
    %4586 = vmatprep.subr.mxu0 0.0
    %4587 = vmatpush1.msra.mxu0 0.0
    %4588 = vmatprep.subr.mxu0 0.0
    %4589 = vmatpush1.msra.mxu0 0.0
    %4590 = vmatprep.subr.mxu0 0.0
    %4591 = vmatpush1.msra.mxu0 0.0
    %4592 = vmatprep.subr.mxu0 0.0
    %4593 = vmatpush1.msra.mxu0 0.0
    %4594 = vmatprep.subr.mxu0 0.0
    %4595 = vmatpush1.msra.mxu0 0.0
    %4596 = vmatprep.subr.mxu0 0.0
    %4597 = vmatpush1.msra.mxu0 0.0
    %4598 = vmatprep.mubr.f32.mxu0 0.0
    %4599 = vmatmul.mubr.f32.gmra.mrb[0].mxu0 %v4505
    %v4600 = vpop.f32.mrb[0].mxu0
    %v4601 = vadd.f32 %v4532, %v4600
    %v4602 = vpop.f32.mrb[0].mxu0
    %4603 = vmatprep.mubr.f32.mxu0 0.0
    %4604 = vmatmul.mubr.f32.gmra.mrb[0].mxu0 %v4506
    %v4605 = vpop.f32.mrb[0].mxu0
    %v4606 = vadd.f32 %v4532, %v4605
    %v4607 = vpop.f32.mrb[0].mxu0
    %4608 = vmatprep.mubr.f32.mxu0 0.0
    %4609 = vmatmul.mubr.f32.gmra.mrb[0].mxu0 %v4507
    %v4610 = vpop.f32.mrb[0].mxu0
    %v4611 = vadd.f32 %v4532, %v4610
    %v4612 = vpop.f32.mrb[0].mxu0
    %4613 = vmatprep.mubr.f32.mxu0 0.0
    %4614 = vmatmul.mubr.f32.gmra.mrb[0].mxu0 %v4508
    %v4615 = vpop.f32.mrb[0].mxu0
    %v4616 = vadd.f32 %v4532, %v4615
    %v4617 = vpop.f32.mrb[0].mxu0
    %4618 = vdwg.mxu0
    %v4619 = vadd.f32 %v4391, %v4601
    %v4620 = vadd.f32 %v4392, %v4606
    %v4621 = vadd.f32 %v4393, %v4611
    %v4622 = vadd.f32 %v4394, %v4616
    %s4623 = scalar_lea.vmem [#allocation17], 1
    %v4624 = vld [vmem:[%s4623] sm:$0x1]
    %s4625 = scalar_lea.vmem [#allocation19], 1
    %v4626 = vld [vmem:[%s4625] sm:$0x1]
    %v4627 = vsel %vm281, %v4619, 0.0
    %4628 = vadd.xlane.f32.xlu0 %v4627
    %v4629 = vpop.xlane.xlu0 %4628
    %v4630 = vsel %vm281, %v4620, 0.0
    %4631 = vadd.xlane.f32.xlu0 %v4630
    %v4632 = vpop.xlane.xlu0 %4631
    %v4633 = vsel %vm281, %v4621, 0.0
    %4634 = vadd.xlane.f32.xlu0 %v4633
    %v4635 = vpop.xlane.xlu0 %4634
    %v4636 = vsel %vm281, %v4622, 0.0
    %4637 = vadd.xlane.f32.xlu0 %v4636
    %v4638 = vpop.xlane.xlu0 %4637
    %v4639 = vmul.f32 %v4629, %v2173
    %v4640 = vmul.f32 %v4632, %v2173
    %v4641 = vmul.f32 %v4635, %v2173
    %v4642 = vmul.f32 %v4638, %v2173
    %v4643 = vsub.f32 %v4619, %v4639
    %v4644 = vsub.f32 %v4620, %v4640
    %v4645 = vsub.f32 %v4621, %v4641
    %v4646 = vsub.f32 %v4622, %v4642
    %v4647 = vmul.f32 %v4643, %v4643
    %v4648 = vmul.f32 %v4644, %v4644
    %v4649 = vmul.f32 %v4645, %v4645
    %v4650 = vmul.f32 %v4646, %v4646
    %v4651 = vsel %vm281, %v4647, 0.0
    %4652 = vadd.xlane.f32.xlu0 %v4651
    %v4653 = vpop.xlane.xlu0 %4652
    %v4654 = vsel %vm281, %v4648, 0.0
    %4655 = vadd.xlane.f32.xlu0 %v4654
    %v4656 = vpop.xlane.xlu0 %4655
    %v4657 = vsel %vm281, %v4649, 0.0
    %4658 = vadd.xlane.f32.xlu0 %v4657
    %v4659 = vpop.xlane.xlu0 %4658
    %v4660 = vsel %vm281, %v4650, 0.0
    %4661 = vadd.xlane.f32.xlu0 %v4660
    %v4662 = vpop.xlane.xlu0 %4661
    %v4663 = vmul.f32 %v4653, %v2173
    %v4664 = vmul.f32 %v4656, %v2173
    %v4665 = vmul.f32 %v4659, %v2173
    %v4666 = vmul.f32 %v4662, %v2173
    %v4667 = vadd.f32 %v4663, 1e-05
    %v4668 = vadd.f32 %v4664, 1e-05
    %v4669 = vadd.f32 %v4665, 1e-05
    %v4670 = vadd.f32 %v4666, 1e-05
    %v4671 = vrsqrt.pop %v4667
    %v4672 = vrsqrt.pop %v4668
    %v4673 = vrsqrt.pop %v4669
    %v4674 = vrsqrt.pop %v4670
    %v4675 = vmul.f32 %v4643, %v4671
    %v4676 = vmul.f32 %v4644, %v4672
    %v4677 = vmul.f32 %v4645, %v4673
    %v4678 = vmul.f32 %v4646, %v4674
    %v4680 = vlaneseq
    %v4681 = vshrl.u32 %v4680, 7
    %v4682 = vsub.s32 0, %v4681
    %v4683 = vrot.slane %v4624, %v4682
    %v4685 = vmul.f32 %v4675, %v4683
    %v4686 = vmul.f32 %v4676, %v4683
    %v4687 = vmul.f32 %v4677, %v4683
    %v4688 = vmul.f32 %v4678, %v4683
    %v4690 = vlaneseq
    %v4691 = vshrl.u32 %v4690, 7
    %v4692 = vsub.s32 0, %v4691
    %v4693 = vrot.slane %v4626, %v4692
    %v4695 = vadd.f32 %v4685, %v4693
    %v4696 = vadd.f32 %v4686, %v4693
    %v4697 = vadd.f32 %v4687, %v4693
    %v4698 = vadd.f32 %v4688, %v4693
    %v4699 = vld [vmem:[%s21] sm:$0x3]
    %v4700 = vld [vmem:[#allocation2] sm:$0x1]
    %v4702 = vlaneseq
    %v4703 = vshrl.u32 %v4702, 7
    %v4704 = vsub.s32 0, %v4703
    %v4705 = vrot.slane %v4700, %v4704
    %4706 = vset.pattern.permute.xlu0 0
    %4707 = vperm.xlu0 %4706, %v4705
    %v4708 = vpop.permute.xlu0 %4707
    %v4711 = vsel %vm281, %v4699, 0
    %4713 = vmatprep.subr.mxu0 0.0
    %4714 = vmatpush1.msra.mxu0 %v4695
    %4715 = vmatprep.subr.mxu0 0.0
    %4716 = vmatpush1.msra.mxu0 %v4696
    %4717 = vmatprep.subr.mxu0 0.0
    %4718 = vmatpush1.msra.mxu0 %v4697
    %4719 = vmatprep.subr.mxu0 0.0
    %4720 = vmatpush1.msra.mxu0 %v4698
    %4721 = vmatprep.subr.mxu0 0.0
    %4722 = vmatpush1.msra.mxu0 0.0
    %4723 = vmatprep.subr.mxu0 0.0
    %4724 = vmatpush1.msra.mxu0 0.0
    %4725 = vmatprep.subr.mxu0 0.0
    %4726 = vmatpush1.msra.mxu0 0.0
    %4727 = vmatprep.subr.mxu0 0.0
    %4728 = vmatpush1.msra.mxu0 0.0
    %4729 = vmatprep.subr.mxu0 0.0
    %4730 = vmatpush1.msra.mxu0 0.0
    %4731 = vmatprep.subr.mxu0 0.0
    %4732 = vmatpush1.msra.mxu0 0.0
    %4733 = vmatprep.subr.mxu0 0.0
    %4734 = vmatpush1.msra.mxu0 0.0
    %4735 = vmatprep.subr.mxu0 0.0
    %4736 = vmatpush1.msra.mxu0 0.0
    %4737 = vmatprep.subr.mxu0 0.0
    %4738 = vmatpush1.msra.mxu0 0.0
    %4739 = vmatprep.subr.mxu0 0.0
    %4740 = vmatpush1.msra.mxu0 0.0
    %4741 = vmatprep.subr.mxu0 0.0
    %4742 = vmatpush1.msra.mxu0 0.0
    %4743 = vmatprep.subr.mxu0 0.0
    %4744 = vmatpush1.msra.mxu0 0.0
    %4745 = vmatprep.subr.mxu0 0.0
    %4746 = vmatpush1.msra.mxu0 0.0
    %4747 = vmatprep.subr.mxu0 0.0
    %4748 = vmatpush1.msra.mxu0 0.0
    %4749 = vmatprep.subr.mxu0 0.0
    %4750 = vmatpush1.msra.mxu0 0.0
    %4751 = vmatprep.subr.mxu0 0.0
    %4752 = vmatpush1.msra.mxu0 0.0
    %4753 = vmatprep.subr.mxu0 0.0
    %4754 = vmatpush1.msra.mxu0 0.0
    %4755 = vmatprep.subr.mxu0 0.0
    %4756 = vmatpush1.msra.mxu0 0.0
    %4757 = vmatprep.subr.mxu0 0.0
    %4758 = vmatpush1.msra.mxu0 0.0
    %4759 = vmatprep.subr.mxu0 0.0
    %4760 = vmatpush1.msra.mxu0 0.0
    %4761 = vmatprep.subr.mxu0 0.0
    %4762 = vmatpush1.msra.mxu0 0.0
    %4763 = vmatprep.subr.mxu0 0.0
    %4764 = vmatpush1.msra.mxu0 0.0
    %4765 = vmatprep.subr.mxu0 0.0
    %4766 = vmatpush1.msra.mxu0 0.0
    %4767 = vmatprep.subr.mxu0 0.0
    %4768 = vmatpush1.msra.mxu0 0.0
    %4769 = vmatprep.subr.mxu0 0.0
    %4770 = vmatpush1.msra.mxu0 0.0
    %4771 = vmatprep.subr.mxu0 0.0
    %4772 = vmatpush1.msra.mxu0 0.0
    %4773 = vmatprep.subr.mxu0 0.0
    %4774 = vmatpush1.msra.mxu0 0.0
    %4775 = vmatprep.subr.mxu0 0.0
    %4776 = vmatpush1.msra.mxu0 0.0
    %4777 = vmatprep.mubr.f32.mxu0 0.0
    %4778 = vmatmul.mubr.f32.gmra.mrb[0].mxu0 %v4711
    %v4779 = vpop.f32.mrb[0].mxu0
    %v4780 = vadd.f32 %v4708, %v4779
    %v4781 = vpop.f32.mrb[0].mxu0
    %4782 = vdwg.mxu0
    %v4783 = vld [vmem:[#allocation20] sm:$0xff]
    %v4784 = vld [vmem:[#allocation20 + $0x8] sm:$0xff]
    %v4785 = vld [vmem:[#allocation20 + $0x10] sm:$0xff]
    %v4786 = vld [vmem:[#allocation20 + $0x18] sm:$0xff]
    %v4787 = vld [vmem:[#allocation22] sm:$0x1]
    %v4789 = vlaneseq
    %v4790 = vshrl.u32 %v4789, 7
    %v4791 = vsub.s32 0, %v4790
    %v4792 = vrot.slane %v4787, %v4791
    %v4795 = vsel %vm281, %v4780, 0
    %4797 = vmatprep.subr.mxu0 0.0
    %4798 = vmatpush1.msra.mxu0 %v4783
    %4799 = vmatprep.subr.mxu0 0.0
    %4800 = vmatpush1.msra.mxu0 %v4784
    %4801 = vmatprep.subr.mxu0 0.0
    %4802 = vmatpush1.msra.mxu0 %v4785
    %4803 = vmatprep.subr.mxu0 0.0
    %4804 = vmatpush1.msra.mxu0 %v4786
    %4805 = vmatprep.subr.mxu0 0.0
    %4806 = vmatpush1.msra.mxu0 0.0
    %4807 = vmatprep.subr.mxu0 0.0
    %4808 = vmatpush1.msra.mxu0 0.0
    %4809 = vmatprep.subr.mxu0 0.0
    %4810 = vmatpush1.msra.mxu0 0.0
    %4811 = vmatprep.subr.mxu0 0.0
    %4812 = vmatpush1.msra.mxu0 0.0
    %4813 = vmatprep.subr.mxu0 0.0
    %4814 = vmatpush1.msra.mxu0 0.0
    %4815 = vmatprep.subr.mxu0 0.0
    %4816 = vmatpush1.msra.mxu0 0.0
    %4817 = vmatprep.subr.mxu0 0.0
    %4818 = vmatpush1.msra.mxu0 0.0
    %4819 = vmatprep.subr.mxu0 0.0
    %4820 = vmatpush1.msra.mxu0 0.0
    %4821 = vmatprep.subr.mxu0 0.0
    %4822 = vmatpush1.msra.mxu0 0.0
    %4823 = vmatprep.subr.mxu0 0.0
    %4824 = vmatpush1.msra.mxu0 0.0
    %4825 = vmatprep.subr.mxu0 0.0
    %4826 = vmatpush1.msra.mxu0 0.0
    %4827 = vmatprep.subr.mxu0 0.0
    %4828 = vmatpush1.msra.mxu0 0.0
    %4829 = vmatprep.subr.mxu0 0.0
    %4830 = vmatpush1.msra.mxu0 0.0
    %4831 = vmatprep.subr.mxu0 0.0
    %4832 = vmatpush1.msra.mxu0 0.0
    %4833 = vmatprep.subr.mxu0 0.0
    %4834 = vmatpush1.msra.mxu0 0.0
    %4835 = vmatprep.subr.mxu0 0.0
    %4836 = vmatpush1.msra.mxu0 0.0
    %4837 = vmatprep.subr.mxu0 0.0
    %4838 = vmatpush1.msra.mxu0 0.0
    %4839 = vmatprep.subr.mxu0 0.0
    %4840 = vmatpush1.msra.mxu0 0.0
    %4841 = vmatprep.subr.mxu0 0.0
    %4842 = vmatpush1.msra.mxu0 0.0
    %4843 = vmatprep.subr.mxu0 0.0
    %4844 = vmatpush1.msra.mxu0 0.0
    %4845 = vmatprep.subr.mxu0 0.0
    %4846 = vmatpush1.msra.mxu0 0.0
    %4847 = vmatprep.subr.mxu0 0.0
    %4848 = vmatpush1.msra.mxu0 0.0
    %4849 = vmatprep.subr.mxu0 0.0
    %4850 = vmatpush1.msra.mxu0 0.0
    %4851 = vmatprep.subr.mxu0 0.0
    %4852 = vmatpush1.msra.mxu0 0.0
    %4853 = vmatprep.subr.mxu0 0.0
    %4854 = vmatpush1.msra.mxu0 0.0
    %4855 = vmatprep.subr.mxu0 0.0
    %4856 = vmatpush1.msra.mxu0 0.0
    %4857 = vmatprep.subr.mxu0 0.0
    %4858 = vmatpush1.msra.mxu0 0.0
    %4859 = vmatprep.subr.mxu0 0.0
    %4860 = vmatpush1.msra.mxu0 0.0
    %4861 = vmatprep.mubr.f32.mxu0 0.0
    %4862 = vmatmul.mubr.f32.gmra.mrb[0].mxu0 %v4795
    %v4863 = vpop.f32.mrb[0].mxu0
    %v4864 = vadd.f32 %v4792, %v4863
    %v4865 = vpop.f32.mrb[0].mxu0
    %4866 = vdwg.mxu0
    %vm4867 = vcmask 254976
    %4868 = vst.msk [vmem:[%s25] sm:$0x3] %vm4867, %v4864
    // Predicated region
    $region154: #{transformer_disperse_forward.1} parent=1 // pred_check
      _
    $region155: #{transformer_disperse_forward.1} parent=1 // pred_check_branch
      %4870 = sbr.rel (0) target = $region157
    $region156: #{transformer_disperse_forward.1} parent=1 // pred_region
      _
    $region157: #{transformer_disperse_forward.1} parent=1 // pred_fallthru
      _
    // Predicated region
    $region158: #{transformer_disperse_forward.1} parent=1 // pred_check
      _
    $region159: #{transformer_disperse_forward.1} parent=1 // pred_check_branch
      %4872 = sbr.rel (0) target = $region161
    $region160: #{transformer_disperse_forward.1} parent=1 // pred_region
      _
    $region161: #{transformer_disperse_forward.1} parent=1 // pred_fallthru
      _
    %4873 = vsyncpa [#allocation4], 1
    %4874 = vsyncpa [#allocation6], 1
    %4875 = vsyncpa [#allocation9], 1
    %4876 = vsyncpa [#allocation12], 1
    %4877 = vsyncpa [#allocation15], 1
    %4878 = vsyncpa [#allocation18], 1
    %4879 = vsyncpa [#allocation21], 1

</llo_original>
